<compile_context>
chip_gen: v5e
topology: v5e:2x2
jax: 0.10.0
libtpu: 0.0.40
codegen_flags: <defaults>
</compile_context>

<pallas_src>
import math

import jax
import jax.numpy as jnp
from jax.experimental import pallas as pl
from jax.experimental.pallas import tpu as pltpu


def _build_pe(d_model: int, max_len: int) -> jnp.ndarray:
    """Sinusoidal positional-encoding buffer, shape [max_len, 1, d_model]."""
    position = jnp.arange(0, max_len, dtype=jnp.float32)[:, None]            # [L, 1]
    div_term = jnp.exp(
        jnp.arange(0, d_model, 2, dtype=jnp.float32) * (-math.log(10000.0) / d_model)
    )                                                                         # [D/2]
    pe = jnp.zeros((max_len, d_model), dtype=jnp.float32)
    pe = pe.at[:, 0::2].set(jnp.sin(position * div_term))
    pe = pe.at[:, 1::2].set(jnp.cos(position * div_term))
    return pe[:, None, :]                                                     # [L, 1, D]


def _pe_add_kernel(x_ref, pe_ref, o_ref):
    # x_ref: (ts, B, D), pe_ref: (ts, 1, D) -> broadcast add over the batch axis.
    o_ref[...] = x_ref[...] + pe_ref[...]


def _pick_seq_tile(S: int, B: int, D: int, itemsize: int, vmem_budget_bytes: int) -> int:
    """Largest sequence-tile that keeps the double-buffered pipeline in budget."""
    # Per sequence row: x_in (2 bufs) + out (2 bufs) = 4*B*D, pe (2 bufs) = 2*D.
    per_row_bytes = (4 * B * D + 2 * D) * itemsize
    ts = min(S, 512, max(1, vmem_budget_bytes // per_row_bytes))
    return ts


def positional_encoding_forward(
    x: jnp.ndarray,
    pe: jnp.ndarray,
    *,
    vmem_budget_bytes: int = 12 * 1024 * 1024,   # safe under v5e's 16 MiB scoped VMEM
) -> jnp.ndarray:
    """x: [S, B, D]; pe: [max_len, 1, D].  Returns x + pe[:S]."""
    S, B, D = x.shape
    pe_sliced = pe[:S].astype(x.dtype)            # [S, 1, D] (cheap: 1/B of x size)

    ts = _pick_seq_tile(S, B, D, x.dtype.itemsize, vmem_budget_bytes)
    grid = (pl.cdiv(S, ts),)                      # ragged tail handled by Pallas masking

    return pl.pallas_call(
        _pe_add_kernel,
        out_shape=jax.ShapeDtypeStruct((S, B, D), x.dtype),
        grid_spec=pltpu.PrefetchScalarGridSpec(
            num_scalar_prefetch=0,
            grid=grid,
            in_specs=[
                pl.BlockSpec((ts, B, D), lambda i: (i, 0, 0)),
                pl.BlockSpec((ts, 1, D), lambda i: (i, 0, 0)),
            ],
            out_specs=pl.BlockSpec((ts, B, D), lambda i: (i, 0, 0)),
        ),
        compiler_params=pltpu.CompilerParams(
            # Independent sequence tiles: lets Mosaic shard across TensorCores
            # on multi-TC chips (v7x); neutral elsewhere.
            dimension_semantics=("parallel",),
        ),
    )(x, pe_sliced)


if __name__ == "__main__":
    key = jax.random.PRNGKey(0)

    # --- Primary test: lane-dense (D=128) and sublane-dense (B=8) blocks,
    #     sequence long enough for multi-block pipelining (ts=512, grid=(2,)).
    d_model, max_len, seq_len, batch = 128, 2048, 1024, 8
    pe = _build_pe(d_model, max_len)
    x = jax.random.normal(key, (seq_len, batch, d_model), dtype=jnp.float32)

    out = jax.block_until_ready(positional_encoding_forward(x, pe))
    ref = x + pe[:seq_len]
    assert out.shape == (seq_len, batch, d_model)
    assert jnp.allclose(out, ref, atol=1e-6), "mismatch vs reference (primary)"

    # --- Secondary test: tiny module-default-like shape (S=8, B=2, D=32);
    #     exercises the single-block path and degenerate layout correctness.
    d2, l2, s2, b2 = 32, 64, 8, 2
    pe2 = _build_pe(d2, l2)
    x2 = jax.random.normal(jax.random.PRNGKey(1), (s2, b2, d2), dtype=jnp.float32)

    out2 = jax.block_until_ready(positional_encoding_forward(x2, pe2))
    ref2 = x2 + pe2[:s2]
    assert out2.shape == (s2, b2, d2)
    assert jnp.allclose(out2, ref2, atol=1e-6), "mismatch vs reference (secondary)"

    print("KERNEL_OK")
</pallas_src>

<mosaic_0001>
module attributes {stable_mosaic.version = 11 : i64} {
  func.func @_pe_add_kernel(%arg0: i32, %arg1: memref<512x8x128xf32, #tpu.memory_space<vmem>>, %arg2: memref<512x1x128xf32, #tpu.memory_space<vmem>>, %arg3: memref<512x8x128xf32, #tpu.memory_space<vmem>>) attributes {dimension_semantics = [#tpu.dimension_semantics<parallel>], iteration_bounds = array<i64: 2>, scalar_prefetch = 0 : i64, scratch_operands = 0 : i64, tpu.core_type = #tpu.core_type<tc>, window_params = [{transform_indices = @transform_0, window_bounds = array<i64: 512, 8, 128>}, {transform_indices = @transform_1, window_bounds = array<i64: 512, 1, 128>}, {transform_indices = @transform_2, window_bounds = array<i64: 512, 8, 128>}]} {
    %c0 = arith.constant 0 : index
    %c0_0 = arith.constant 0 : index
    %c0_1 = arith.constant 0 : index
    %0 = vector.load %arg1[%c0, %c0_0, %c0_1] : memref<512x8x128xf32, #tpu.memory_space<vmem>>, vector<512x8x128xf32>
    %c0_2 = arith.constant 0 : index
    %c0_3 = arith.constant 0 : index
    %c0_4 = arith.constant 0 : index
    %1 = vector.load %arg2[%c0_2, %c0_3, %c0_4] : memref<512x1x128xf32, #tpu.memory_space<vmem>>, vector<512x1x128xf32>
    %2 = vector.broadcast %1 : vector<512x1x128xf32> to vector<512x8x128xf32>
    %3 = arith.addf %0, %2 : vector<512x8x128xf32>
    %c0_5 = arith.constant 0 : index
    %c0_6 = arith.constant 0 : index
    %c0_7 = arith.constant 0 : index
    %4 = vector.load %arg3[%c0_5, %c0_6, %c0_7] : memref<512x8x128xf32, #tpu.memory_space<vmem>>, vector<512x8x128xf32>
    tpu.vector_store %arg3[%c0_5, %c0_6, %c0_7], %3 {strides = array<i32>} : memref<512x8x128xf32, #tpu.memory_space<vmem>>, vector<512x8x128xf32>,
    return
  }
  func.func @transform_0(%arg0: i32) -> (i32, i32, i32) {
    %c0_i32 = arith.constant 0 : i32
    %c0_i32_0 = arith.constant 0 : i32
    %c0_i32_1 = arith.constant 0 : i32
    return %arg0, %c0_i32, %c0_i32_0 : i32, i32, i32
  }
  func.func @transform_1(%arg0: i32) -> (i32, i32, i32) {
    %c0_i32 = arith.constant 0 : i32
    %c0_i32_0 = arith.constant 0 : i32
    %c0_i32_1 = arith.constant 0 : i32
    return %arg0, %c0_i32, %c0_i32_0 : i32, i32, i32
  }
  func.func @transform_2(%arg0: i32) -> (i32, i32, i32) {
    %c0_i32 = arith.constant 0 : i32
    %c0_i32_0 = arith.constant 0 : i32
    %c0_i32_1 = arith.constant 0 : i32
    return %arg0, %c0_i32, %c0_i32_0 : i32, i32, i32
  }
}

</mosaic_0001>

<llo_original>
// kernel: tpu_custom_call.1
$region0: #{tpu_custom_call.1}
  #allocation0 [shape = 'u32[]', space=smem, size = 0x4, offset = 0x4, fixed_abs, tag = 'smem constant byte address 0x4 - core index']
  #allocation1 [shape = 'u32[72,128]{1,0:T(1,128)}', space=vmem, size = 0x9000, scoped, tag = 'internal scratch']
  %s0 = inlined_call_operand.hbm [shape: f32[1024,8,128], index: 0, kind: input, shape index: {}]
  %s1 = inlined_call_operand.hbm [shape: f32[1024,1,128], index: 1, kind: input, shape index: {}]
  %s2 = inlined_call_operand.hbm [shape: f32[1024,8,128], index: 2, kind: output, shape index: {}]
  %s3 = sld [smem:[#allocation0]]
  $region49: #{tpu_custom_call.1} parent=0
    _
  %s5 = ssub.s32 1, %s3
  %s6 = scalar_select 0, %s5, %s3
  $region1: #{tpu_custom_call.1} parent=0
    #allocation2 [shape = 'u8[4194304]{0}', space=vmem, size = 0x400000, scoped, tag = 'input window, operand 0']
    #allocation3 [shape = 's32[2]{0}', space=sflag, size = 0x8, scoped, tag = 'scoped memory for tpu_custom_call.1']
    #allocation4 [shape = 's32[2]{0}', space=sflag, size = 0x8, scoped, tag = 'scoped memory for tpu_custom_call.1']
    #allocation5 [shape = 'u8[524288]{0}', space=vmem, size = 0x80000, scoped, tag = 'input window, operand 1']
    #allocation6 [shape = 's32[2]{0}', space=sflag, size = 0x8, scoped, tag = 'scoped memory for tpu_custom_call.1']
    #allocation7 [shape = 'u8[4194304]{0}', space=vmem, size = 0x400000, scoped, tag = 'output window, operand 0']
    %7 = vsyncpa [#allocation3], 0
    %s8 = scalar_lea.sflag [#allocation3], 1
    %9 = vsyncpa %s8, 0
    %10 = vsyncpa [#allocation6], 0
    %s11 = scalar_lea.sflag [#allocation6], 1
    %12 = vsyncpa %s11, 0
    %13 = vsyncpa [#allocation4], 0
    %s14 = scalar_lea.sflag [#allocation4], 1
    %15 = vsyncpa %s14, 0
    loop: start=0, step=1, limit=4
    $region2: #{tpu_custom_call.1} parent=1 // loop_pre_header
      _
    $region3: #{tpu_custom_call.1} parent=1 // loop_header
      %s17 = sphi 0, %s21
      %p18 = scmp.ge.s32.totalorder %s17, 4
      %s27 = sphi 0, %s29
      %s30 = sphi 0, %s27
      %s31 = sphi 0, %s30
      %s47 = sphi 0, %s31
      %s53 = sphi 0, %s55
      %s56 = sphi 0, %s53
      %s57 = sphi 0, %s56
      %s73 = sphi 0, %s57
      %s79 = sphi 0, %s81
      %s82 = sphi 0, %s79
      %s83 = sphi 0, %s82
      %s99 = sphi 0, %s83
    $region4: #{tpu_custom_call.1} parent=1 // loop_header_branch
      %20 = sbr.rel (%p18) target = $region8
    $region5: #{tpu_custom_call.1} parent=1 // loop_body
      %s22 = ssub.s32 %s17, 1
      %s23 = ssub.s32 %s17, 2
      %s24 = sadd.s32 %s17, 1
      %s25 = ssub.s32 %s17, %s24
      %p26 = scmp.eq.s32.totalorder %s25, 0
      %s28 = sadd.s32 %s27, 1
      %s29 = scalar_select %p26, %s27, %s28
      %p32 = pneg %p26
      %p33 = scmp.eq.s32.totalorder %s17, 1
      %p34 = por %p32, %p33
      %p35 = scmp.ne.s32.totalorder %s27, %s30
      %p36 = scmp.eq.s32.totalorder %s17, 0
      %p37 = por %p35, %p36
      %p38 = scmp.ne.s32.totalorder %s27, %s30
      %p39 = scmp.eq.s32.totalorder %s22, 1
      %p40 = por %p38, %p39
      %p41 = scmp.ne.s32.totalorder %s30, %s31
      %p42 = scmp.eq.s32.totalorder %s22, 0
      %p43 = por %p41, %p42
      %p44 = scmp.ne.s32.totalorder %s30, %s31
      %p45 = scmp.eq.s32.totalorder %s23, 1
      %p46 = por %p44, %p45
      %p48 = scmp.ne.s32.totalorder %s31, %s47
      %p49 = scmp.eq.s32.totalorder %s23, 0
      %p50 = por %p48, %p49
      %s51 = ssub.s32 %s17, %s24
      %p52 = scmp.eq.s32.totalorder %s51, 0
      %s54 = sadd.s32 %s53, 1
      %s55 = scalar_select %p52, %s53, %s54
      %p58 = pneg %p52
      %p59 = scmp.eq.s32.totalorder %s17, 1
      %p60 = por %p58, %p59
      %p61 = scmp.ne.s32.totalorder %s53, %s56
      %p62 = scmp.eq.s32.totalorder %s17, 0
      %p63 = por %p61, %p62
      %p64 = scmp.ne.s32.totalorder %s53, %s56
      %p65 = scmp.eq.s32.totalorder %s22, 1
      %p66 = por %p64, %p65
      %p67 = scmp.ne.s32.totalorder %s56, %s57
      %p68 = scmp.eq.s32.totalorder %s22, 0
      %p69 = por %p67, %p68
      %p70 = scmp.ne.s32.totalorder %s56, %s57
      %p71 = scmp.eq.s32.totalorder %s23, 1
      %p72 = por %p70, %p71
      %p74 = scmp.ne.s32.totalorder %s57, %s73
      %p75 = scmp.eq.s32.totalorder %s23, 0
      %p76 = por %p74, %p75
      %s77 = ssub.s32 %s17, %s24
      %p78 = scmp.eq.s32.totalorder %s77, 0
      %s80 = sadd.s32 %s79, 1
      %s81 = scalar_select %p78, %s79, %s80
      %p84 = pneg %p78
      %p85 = scmp.eq.s32.totalorder %s17, 1
      %p86 = por %p84, %p85
      %p87 = scmp.ne.s32.totalorder %s79, %s82
      %p88 = scmp.eq.s32.totalorder %s17, 0
      %p89 = por %p87, %p88
      %p90 = scmp.ne.s32.totalorder %s79, %s82
      %p91 = scmp.eq.s32.totalorder %s22, 1
      %p92 = por %p90, %p91
      %p93 = scmp.ne.s32.totalorder %s82, %s83
      %p94 = scmp.eq.s32.totalorder %s22, 0
      %p95 = por %p93, %p94
      %p96 = scmp.ne.s32.totalorder %s82, %s83
      %p97 = scmp.eq.s32.totalorder %s23, 1
      %p98 = por %p96, %p97
      %p100 = scmp.ne.s32.totalorder %s83, %s99
      %p101 = scmp.eq.s32.totalorder %s23, 0
      %p102 = por %p100, %p101
      %p103 = scmp.le.s32.totalorder 1, %s17
      %p104 = scmp.lt.s32.totalorder %s17, 3
      %p105 = pnand %p103, %p104
      %p106 = pneg %p105
      // Predicated region
      $region9: #{tpu_custom_call.1} parent=5 // pred_check
        _
      $region10: #{tpu_custom_call.1} parent=5 // pred_check_branch
        %108 = sbr.rel (%p105) target = $region12
      $region11: #{tpu_custom_call.1} parent=5 // pred_region
        %s109 = ssub.s32 %s17, 1
      $region12: #{tpu_custom_call.1} parent=5 // pred_fallthru
        _
      %p110 = scmp.lt.s32.totalorder %s17, 2
      // Predicated region
      $region13: #{tpu_custom_call.1} parent=5 // pred_check
        %p111 = pneg %p110
      $region14: #{tpu_custom_call.1} parent=5 // pred_check_branch
        %113 = sbr.rel (%p111) target = $region16
      $region15: #{tpu_custom_call.1} parent=5 // pred_region
        // Predicated region
        $region17: #{tpu_custom_call.1} parent=15 // pred_check
          %p114 = pneg %p37
        $region18: #{tpu_custom_call.1} parent=15 // pred_check_branch
          %116 = sbr.rel (%p114) target = $region20
        $region19: #{tpu_custom_call.1} parent=15 // pred_region
          %s117 = sand.u32 %s27, 1
          %s118 = scalar_lea.sflag [#allocation3], %s117
          %s119 = sand.u32 %s27, 1
          %s120 = smul.addr %s119, 4096
          %s121 = scalar_lea.vmem [#allocation2], %s120
          %s122 = smul.u32 512, %s17
          %124 = vsyncadd %s118, 0
          %s125 = smul.addr %s122, 8
          %s126 = scalar_lea.hbm %s0, %s125
          %s127 = sshll.u32 %s126, 4
          %s128 = int_to_ptr.hbm [resolvable:$true] %s127
          %s129 = sshll.u32 %s121, 4
          %s130 = int_to_ptr.vmem [resolvable:$true] %s129
          %135 = dma.hbm_to_vmem [thread:$0]  %s128, 65536, %s130, %s118, 128, 128, 8
        $region20: #{tpu_custom_call.1} parent=15 // pred_fallthru
          _
        // Predicated region
        $region21: #{tpu_custom_call.1} parent=15 // pred_check
          %p136 = pneg %p63
        $region22: #{tpu_custom_call.1} parent=15 // pred_check_branch
          %138 = sbr.rel (%p136) target = $region24
        $region23: #{tpu_custom_call.1} parent=15 // pred_region
          %s139 = sand.u32 %s53, 1
          %s140 = scalar_lea.sflag [#allocation6], %s139
          %s141 = sand.u32 %s53, 1
          %s142 = smul.addr %s141, 512
          %s143 = scalar_lea.vmem [#allocation5], %s142
          %s144 = smul.u32 512, %s17
          %146 = vsyncadd %s140, 0
          %s147 = scalar_lea.hbm %s1, %s144
          %s148 = sshll.u32 %s147, 4
          %s149 = int_to_ptr.hbm [resolvable:$true] %s148
          %s150 = sshll.u32 %s143, 4
          %s151 = int_to_ptr.vmem [resolvable:$true] %s150
          %156 = dma.hbm_to_vmem [thread:$0]  %s149, 8192, %s151, %s140, 16, 16, 1
        $region24: #{tpu_custom_call.1} parent=15 // pred_fallthru
          _
      $region16: #{tpu_custom_call.1} parent=5 // pred_fallthru
        _
      %p157 = scmp.le.s32.totalorder 1, %s17
      %p158 = scmp.lt.s32.totalorder %s17, 3
      %p159 = pnand %p157, %p158
      %p160 = pneg %p159
      // Predicated region
      $region25: #{tpu_custom_call.1} parent=5 // pred_check
        _
      $region26: #{tpu_custom_call.1} parent=5 // pred_check_branch
        %162 = sbr.rel (%p159) target = $region28
      $region27: #{tpu_custom_call.1} parent=5 // pred_region
        %s163 = ssub.s32 %s17, 1
        %s164 = sand.u32 %s30, 1
        %s165 = scalar_lea.sflag [#allocation3], %s164
        %s166 = sand.u32 %s30, 1
        %s167 = smul.addr %s166, 4096
        %s168 = scalar_lea.vmem [#allocation2], %s167
        // Predicated region
        $region29: #{tpu_custom_call.1} parent=27 // pred_check
          %p169 = pneg %p43
        $region30: #{tpu_custom_call.1} parent=27 // pred_check_branch
          %171 = sbr.rel (%p169) target = $region32
        $region31: #{tpu_custom_call.1} parent=27 // pred_region
          %173 = dma.done %s165, 65536
        $region32: #{tpu_custom_call.1} parent=27 // pred_fallthru
          _
        %s174 = sand.u32 %s56, 1
        %s175 = scalar_lea.sflag [#allocation6], %s174
        %s176 = sand.u32 %s56, 1
        %s177 = smul.addr %s176, 512
        %s178 = scalar_lea.vmem [#allocation5], %s177
        // Predicated region
        $region33: #{tpu_custom_call.1} parent=27 // pred_check
          %p179 = pneg %p69
        $region34: #{tpu_custom_call.1} parent=27 // pred_check_branch
          %181 = sbr.rel (%p179) target = $region36
        $region35: #{tpu_custom_call.1} parent=27 // pred_region
          %183 = dma.done %s175, 8192
        $region36: #{tpu_custom_call.1} parent=27 // pred_fallthru
          _
        %s184 = sand.u32 %s30, 1
        %s185 = scalar_lea.sflag [#allocation3], %s184
        %s186 = sand.u32 %s30, 1
        %s187 = smul.addr %s186, 4096
        %s188 = scalar_lea.vmem [#allocation2], %s187
        %p189 = pneg %p43
        %p190 = pneg %p40
        %s191 = sand.u32 %s56, 1
        %s192 = scalar_lea.sflag [#allocation6], %s191
        %s193 = sand.u32 %s56, 1
        %s194 = smul.addr %s193, 512
        %s195 = scalar_lea.vmem [#allocation5], %s194
        %p196 = pneg %p69
        %p197 = pneg %p66
        %p198 = pneg %p95
        %p199 = pneg %p92
        %s200 = sand.u32 %s82, 1
        %s201 = scalar_lea.sflag [#allocation4], %s200
        %s202 = sand.u32 %s82, 1
        %s203 = smul.addr %s202, 4096
        %s204 = scalar_lea.vmem [#allocation7], %s203
        %s205 = smul.u32 512, %s22
        %s206 = smul.u32 512, %s22
        %s207 = smul.u32 512, %s22
        %v208 = vld [vmem:[%s168] sm:$0xff]
        %v209 = vld [vmem:[%s168 + $0x8] sm:$0xff]
        %v210 = vld [vmem:[%s168 + $0x10] sm:$0xff]
        %v211 = vld [vmem:[%s168 + $0x18] sm:$0xff]
        %v212 = vld [vmem:[%s168 + $0x20] sm:$0xff]
        %v213 = vld [vmem:[%s168 + $0x28] sm:$0xff]
        %v214 = vld [vmem:[%s168 + $0x30] sm:$0xff]
        %v215 = vld [vmem:[%s168 + $0x38] sm:$0xff]
        %v216 = vld [vmem:[%s168 + $0x40] sm:$0xff]
        %v217 = vld [vmem:[%s168 + $0x48] sm:$0xff]
        %v218 = vld [vmem:[%s168 + $0x50] sm:$0xff]
        %v219 = vld [vmem:[%s168 + $0x58] sm:$0xff]
        %v220 = vld [vmem:[%s168 + $0x60] sm:$0xff]
        %v221 = vld [vmem:[%s168 + $0x68] sm:$0xff]
        %v222 = vld [vmem:[%s168 + $0x70] sm:$0xff]
        %v223 = vld [vmem:[%s168 + $0x78] sm:$0xff]
        %v224 = vld [vmem:[%s168 + $0x80] sm:$0xff]
        %v225 = vld [vmem:[%s168 + $0x88] sm:$0xff]
        %v226 = vld [vmem:[%s168 + $0x90] sm:$0xff]
        %v227 = vld [vmem:[%s168 + $0x98] sm:$0xff]
        %v228 = vld [vmem:[%s168 + $0xa0] sm:$0xff]
        %v229 = vld [vmem:[%s168 + $0xa8] sm:$0xff]
        %v230 = vld [vmem:[%s168 + $0xb0] sm:$0xff]
        %v231 = vld [vmem:[%s168 + $0xb8] sm:$0xff]
        %v232 = vld [vmem:[%s168 + $0xc0] sm:$0xff]
        %v233 = vld [vmem:[%s168 + $0xc8] sm:$0xff]
        %v234 = vld [vmem:[%s168 + $0xd0] sm:$0xff]
        %v235 = vld [vmem:[%s168 + $0xd8] sm:$0xff]
        %v236 = vld [vmem:[%s168 + $0xe0] sm:$0xff]
        %v237 = vld [vmem:[%s168 + $0xe8] sm:$0xff]
        %v238 = vld [vmem:[%s168 + $0xf0] sm:$0xff]
        %v239 = vld [vmem:[%s168 + $0xf8] sm:$0xff]
        %v240 = vld [vmem:[%s168 + $0x100] sm:$0xff]
        %v241 = vld [vmem:[%s168 + $0x108] sm:$0xff]
        %v242 = vld [vmem:[%s168 + $0x110] sm:$0xff]
        %v243 = vld [vmem:[%s168 + $0x118] sm:$0xff]
        %v244 = vld [vmem:[%s168 + $0x120] sm:$0xff]
        %v245 = vld [vmem:[%s168 + $0x128] sm:$0xff]
        %v246 = vld [vmem:[%s168 + $0x130] sm:$0xff]
        %v247 = vld [vmem:[%s168 + $0x138] sm:$0xff]
        %v248 = vld [vmem:[%s168 + $0x140] sm:$0xff]
        %v249 = vld [vmem:[%s168 + $0x148] sm:$0xff]
        %v250 = vld [vmem:[%s168 + $0x150] sm:$0xff]
        %v251 = vld [vmem:[%s168 + $0x158] sm:$0xff]
        %v252 = vld [vmem:[%s168 + $0x160] sm:$0xff]
        %v253 = vld [vmem:[%s168 + $0x168] sm:$0xff]
        %v254 = vld [vmem:[%s168 + $0x170] sm:$0xff]
        %v255 = vld [vmem:[%s168 + $0x178] sm:$0xff]
        %v256 = vld [vmem:[%s168 + $0x180] sm:$0xff]
        %v257 = vld [vmem:[%s168 + $0x188] sm:$0xff]
        %v258 = vld [vmem:[%s168 + $0x190] sm:$0xff]
        %v259 = vld [vmem:[%s168 + $0x198] sm:$0xff]
        %v260 = vld [vmem:[%s168 + $0x1a0] sm:$0xff]
        %v261 = vld [vmem:[%s168 + $0x1a8] sm:$0xff]
        %v262 = vld [vmem:[%s168 + $0x1b0] sm:$0xff]
        %v263 = vld [vmem:[%s168 + $0x1b8] sm:$0xff]
        %v264 = vld [vmem:[%s168 + $0x1c0] sm:$0xff]
        %v265 = vld [vmem:[%s168 + $0x1c8] sm:$0xff]
        %v266 = vld [vmem:[%s168 + $0x1d0] sm:$0xff]
        %v267 = vld [vmem:[%s168 + $0x1d8] sm:$0xff]
        %v268 = vld [vmem:[%s168 + $0x1e0] sm:$0xff]
        %v269 = vld [vmem:[%s168 + $0x1e8] sm:$0xff]
        %v270 = vld [vmem:[%s168 + $0x1f0] sm:$0xff]
        %v271 = vld [vmem:[%s168 + $0x1f8] sm:$0xff]
        %v272 = vld [vmem:[%s168 + $0x200] sm:$0xff]
        %v273 = vld [vmem:[%s168 + $0x208] sm:$0xff]
        %v274 = vld [vmem:[%s168 + $0x210] sm:$0xff]
        %v275 = vld [vmem:[%s168 + $0x218] sm:$0xff]
        %v276 = vld [vmem:[%s168 + $0x220] sm:$0xff]
        %v277 = vld [vmem:[%s168 + $0x228] sm:$0xff]
        %v278 = vld [vmem:[%s168 + $0x230] sm:$0xff]
        %v279 = vld [vmem:[%s168 + $0x238] sm:$0xff]
        %v280 = vld [vmem:[%s168 + $0x240] sm:$0xff]
        %v281 = vld [vmem:[%s168 + $0x248] sm:$0xff]
        %v282 = vld [vmem:[%s168 + $0x250] sm:$0xff]
        %v283 = vld [vmem:[%s168 + $0x258] sm:$0xff]
        %v284 = vld [vmem:[%s168 + $0x260] sm:$0xff]
        %v285 = vld [vmem:[%s168 + $0x268] sm:$0xff]
        %v286 = vld [vmem:[%s168 + $0x270] sm:$0xff]
        %v287 = vld [vmem:[%s168 + $0x278] sm:$0xff]
        %v288 = vld [vmem:[%s168 + $0x280] sm:$0xff]
        %v289 = vld [vmem:[%s168 + $0x288] sm:$0xff]
        %v290 = vld [vmem:[%s168 + $0x290] sm:$0xff]
        %v291 = vld [vmem:[%s168 + $0x298] sm:$0xff]
        %v292 = vld [vmem:[%s168 + $0x2a0] sm:$0xff]
        %v293 = vld [vmem:[%s168 + $0x2a8] sm:$0xff]
        %v294 = vld [vmem:[%s168 + $0x2b0] sm:$0xff]
        %v295 = vld [vmem:[%s168 + $0x2b8] sm:$0xff]
        %v296 = vld [vmem:[%s168 + $0x2c0] sm:$0xff]
        %v297 = vld [vmem:[%s168 + $0x2c8] sm:$0xff]
        %v298 = vld [vmem:[%s168 + $0x2d0] sm:$0xff]
        %v299 = vld [vmem:[%s168 + $0x2d8] sm:$0xff]
        %v300 = vld [vmem:[%s168 + $0x2e0] sm:$0xff]
        %v301 = vld [vmem:[%s168 + $0x2e8] sm:$0xff]
        %v302 = vld [vmem:[%s168 + $0x2f0] sm:$0xff]
        %v303 = vld [vmem:[%s168 + $0x2f8] sm:$0xff]
        %v304 = vld [vmem:[%s168 + $0x300] sm:$0xff]
        %v305 = vld [vmem:[%s168 + $0x308] sm:$0xff]
        %v306 = vld [vmem:[%s168 + $0x310] sm:$0xff]
        %v307 = vld [vmem:[%s168 + $0x318] sm:$0xff]
        %v308 = vld [vmem:[%s168 + $0x320] sm:$0xff]
        %v309 = vld [vmem:[%s168 + $0x328] sm:$0xff]
        %v310 = vld [vmem:[%s168 + $0x330] sm:$0xff]
        %v311 = vld [vmem:[%s168 + $0x338] sm:$0xff]
        %v312 = vld [vmem:[%s168 + $0x340] sm:$0xff]
        %v313 = vld [vmem:[%s168 + $0x348] sm:$0xff]
        %v314 = vld [vmem:[%s168 + $0x350] sm:$0xff]
        %v315 = vld [vmem:[%s168 + $0x358] sm:$0xff]
        %v316 = vld [vmem:[%s168 + $0x360] sm:$0xff]
        %v317 = vld [vmem:[%s168 + $0x368] sm:$0xff]
        %v318 = vld [vmem:[%s168 + $0x370] sm:$0xff]
        %v319 = vld [vmem:[%s168 + $0x378] sm:$0xff]
        %v320 = vld [vmem:[%s168 + $0x380] sm:$0xff]
        %v321 = vld [vmem:[%s168 + $0x388] sm:$0xff]
        %v322 = vld [vmem:[%s168 + $0x390] sm:$0xff]
        %v323 = vld [vmem:[%s168 + $0x398] sm:$0xff]
        %v324 = vld [vmem:[%s168 + $0x3a0] sm:$0xff]
        %v325 = vld [vmem:[%s168 + $0x3a8] sm:$0xff]
        %v326 = vld [vmem:[%s168 + $0x3b0] sm:$0xff]
        %v327 = vld [vmem:[%s168 + $0x3b8] sm:$0xff]
        %v328 = vld [vmem:[%s168 + $0x3c0] sm:$0xff]
        %v329 = vld [vmem:[%s168 + $0x3c8] sm:$0xff]
        %v330 = vld [vmem:[%s168 + $0x3d0] sm:$0xff]
        %v331 = vld [vmem:[%s168 + $0x3d8] sm:$0xff]
        %v332 = vld [vmem:[%s168 + $0x3e0] sm:$0xff]
        %v333 = vld [vmem:[%s168 + $0x3e8] sm:$0xff]
        %v334 = vld [vmem:[%s168 + $0x3f0] sm:$0xff]
        %v335 = vld [vmem:[%s168 + $0x3f8] sm:$0xff]
        %v336 = vld [vmem:[%s168 + $0x400] sm:$0xff]
        %v337 = vld [vmem:[%s168 + $0x408] sm:$0xff]
        %v338 = vld [vmem:[%s168 + $0x410] sm:$0xff]
        %v339 = vld [vmem:[%s168 + $0x418] sm:$0xff]
        %v340 = vld [vmem:[%s168 + $0x420] sm:$0xff]
        %v341 = vld [vmem:[%s168 + $0x428] sm:$0xff]
        %v342 = vld [vmem:[%s168 + $0x430] sm:$0xff]
        %v343 = vld [vmem:[%s168 + $0x438] sm:$0xff]
        %v344 = vld [vmem:[%s168 + $0x440] sm:$0xff]
        %v345 = vld [vmem:[%s168 + $0x448] sm:$0xff]
        %v346 = vld [vmem:[%s168 + $0x450] sm:$0xff]
        %v347 = vld [vmem:[%s168 + $0x458] sm:$0xff]
        %v348 = vld [vmem:[%s168 + $0x460] sm:$0xff]
        %v349 = vld [vmem:[%s168 + $0x468] sm:$0xff]
        %v350 = vld [vmem:[%s168 + $0x470] sm:$0xff]
        %v351 = vld [vmem:[%s168 + $0x478] sm:$0xff]
        %v352 = vld [vmem:[%s168 + $0x480] sm:$0xff]
        %v353 = vld [vmem:[%s168 + $0x488] sm:$0xff]
        %v354 = vld [vmem:[%s168 + $0x490] sm:$0xff]
        %v355 = vld [vmem:[%s168 + $0x498] sm:$0xff]
        %v356 = vld [vmem:[%s168 + $0x4a0] sm:$0xff]
        %v357 = vld [vmem:[%s168 + $0x4a8] sm:$0xff]
        %v358 = vld [vmem:[%s168 + $0x4b0] sm:$0xff]
        %v359 = vld [vmem:[%s168 + $0x4b8] sm:$0xff]
        %v360 = vld [vmem:[%s168 + $0x4c0] sm:$0xff]
        %v361 = vld [vmem:[%s168 + $0x4c8] sm:$0xff]
        %v362 = vld [vmem:[%s168 + $0x4d0] sm:$0xff]
        %v363 = vld [vmem:[%s168 + $0x4d8] sm:$0xff]
        %v364 = vld [vmem:[%s168 + $0x4e0] sm:$0xff]
        %v365 = vld [vmem:[%s168 + $0x4e8] sm:$0xff]
        %v366 = vld [vmem:[%s168 + $0x4f0] sm:$0xff]
        %v367 = vld [vmem:[%s168 + $0x4f8] sm:$0xff]
        %v368 = vld [vmem:[%s168 + $0x500] sm:$0xff]
        %v369 = vld [vmem:[%s168 + $0x508] sm:$0xff]
        %v370 = vld [vmem:[%s168 + $0x510] sm:$0xff]
        %v371 = vld [vmem:[%s168 + $0x518] sm:$0xff]
        %v372 = vld [vmem:[%s168 + $0x520] sm:$0xff]
        %v373 = vld [vmem:[%s168 + $0x528] sm:$0xff]
        %v374 = vld [vmem:[%s168 + $0x530] sm:$0xff]
        %v375 = vld [vmem:[%s168 + $0x538] sm:$0xff]
        %v376 = vld [vmem:[%s168 + $0x540] sm:$0xff]
        %v377 = vld [vmem:[%s168 + $0x548] sm:$0xff]
        %v378 = vld [vmem:[%s168 + $0x550] sm:$0xff]
        %v379 = vld [vmem:[%s168 + $0x558] sm:$0xff]
        %v380 = vld [vmem:[%s168 + $0x560] sm:$0xff]
        %v381 = vld [vmem:[%s168 + $0x568] sm:$0xff]
        %v382 = vld [vmem:[%s168 + $0x570] sm:$0xff]
        %v383 = vld [vmem:[%s168 + $0x578] sm:$0xff]
        %v384 = vld [vmem:[%s168 + $0x580] sm:$0xff]
        %v385 = vld [vmem:[%s168 + $0x588] sm:$0xff]
        %v386 = vld [vmem:[%s168 + $0x590] sm:$0xff]
        %v387 = vld [vmem:[%s168 + $0x598] sm:$0xff]
        %v388 = vld [vmem:[%s168 + $0x5a0] sm:$0xff]
        %v389 = vld [vmem:[%s168 + $0x5a8] sm:$0xff]
        %v390 = vld [vmem:[%s168 + $0x5b0] sm:$0xff]
        %v391 = vld [vmem:[%s168 + $0x5b8] sm:$0xff]
        %v392 = vld [vmem:[%s168 + $0x5c0] sm:$0xff]
        %v393 = vld [vmem:[%s168 + $0x5c8] sm:$0xff]
        %v394 = vld [vmem:[%s168 + $0x5d0] sm:$0xff]
        %v395 = vld [vmem:[%s168 + $0x5d8] sm:$0xff]
        %v396 = vld [vmem:[%s168 + $0x5e0] sm:$0xff]
        %v397 = vld [vmem:[%s168 + $0x5e8] sm:$0xff]
        %v398 = vld [vmem:[%s168 + $0x5f0] sm:$0xff]
        %v399 = vld [vmem:[%s168 + $0x5f8] sm:$0xff]
        %v400 = vld [vmem:[%s168 + $0x600] sm:$0xff]
        %v401 = vld [vmem:[%s168 + $0x608] sm:$0xff]
        %v402 = vld [vmem:[%s168 + $0x610] sm:$0xff]
        %v403 = vld [vmem:[%s168 + $0x618] sm:$0xff]
        %v404 = vld [vmem:[%s168 + $0x620] sm:$0xff]
        %v405 = vld [vmem:[%s168 + $0x628] sm:$0xff]
        %v406 = vld [vmem:[%s168 + $0x630] sm:$0xff]
        %v407 = vld [vmem:[%s168 + $0x638] sm:$0xff]
        %v408 = vld [vmem:[%s168 + $0x640] sm:$0xff]
        %v409 = vld [vmem:[%s168 + $0x648] sm:$0xff]
        %v410 = vld [vmem:[%s168 + $0x650] sm:$0xff]
        %v411 = vld [vmem:[%s168 + $0x658] sm:$0xff]
        %v412 = vld [vmem:[%s168 + $0x660] sm:$0xff]
        %v413 = vld [vmem:[%s168 + $0x668] sm:$0xff]
        %v414 = vld [vmem:[%s168 + $0x670] sm:$0xff]
        %v415 = vld [vmem:[%s168 + $0x678] sm:$0xff]
        %v416 = vld [vmem:[%s168 + $0x680] sm:$0xff]
        %v417 = vld [vmem:[%s168 + $0x688] sm:$0xff]
        %v418 = vld [vmem:[%s168 + $0x690] sm:$0xff]
        %v419 = vld [vmem:[%s168 + $0x698] sm:$0xff]
        %v420 = vld [vmem:[%s168 + $0x6a0] sm:$0xff]
        %v421 = vld [vmem:[%s168 + $0x6a8] sm:$0xff]
        %v422 = vld [vmem:[%s168 + $0x6b0] sm:$0xff]
        %v423 = vld [vmem:[%s168 + $0x6b8] sm:$0xff]
        %v424 = vld [vmem:[%s168 + $0x6c0] sm:$0xff]
        %v425 = vld [vmem:[%s168 + $0x6c8] sm:$0xff]
        %v426 = vld [vmem:[%s168 + $0x6d0] sm:$0xff]
        %v427 = vld [vmem:[%s168 + $0x6d8] sm:$0xff]
        %v428 = vld [vmem:[%s168 + $0x6e0] sm:$0xff]
        %v429 = vld [vmem:[%s168 + $0x6e8] sm:$0xff]
        %v430 = vld [vmem:[%s168 + $0x6f0] sm:$0xff]
        %v431 = vld [vmem:[%s168 + $0x6f8] sm:$0xff]
        %v432 = vld [vmem:[%s168 + $0x700] sm:$0xff]
        %v433 = vld [vmem:[%s168 + $0x708] sm:$0xff]
        %v434 = vld [vmem:[%s168 + $0x710] sm:$0xff]
        %v435 = vld [vmem:[%s168 + $0x718] sm:$0xff]
        %v436 = vld [vmem:[%s168 + $0x720] sm:$0xff]
        %v437 = vld [vmem:[%s168 + $0x728] sm:$0xff]
        %v438 = vld [vmem:[%s168 + $0x730] sm:$0xff]
        %v439 = vld [vmem:[%s168 + $0x738] sm:$0xff]
        %v440 = vld [vmem:[%s168 + $0x740] sm:$0xff]
        %v441 = vld [vmem:[%s168 + $0x748] sm:$0xff]
        %v442 = vld [vmem:[%s168 + $0x750] sm:$0xff]
        %v443 = vld [vmem:[%s168 + $0x758] sm:$0xff]
        %v444 = vld [vmem:[%s168 + $0x760] sm:$0xff]
        %v445 = vld [vmem:[%s168 + $0x768] sm:$0xff]
        %v446 = vld [vmem:[%s168 + $0x770] sm:$0xff]
        %v447 = vld [vmem:[%s168 + $0x778] sm:$0xff]
        %v448 = vld [vmem:[%s168 + $0x780] sm:$0xff]
        %v449 = vld [vmem:[%s168 + $0x788] sm:$0xff]
        %v450 = vld [vmem:[%s168 + $0x790] sm:$0xff]
        %v451 = vld [vmem:[%s168 + $0x798] sm:$0xff]
        %v452 = vld [vmem:[%s168 + $0x7a0] sm:$0xff]
        %v453 = vld [vmem:[%s168 + $0x7a8] sm:$0xff]
        %v454 = vld [vmem:[%s168 + $0x7b0] sm:$0xff]
        %v455 = vld [vmem:[%s168 + $0x7b8] sm:$0xff]
        %v456 = vld [vmem:[%s168 + $0x7c0] sm:$0xff]
        %v457 = vld [vmem:[%s168 + $0x7c8] sm:$0xff]
        %v458 = vld [vmem:[%s168 + $0x7d0] sm:$0xff]
        %v459 = vld [vmem:[%s168 + $0x7d8] sm:$0xff]
        %v460 = vld [vmem:[%s168 + $0x7e0] sm:$0xff]
        %v461 = vld [vmem:[%s168 + $0x7e8] sm:$0xff]
        %v462 = vld [vmem:[%s168 + $0x7f0] sm:$0xff]
        %v463 = vld [vmem:[%s168 + $0x7f8] sm:$0xff]
        %v464 = vld [vmem:[%s168 + $0x800] sm:$0xff]
        %v465 = vld [vmem:[%s168 + $0x808] sm:$0xff]
        %v466 = vld [vmem:[%s168 + $0x810] sm:$0xff]
        %v467 = vld [vmem:[%s168 + $0x818] sm:$0xff]
        %v468 = vld [vmem:[%s168 + $0x820] sm:$0xff]
        %v469 = vld [vmem:[%s168 + $0x828] sm:$0xff]
        %v470 = vld [vmem:[%s168 + $0x830] sm:$0xff]
        %v471 = vld [vmem:[%s168 + $0x838] sm:$0xff]
        %v472 = vld [vmem:[%s168 + $0x840] sm:$0xff]
        %v473 = vld [vmem:[%s168 + $0x848] sm:$0xff]
        %v474 = vld [vmem:[%s168 + $0x850] sm:$0xff]
        %v475 = vld [vmem:[%s168 + $0x858] sm:$0xff]
        %v476 = vld [vmem:[%s168 + $0x860] sm:$0xff]
        %v477 = vld [vmem:[%s168 + $0x868] sm:$0xff]
        %v478 = vld [vmem:[%s168 + $0x870] sm:$0xff]
        %v479 = vld [vmem:[%s168 + $0x878] sm:$0xff]
        %v480 = vld [vmem:[%s168 + $0x880] sm:$0xff]
        %v481 = vld [vmem:[%s168 + $0x888] sm:$0xff]
        %v482 = vld [vmem:[%s168 + $0x890] sm:$0xff]
        %v483 = vld [vmem:[%s168 + $0x898] sm:$0xff]
        %v484 = vld [vmem:[%s168 + $0x8a0] sm:$0xff]
        %v485 = vld [vmem:[%s168 + $0x8a8] sm:$0xff]
        %v486 = vld [vmem:[%s168 + $0x8b0] sm:$0xff]
        %v487 = vld [vmem:[%s168 + $0x8b8] sm:$0xff]
        %v488 = vld [vmem:[%s168 + $0x8c0] sm:$0xff]
        %v489 = vld [vmem:[%s168 + $0x8c8] sm:$0xff]
        %v490 = vld [vmem:[%s168 + $0x8d0] sm:$0xff]
        %v491 = vld [vmem:[%s168 + $0x8d8] sm:$0xff]
        %v492 = vld [vmem:[%s168 + $0x8e0] sm:$0xff]
        %v493 = vld [vmem:[%s168 + $0x8e8] sm:$0xff]
        %v494 = vld [vmem:[%s168 + $0x8f0] sm:$0xff]
        %v495 = vld [vmem:[%s168 + $0x8f8] sm:$0xff]
        %v496 = vld [vmem:[%s168 + $0x900] sm:$0xff]
        %v497 = vld [vmem:[%s168 + $0x908] sm:$0xff]
        %v498 = vld [vmem:[%s168 + $0x910] sm:$0xff]
        %v499 = vld [vmem:[%s168 + $0x918] sm:$0xff]
        %v500 = vld [vmem:[%s168 + $0x920] sm:$0xff]
        %v501 = vld [vmem:[%s168 + $0x928] sm:$0xff]
        %v502 = vld [vmem:[%s168 + $0x930] sm:$0xff]
        %v503 = vld [vmem:[%s168 + $0x938] sm:$0xff]
        %v504 = vld [vmem:[%s168 + $0x940] sm:$0xff]
        %v505 = vld [vmem:[%s168 + $0x948] sm:$0xff]
        %v506 = vld [vmem:[%s168 + $0x950] sm:$0xff]
        %v507 = vld [vmem:[%s168 + $0x958] sm:$0xff]
        %v508 = vld [vmem:[%s168 + $0x960] sm:$0xff]
        %v509 = vld [vmem:[%s168 + $0x968] sm:$0xff]
        %v510 = vld [vmem:[%s168 + $0x970] sm:$0xff]
        %v511 = vld [vmem:[%s168 + $0x978] sm:$0xff]
        %v512 = vld [vmem:[%s168 + $0x980] sm:$0xff]
        %v513 = vld [vmem:[%s168 + $0x988] sm:$0xff]
        %v514 = vld [vmem:[%s168 + $0x990] sm:$0xff]
        %v515 = vld [vmem:[%s168 + $0x998] sm:$0xff]
        %v516 = vld [vmem:[%s168 + $0x9a0] sm:$0xff]
        %v517 = vld [vmem:[%s168 + $0x9a8] sm:$0xff]
        %v518 = vld [vmem:[%s168 + $0x9b0] sm:$0xff]
        %v519 = vld [vmem:[%s168 + $0x9b8] sm:$0xff]
        %v520 = vld [vmem:[%s168 + $0x9c0] sm:$0xff]
        %v521 = vld [vmem:[%s168 + $0x9c8] sm:$0xff]
        %v522 = vld [vmem:[%s168 + $0x9d0] sm:$0xff]
        %v523 = vld [vmem:[%s168 + $0x9d8] sm:$0xff]
        %v524 = vld [vmem:[%s168 + $0x9e0] sm:$0xff]
        %v525 = vld [vmem:[%s168 + $0x9e8] sm:$0xff]
        %v526 = vld [vmem:[%s168 + $0x9f0] sm:$0xff]
        %v527 = vld [vmem:[%s168 + $0x9f8] sm:$0xff]
        %v528 = vld [vmem:[%s168 + $0xa00] sm:$0xff]
        %v529 = vld [vmem:[%s168 + $0xa08] sm:$0xff]
        %v530 = vld [vmem:[%s168 + $0xa10] sm:$0xff]
        %v531 = vld [vmem:[%s168 + $0xa18] sm:$0xff]
        %v532 = vld [vmem:[%s168 + $0xa20] sm:$0xff]
        %v533 = vld [vmem:[%s168 + $0xa28] sm:$0xff]
        %v534 = vld [vmem:[%s168 + $0xa30] sm:$0xff]
        %v535 = vld [vmem:[%s168 + $0xa38] sm:$0xff]
        %v536 = vld [vmem:[%s168 + $0xa40] sm:$0xff]
        %v537 = vld [vmem:[%s168 + $0xa48] sm:$0xff]
        %v538 = vld [vmem:[%s168 + $0xa50] sm:$0xff]
        %v539 = vld [vmem:[%s168 + $0xa58] sm:$0xff]
        %v540 = vld [vmem:[%s168 + $0xa60] sm:$0xff]
        %v541 = vld [vmem:[%s168 + $0xa68] sm:$0xff]
        %v542 = vld [vmem:[%s168 + $0xa70] sm:$0xff]
        %v543 = vld [vmem:[%s168 + $0xa78] sm:$0xff]
        %v544 = vld [vmem:[%s168 + $0xa80] sm:$0xff]
        %v545 = vld [vmem:[%s168 + $0xa88] sm:$0xff]
        %v546 = vld [vmem:[%s168 + $0xa90] sm:$0xff]
        %v547 = vld [vmem:[%s168 + $0xa98] sm:$0xff]
        %v548 = vld [vmem:[%s168 + $0xaa0] sm:$0xff]
        %v549 = vld [vmem:[%s168 + $0xaa8] sm:$0xff]
        %v550 = vld [vmem:[%s168 + $0xab0] sm:$0xff]
        %v551 = vld [vmem:[%s168 + $0xab8] sm:$0xff]
        %v552 = vld [vmem:[%s168 + $0xac0] sm:$0xff]
        %v553 = vld [vmem:[%s168 + $0xac8] sm:$0xff]
        %v554 = vld [vmem:[%s168 + $0xad0] sm:$0xff]
        %v555 = vld [vmem:[%s168 + $0xad8] sm:$0xff]
        %v556 = vld [vmem:[%s168 + $0xae0] sm:$0xff]
        %v557 = vld [vmem:[%s168 + $0xae8] sm:$0xff]
        %v558 = vld [vmem:[%s168 + $0xaf0] sm:$0xff]
        %v559 = vld [vmem:[%s168 + $0xaf8] sm:$0xff]
        %v560 = vld [vmem:[%s168 + $0xb00] sm:$0xff]
        %v561 = vld [vmem:[%s168 + $0xb08] sm:$0xff]
        %v562 = vld [vmem:[%s168 + $0xb10] sm:$0xff]
        %v563 = vld [vmem:[%s168 + $0xb18] sm:$0xff]
        %v564 = vld [vmem:[%s168 + $0xb20] sm:$0xff]
        %v565 = vld [vmem:[%s168 + $0xb28] sm:$0xff]
        %v566 = vld [vmem:[%s168 + $0xb30] sm:$0xff]
        %v567 = vld [vmem:[%s168 + $0xb38] sm:$0xff]
        %v568 = vld [vmem:[%s168 + $0xb40] sm:$0xff]
        %v569 = vld [vmem:[%s168 + $0xb48] sm:$0xff]
        %v570 = vld [vmem:[%s168 + $0xb50] sm:$0xff]
        %v571 = vld [vmem:[%s168 + $0xb58] sm:$0xff]
        %v572 = vld [vmem:[%s168 + $0xb60] sm:$0xff]
        %v573 = vld [vmem:[%s168 + $0xb68] sm:$0xff]
        %v574 = vld [vmem:[%s168 + $0xb70] sm:$0xff]
        %v575 = vld [vmem:[%s168 + $0xb78] sm:$0xff]
        %v576 = vld [vmem:[%s168 + $0xb80] sm:$0xff]
        %v577 = vld [vmem:[%s168 + $0xb88] sm:$0xff]
        %v578 = vld [vmem:[%s168 + $0xb90] sm:$0xff]
        %v579 = vld [vmem:[%s168 + $0xb98] sm:$0xff]
        %v580 = vld [vmem:[%s168 + $0xba0] sm:$0xff]
        %v581 = vld [vmem:[%s168 + $0xba8] sm:$0xff]
        %v582 = vld [vmem:[%s168 + $0xbb0] sm:$0xff]
        %v583 = vld [vmem:[%s168 + $0xbb8] sm:$0xff]
        %v584 = vld [vmem:[%s168 + $0xbc0] sm:$0xff]
        %v585 = vld [vmem:[%s168 + $0xbc8] sm:$0xff]
        %v586 = vld [vmem:[%s168 + $0xbd0] sm:$0xff]
        %v587 = vld [vmem:[%s168 + $0xbd8] sm:$0xff]
        %v588 = vld [vmem:[%s168 + $0xbe0] sm:$0xff]
        %v589 = vld [vmem:[%s168 + $0xbe8] sm:$0xff]
        %v590 = vld [vmem:[%s168 + $0xbf0] sm:$0xff]
        %v591 = vld [vmem:[%s168 + $0xbf8] sm:$0xff]
        %v592 = vld [vmem:[%s168 + $0xc00] sm:$0xff]
        %v593 = vld [vmem:[%s168 + $0xc08] sm:$0xff]
        %v594 = vld [vmem:[%s168 + $0xc10] sm:$0xff]
        %v595 = vld [vmem:[%s168 + $0xc18] sm:$0xff]
        %v596 = vld [vmem:[%s168 + $0xc20] sm:$0xff]
        %v597 = vld [vmem:[%s168 + $0xc28] sm:$0xff]
        %v598 = vld [vmem:[%s168 + $0xc30] sm:$0xff]
        %v599 = vld [vmem:[%s168 + $0xc38] sm:$0xff]
        %v600 = vld [vmem:[%s168 + $0xc40] sm:$0xff]
        %v601 = vld [vmem:[%s168 + $0xc48] sm:$0xff]
        %v602 = vld [vmem:[%s168 + $0xc50] sm:$0xff]
        %v603 = vld [vmem:[%s168 + $0xc58] sm:$0xff]
        %v604 = vld [vmem:[%s168 + $0xc60] sm:$0xff]
        %v605 = vld [vmem:[%s168 + $0xc68] sm:$0xff]
        %v606 = vld [vmem:[%s168 + $0xc70] sm:$0xff]
        %v607 = vld [vmem:[%s168 + $0xc78] sm:$0xff]
        %v608 = vld [vmem:[%s168 + $0xc80] sm:$0xff]
        %v609 = vld [vmem:[%s168 + $0xc88] sm:$0xff]
        %v610 = vld [vmem:[%s168 + $0xc90] sm:$0xff]
        %v611 = vld [vmem:[%s168 + $0xc98] sm:$0xff]
        %v612 = vld [vmem:[%s168 + $0xca0] sm:$0xff]
        %v613 = vld [vmem:[%s168 + $0xca8] sm:$0xff]
        %v614 = vld [vmem:[%s168 + $0xcb0] sm:$0xff]
        %v615 = vld [vmem:[%s168 + $0xcb8] sm:$0xff]
        %v616 = vld [vmem:[%s168 + $0xcc0] sm:$0xff]
        %v617 = vld [vmem:[%s168 + $0xcc8] sm:$0xff]
        %v618 = vld [vmem:[%s168 + $0xcd0] sm:$0xff]
        %v619 = vld [vmem:[%s168 + $0xcd8] sm:$0xff]
        %v620 = vld [vmem:[%s168 + $0xce0] sm:$0xff]
        %v621 = vld [vmem:[%s168 + $0xce8] sm:$0xff]
        %v622 = vld [vmem:[%s168 + $0xcf0] sm:$0xff]
        %v623 = vld [vmem:[%s168 + $0xcf8] sm:$0xff]
        %v624 = vld [vmem:[%s168 + $0xd00] sm:$0xff]
        %v625 = vld [vmem:[%s168 + $0xd08] sm:$0xff]
        %v626 = vld [vmem:[%s168 + $0xd10] sm:$0xff]
        %v627 = vld [vmem:[%s168 + $0xd18] sm:$0xff]
        %v628 = vld [vmem:[%s168 + $0xd20] sm:$0xff]
        %v629 = vld [vmem:[%s168 + $0xd28] sm:$0xff]
        %v630 = vld [vmem:[%s168 + $0xd30] sm:$0xff]
        %v631 = vld [vmem:[%s168 + $0xd38] sm:$0xff]
        %v632 = vld [vmem:[%s168 + $0xd40] sm:$0xff]
        %v633 = vld [vmem:[%s168 + $0xd48] sm:$0xff]
        %v634 = vld [vmem:[%s168 + $0xd50] sm:$0xff]
        %v635 = vld [vmem:[%s168 + $0xd58] sm:$0xff]
        %v636 = vld [vmem:[%s168 + $0xd60] sm:$0xff]
        %v637 = vld [vmem:[%s168 + $0xd68] sm:$0xff]
        %v638 = vld [vmem:[%s168 + $0xd70] sm:$0xff]
        %v639 = vld [vmem:[%s168 + $0xd78] sm:$0xff]
        %v640 = vld [vmem:[%s168 + $0xd80] sm:$0xff]
        %v641 = vld [vmem:[%s168 + $0xd88] sm:$0xff]
        %v642 = vld [vmem:[%s168 + $0xd90] sm:$0xff]
        %v643 = vld [vmem:[%s168 + $0xd98] sm:$0xff]
        %v644 = vld [vmem:[%s168 + $0xda0] sm:$0xff]
        %v645 = vld [vmem:[%s168 + $0xda8] sm:$0xff]
        %v646 = vld [vmem:[%s168 + $0xdb0] sm:$0xff]
        %v647 = vld [vmem:[%s168 + $0xdb8] sm:$0xff]
        %v648 = vld [vmem:[%s168 + $0xdc0] sm:$0xff]
        %v649 = vld [vmem:[%s168 + $0xdc8] sm:$0xff]
        %v650 = vld [vmem:[%s168 + $0xdd0] sm:$0xff]
        %v651 = vld [vmem:[%s168 + $0xdd8] sm:$0xff]
        %v652 = vld [vmem:[%s168 + $0xde0] sm:$0xff]
        %v653 = vld [vmem:[%s168 + $0xde8] sm:$0xff]
        %v654 = vld [vmem:[%s168 + $0xdf0] sm:$0xff]
        %v655 = vld [vmem:[%s168 + $0xdf8] sm:$0xff]
        %v656 = vld [vmem:[%s168 + $0xe00] sm:$0xff]
        %v657 = vld [vmem:[%s168 + $0xe08] sm:$0xff]
        %v658 = vld [vmem:[%s168 + $0xe10] sm:$0xff]
        %v659 = vld [vmem:[%s168 + $0xe18] sm:$0xff]
        %v660 = vld [vmem:[%s168 + $0xe20] sm:$0xff]
        %v661 = vld [vmem:[%s168 + $0xe28] sm:$0xff]
        %v662 = vld [vmem:[%s168 + $0xe30] sm:$0xff]
        %v663 = vld [vmem:[%s168 + $0xe38] sm:$0xff]
        %v664 = vld [vmem:[%s168 + $0xe40] sm:$0xff]
        %v665 = vld [vmem:[%s168 + $0xe48] sm:$0xff]
        %v666 = vld [vmem:[%s168 + $0xe50] sm:$0xff]
        %v667 = vld [vmem:[%s168 + $0xe58] sm:$0xff]
        %v668 = vld [vmem:[%s168 + $0xe60] sm:$0xff]
        %v669 = vld [vmem:[%s168 + $0xe68] sm:$0xff]
        %v670 = vld [vmem:[%s168 + $0xe70] sm:$0xff]
        %v671 = vld [vmem:[%s168 + $0xe78] sm:$0xff]
        %v672 = vld [vmem:[%s168 + $0xe80] sm:$0xff]
        %v673 = vld [vmem:[%s168 + $0xe88] sm:$0xff]
        %v674 = vld [vmem:[%s168 + $0xe90] sm:$0xff]
        %v675 = vld [vmem:[%s168 + $0xe98] sm:$0xff]
        %v676 = vld [vmem:[%s168 + $0xea0] sm:$0xff]
        %v677 = vld [vmem:[%s168 + $0xea8] sm:$0xff]
        %v678 = vld [vmem:[%s168 + $0xeb0] sm:$0xff]
        %v679 = vld [vmem:[%s168 + $0xeb8] sm:$0xff]
        %v680 = vld [vmem:[%s168 + $0xec0] sm:$0xff]
        %v681 = vld [vmem:[%s168 + $0xec8] sm:$0xff]
        %v682 = vld [vmem:[%s168 + $0xed0] sm:$0xff]
        %v683 = vld [vmem:[%s168 + $0xed8] sm:$0xff]
        %v684 = vld [vmem:[%s168 + $0xee0] sm:$0xff]
        %v685 = vld [vmem:[%s168 + $0xee8] sm:$0xff]
        %v686 = vld [vmem:[%s168 + $0xef0] sm:$0xff]
        %v687 = vld [vmem:[%s168 + $0xef8] sm:$0xff]
        %v688 = vld [vmem:[%s168 + $0xf00] sm:$0xff]
        %v689 = vld [vmem:[%s168 + $0xf08] sm:$0xff]
        %v690 = vld [vmem:[%s168 + $0xf10] sm:$0xff]
        %v691 = vld [vmem:[%s168 + $0xf18] sm:$0xff]
        %v692 = vld [vmem:[%s168 + $0xf20] sm:$0xff]
        %v693 = vld [vmem:[%s168 + $0xf28] sm:$0xff]
        %v694 = vld [vmem:[%s168 + $0xf30] sm:$0xff]
        %v695 = vld [vmem:[%s168 + $0xf38] sm:$0xff]
        %v696 = vld [vmem:[%s168 + $0xf40] sm:$0xff]
        %v697 = vld [vmem:[%s168 + $0xf48] sm:$0xff]
        %v698 = vld [vmem:[%s168 + $0xf50] sm:$0xff]
        %v699 = vld [vmem:[%s168 + $0xf58] sm:$0xff]
        %v700 = vld [vmem:[%s168 + $0xf60] sm:$0xff]
        %v701 = vld [vmem:[%s168 + $0xf68] sm:$0xff]
        %v702 = vld [vmem:[%s168 + $0xf70] sm:$0xff]
        %v703 = vld [vmem:[%s168 + $0xf78] sm:$0xff]
        %v704 = vld [vmem:[%s168 + $0xf80] sm:$0xff]
        %v705 = vld [vmem:[%s168 + $0xf88] sm:$0xff]
        %v706 = vld [vmem:[%s168 + $0xf90] sm:$0xff]
        %v707 = vld [vmem:[%s168 + $0xf98] sm:$0xff]
        %v708 = vld [vmem:[%s168 + $0xfa0] sm:$0xff]
        %v709 = vld [vmem:[%s168 + $0xfa8] sm:$0xff]
        %v710 = vld [vmem:[%s168 + $0xfb0] sm:$0xff]
        %v711 = vld [vmem:[%s168 + $0xfb8] sm:$0xff]
        %v712 = vld [vmem:[%s168 + $0xfc0] sm:$0xff]
        %v713 = vld [vmem:[%s168 + $0xfc8] sm:$0xff]
        %v714 = vld [vmem:[%s168 + $0xfd0] sm:$0xff]
        %v715 = vld [vmem:[%s168 + $0xfd8] sm:$0xff]
        %v716 = vld [vmem:[%s168 + $0xfe0] sm:$0xff]
        %v717 = vld [vmem:[%s168 + $0xfe8] sm:$0xff]
        %v718 = vld [vmem:[%s168 + $0xff0] sm:$0xff]
        %v719 = vld [vmem:[%s168 + $0xff8] sm:$0xff]
        %v720 = vld [vmem:[%s178] sm:$0x1]
        %v721 = vld [vmem:[%s178 + $0x1] sm:$0x1]
        %v722 = vld [vmem:[%s178 + $0x2] sm:$0x1]
        %v723 = vld [vmem:[%s178 + $0x3] sm:$0x1]
        %v724 = vld [vmem:[%s178 + $0x4] sm:$0x1]
        %v725 = vld [vmem:[%s178 + $0x5] sm:$0x1]
        %v726 = vld [vmem:[%s178 + $0x6] sm:$0x1]
        %v727 = vld [vmem:[%s178 + $0x7] sm:$0x1]
        %v728 = vld [vmem:[%s178 + $0x8] sm:$0x1]
        %v729 = vld [vmem:[%s178 + $0x9] sm:$0x1]
        %v730 = vld [vmem:[%s178 + $0xa] sm:$0x1]
        %v731 = vld [vmem:[%s178 + $0xb] sm:$0x1]
        %v732 = vld [vmem:[%s178 + $0xc] sm:$0x1]
        %v733 = vld [vmem:[%s178 + $0xd] sm:$0x1]
        %v734 = vld [vmem:[%s178 + $0xe] sm:$0x1]
        %v735 = vld [vmem:[%s178 + $0xf] sm:$0x1]
        %v736 = vld [vmem:[%s178 + $0x10] sm:$0x1]
        %v737 = vld [vmem:[%s178 + $0x11] sm:$0x1]
        %v738 = vld [vmem:[%s178 + $0x12] sm:$0x1]
        %v739 = vld [vmem:[%s178 + $0x13] sm:$0x1]
        %v740 = vld [vmem:[%s178 + $0x14] sm:$0x1]
        %v741 = vld [vmem:[%s178 + $0x15] sm:$0x1]
        %v742 = vld [vmem:[%s178 + $0x16] sm:$0x1]
        %v743 = vld [vmem:[%s178 + $0x17] sm:$0x1]
        %v744 = vld [vmem:[%s178 + $0x18] sm:$0x1]
        %v745 = vld [vmem:[%s178 + $0x19] sm:$0x1]
        %v746 = vld [vmem:[%s178 + $0x1a] sm:$0x1]
        %v747 = vld [vmem:[%s178 + $0x1b] sm:$0x1]
        %v748 = vld [vmem:[%s178 + $0x1c] sm:$0x1]
        %v749 = vld [vmem:[%s178 + $0x1d] sm:$0x1]
        %v750 = vld [vmem:[%s178 + $0x1e] sm:$0x1]
        %v751 = vld [vmem:[%s178 + $0x1f] sm:$0x1]
        %v752 = vld [vmem:[%s178 + $0x20] sm:$0x1]
        %v753 = vld [vmem:[%s178 + $0x21] sm:$0x1]
        %v754 = vld [vmem:[%s178 + $0x22] sm:$0x1]
        %v755 = vld [vmem:[%s178 + $0x23] sm:$0x1]
        %v756 = vld [vmem:[%s178 + $0x24] sm:$0x1]
        %v757 = vld [vmem:[%s178 + $0x25] sm:$0x1]
        %v758 = vld [vmem:[%s178 + $0x26] sm:$0x1]
        %v759 = vld [vmem:[%s178 + $0x27] sm:$0x1]
        %v760 = vld [vmem:[%s178 + $0x28] sm:$0x1]
        %v761 = vld [vmem:[%s178 + $0x29] sm:$0x1]
        %v762 = vld [vmem:[%s178 + $0x2a] sm:$0x1]
        %v763 = vld [vmem:[%s178 + $0x2b] sm:$0x1]
        %v764 = vld [vmem:[%s178 + $0x2c] sm:$0x1]
        %v765 = vld [vmem:[%s178 + $0x2d] sm:$0x1]
        %v766 = vld [vmem:[%s178 + $0x2e] sm:$0x1]
        %v767 = vld [vmem:[%s178 + $0x2f] sm:$0x1]
        %v768 = vld [vmem:[%s178 + $0x30] sm:$0x1]
        %v769 = vld [vmem:[%s178 + $0x31] sm:$0x1]
        %v770 = vld [vmem:[%s178 + $0x32] sm:$0x1]
        %v771 = vld [vmem:[%s178 + $0x33] sm:$0x1]
        %v772 = vld [vmem:[%s178 + $0x34] sm:$0x1]
        %v773 = vld [vmem:[%s178 + $0x35] sm:$0x1]
        %v774 = vld [vmem:[%s178 + $0x36] sm:$0x1]
        %v775 = vld [vmem:[%s178 + $0x37] sm:$0x1]
        %v776 = vld [vmem:[%s178 + $0x38] sm:$0x1]
        %v777 = vld [vmem:[%s178 + $0x39] sm:$0x1]
        %v778 = vld [vmem:[%s178 + $0x3a] sm:$0x1]
        %v779 = vld [vmem:[%s178 + $0x3b] sm:$0x1]
        %v780 = vld [vmem:[%s178 + $0x3c] sm:$0x1]
        %v781 = vld [vmem:[%s178 + $0x3d] sm:$0x1]
        %v782 = vld [vmem:[%s178 + $0x3e] sm:$0x1]
        %v783 = vld [vmem:[%s178 + $0x3f] sm:$0x1]
        %v784 = vld [vmem:[%s178 + $0x40] sm:$0x1]
        %v785 = vld [vmem:[%s178 + $0x41] sm:$0x1]
        %v786 = vld [vmem:[%s178 + $0x42] sm:$0x1]
        %v787 = vld [vmem:[%s178 + $0x43] sm:$0x1]
        %v788 = vld [vmem:[%s178 + $0x44] sm:$0x1]
        %v789 = vld [vmem:[%s178 + $0x45] sm:$0x1]
        %v790 = vld [vmem:[%s178 + $0x46] sm:$0x1]
        %v791 = vld [vmem:[%s178 + $0x47] sm:$0x1]
        %v792 = vld [vmem:[%s178 + $0x48] sm:$0x1]
        %v793 = vld [vmem:[%s178 + $0x49] sm:$0x1]
        %v794 = vld [vmem:[%s178 + $0x4a] sm:$0x1]
        %v795 = vld [vmem:[%s178 + $0x4b] sm:$0x1]
        %v796 = vld [vmem:[%s178 + $0x4c] sm:$0x1]
        %v797 = vld [vmem:[%s178 + $0x4d] sm:$0x1]
        %v798 = vld [vmem:[%s178 + $0x4e] sm:$0x1]
        %v799 = vld [vmem:[%s178 + $0x4f] sm:$0x1]
        %v800 = vld [vmem:[%s178 + $0x50] sm:$0x1]
        %v801 = vld [vmem:[%s178 + $0x51] sm:$0x1]
        %v802 = vld [vmem:[%s178 + $0x52] sm:$0x1]
        %v803 = vld [vmem:[%s178 + $0x53] sm:$0x1]
        %v804 = vld [vmem:[%s178 + $0x54] sm:$0x1]
        %v805 = vld [vmem:[%s178 + $0x55] sm:$0x1]
        %v806 = vld [vmem:[%s178 + $0x56] sm:$0x1]
        %v807 = vld [vmem:[%s178 + $0x57] sm:$0x1]
        %v808 = vld [vmem:[%s178 + $0x58] sm:$0x1]
        %v809 = vld [vmem:[%s178 + $0x59] sm:$0x1]
        %v810 = vld [vmem:[%s178 + $0x5a] sm:$0x1]
        %v811 = vld [vmem:[%s178 + $0x5b] sm:$0x1]
        %v812 = vld [vmem:[%s178 + $0x5c] sm:$0x1]
        %v813 = vld [vmem:[%s178 + $0x5d] sm:$0x1]
        %v814 = vld [vmem:[%s178 + $0x5e] sm:$0x1]
        %v815 = vld [vmem:[%s178 + $0x5f] sm:$0x1]
        %v816 = vld [vmem:[%s178 + $0x60] sm:$0x1]
        %v817 = vld [vmem:[%s178 + $0x61] sm:$0x1]
        %v818 = vld [vmem:[%s178 + $0x62] sm:$0x1]
        %v819 = vld [vmem:[%s178 + $0x63] sm:$0x1]
        %v820 = vld [vmem:[%s178 + $0x64] sm:$0x1]
        %v821 = vld [vmem:[%s178 + $0x65] sm:$0x1]
        %v822 = vld [vmem:[%s178 + $0x66] sm:$0x1]
        %v823 = vld [vmem:[%s178 + $0x67] sm:$0x1]
        %v824 = vld [vmem:[%s178 + $0x68] sm:$0x1]
        %v825 = vld [vmem:[%s178 + $0x69] sm:$0x1]
        %v826 = vld [vmem:[%s178 + $0x6a] sm:$0x1]
        %v827 = vld [vmem:[%s178 + $0x6b] sm:$0x1]
        %v828 = vld [vmem:[%s178 + $0x6c] sm:$0x1]
        %v829 = vld [vmem:[%s178 + $0x6d] sm:$0x1]
        %v830 = vld [vmem:[%s178 + $0x6e] sm:$0x1]
        %v831 = vld [vmem:[%s178 + $0x6f] sm:$0x1]
        %v832 = vld [vmem:[%s178 + $0x70] sm:$0x1]
        %v833 = vld [vmem:[%s178 + $0x71] sm:$0x1]
        %v834 = vld [vmem:[%s178 + $0x72] sm:$0x1]
        %v835 = vld [vmem:[%s178 + $0x73] sm:$0x1]
        %v836 = vld [vmem:[%s178 + $0x74] sm:$0x1]
        %v837 = vld [vmem:[%s178 + $0x75] sm:$0x1]
        %v838 = vld [vmem:[%s178 + $0x76] sm:$0x1]
        %v839 = vld [vmem:[%s178 + $0x77] sm:$0x1]
        %v840 = vld [vmem:[%s178 + $0x78] sm:$0x1]
        %v841 = vld [vmem:[%s178 + $0x79] sm:$0x1]
        %v842 = vld [vmem:[%s178 + $0x7a] sm:$0x1]
        %v843 = vld [vmem:[%s178 + $0x7b] sm:$0x1]
        %v844 = vld [vmem:[%s178 + $0x7c] sm:$0x1]
        %v845 = vld [vmem:[%s178 + $0x7d] sm:$0x1]
        %v846 = vld [vmem:[%s178 + $0x7e] sm:$0x1]
        %v847 = vld [vmem:[%s178 + $0x7f] sm:$0x1]
        %v848 = vld [vmem:[%s178 + $0x80] sm:$0x1]
        %v849 = vld [vmem:[%s178 + $0x81] sm:$0x1]
        %v850 = vld [vmem:[%s178 + $0x82] sm:$0x1]
        %v851 = vld [vmem:[%s178 + $0x83] sm:$0x1]
        %v852 = vld [vmem:[%s178 + $0x84] sm:$0x1]
        %v853 = vld [vmem:[%s178 + $0x85] sm:$0x1]
        %v854 = vld [vmem:[%s178 + $0x86] sm:$0x1]
        %v855 = vld [vmem:[%s178 + $0x87] sm:$0x1]
        %v856 = vld [vmem:[%s178 + $0x88] sm:$0x1]
        %v857 = vld [vmem:[%s178 + $0x89] sm:$0x1]
        %v858 = vld [vmem:[%s178 + $0x8a] sm:$0x1]
        %v859 = vld [vmem:[%s178 + $0x8b] sm:$0x1]
        %v860 = vld [vmem:[%s178 + $0x8c] sm:$0x1]
        %v861 = vld [vmem:[%s178 + $0x8d] sm:$0x1]
        %v862 = vld [vmem:[%s178 + $0x8e] sm:$0x1]
        %v863 = vld [vmem:[%s178 + $0x8f] sm:$0x1]
        %v864 = vld [vmem:[%s178 + $0x90] sm:$0x1]
        %v865 = vld [vmem:[%s178 + $0x91] sm:$0x1]
        %v866 = vld [vmem:[%s178 + $0x92] sm:$0x1]
        %v867 = vld [vmem:[%s178 + $0x93] sm:$0x1]
        %v868 = vld [vmem:[%s178 + $0x94] sm:$0x1]
        %v869 = vld [vmem:[%s178 + $0x95] sm:$0x1]
        %v870 = vld [vmem:[%s178 + $0x96] sm:$0x1]
        %v871 = vld [vmem:[%s178 + $0x97] sm:$0x1]
        %v872 = vld [vmem:[%s178 + $0x98] sm:$0x1]
        %v873 = vld [vmem:[%s178 + $0x99] sm:$0x1]
        %v874 = vld [vmem:[%s178 + $0x9a] sm:$0x1]
        %v875 = vld [vmem:[%s178 + $0x9b] sm:$0x1]
        %v876 = vld [vmem:[%s178 + $0x9c] sm:$0x1]
        %v877 = vld [vmem:[%s178 + $0x9d] sm:$0x1]
        %v878 = vld [vmem:[%s178 + $0x9e] sm:$0x1]
        %v879 = vld [vmem:[%s178 + $0x9f] sm:$0x1]
        %v880 = vld [vmem:[%s178 + $0xa0] sm:$0x1]
        %v881 = vld [vmem:[%s178 + $0xa1] sm:$0x1]
        %v882 = vld [vmem:[%s178 + $0xa2] sm:$0x1]
        %v883 = vld [vmem:[%s178 + $0xa3] sm:$0x1]
        %v884 = vld [vmem:[%s178 + $0xa4] sm:$0x1]
        %v885 = vld [vmem:[%s178 + $0xa5] sm:$0x1]
        %v886 = vld [vmem:[%s178 + $0xa6] sm:$0x1]
        %v887 = vld [vmem:[%s178 + $0xa7] sm:$0x1]
        %v888 = vld [vmem:[%s178 + $0xa8] sm:$0x1]
        %v889 = vld [vmem:[%s178 + $0xa9] sm:$0x1]
        %v890 = vld [vmem:[%s178 + $0xaa] sm:$0x1]
        %v891 = vld [vmem:[%s178 + $0xab] sm:$0x1]
        %v892 = vld [vmem:[%s178 + $0xac] sm:$0x1]
        %v893 = vld [vmem:[%s178 + $0xad] sm:$0x1]
        %v894 = vld [vmem:[%s178 + $0xae] sm:$0x1]
        %v895 = vld [vmem:[%s178 + $0xaf] sm:$0x1]
        %v896 = vld [vmem:[%s178 + $0xb0] sm:$0x1]
        %v897 = vld [vmem:[%s178 + $0xb1] sm:$0x1]
        %v898 = vld [vmem:[%s178 + $0xb2] sm:$0x1]
        %v899 = vld [vmem:[%s178 + $0xb3] sm:$0x1]
        %v900 = vld [vmem:[%s178 + $0xb4] sm:$0x1]
        %v901 = vld [vmem:[%s178 + $0xb5] sm:$0x1]
        %v902 = vld [vmem:[%s178 + $0xb6] sm:$0x1]
        %v903 = vld [vmem:[%s178 + $0xb7] sm:$0x1]
        %v904 = vld [vmem:[%s178 + $0xb8] sm:$0x1]
        %v905 = vld [vmem:[%s178 + $0xb9] sm:$0x1]
        %v906 = vld [vmem:[%s178 + $0xba] sm:$0x1]
        %v907 = vld [vmem:[%s178 + $0xbb] sm:$0x1]
        %v908 = vld [vmem:[%s178 + $0xbc] sm:$0x1]
        %v909 = vld [vmem:[%s178 + $0xbd] sm:$0x1]
        %v910 = vld [vmem:[%s178 + $0xbe] sm:$0x1]
        %v911 = vld [vmem:[%s178 + $0xbf] sm:$0x1]
        %v912 = vld [vmem:[%s178 + $0xc0] sm:$0x1]
        %v913 = vld [vmem:[%s178 + $0xc1] sm:$0x1]
        %v914 = vld [vmem:[%s178 + $0xc2] sm:$0x1]
        %v915 = vld [vmem:[%s178 + $0xc3] sm:$0x1]
        %v916 = vld [vmem:[%s178 + $0xc4] sm:$0x1]
        %v917 = vld [vmem:[%s178 + $0xc5] sm:$0x1]
        %v918 = vld [vmem:[%s178 + $0xc6] sm:$0x1]
        %v919 = vld [vmem:[%s178 + $0xc7] sm:$0x1]
        %v920 = vld [vmem:[%s178 + $0xc8] sm:$0x1]
        %v921 = vld [vmem:[%s178 + $0xc9] sm:$0x1]
        %v922 = vld [vmem:[%s178 + $0xca] sm:$0x1]
        %v923 = vld [vmem:[%s178 + $0xcb] sm:$0x1]
        %v924 = vld [vmem:[%s178 + $0xcc] sm:$0x1]
        %v925 = vld [vmem:[%s178 + $0xcd] sm:$0x1]
        %v926 = vld [vmem:[%s178 + $0xce] sm:$0x1]
        %v927 = vld [vmem:[%s178 + $0xcf] sm:$0x1]
        %v928 = vld [vmem:[%s178 + $0xd0] sm:$0x1]
        %v929 = vld [vmem:[%s178 + $0xd1] sm:$0x1]
        %v930 = vld [vmem:[%s178 + $0xd2] sm:$0x1]
        %v931 = vld [vmem:[%s178 + $0xd3] sm:$0x1]
        %v932 = vld [vmem:[%s178 + $0xd4] sm:$0x1]
        %v933 = vld [vmem:[%s178 + $0xd5] sm:$0x1]
        %v934 = vld [vmem:[%s178 + $0xd6] sm:$0x1]
        %v935 = vld [vmem:[%s178 + $0xd7] sm:$0x1]
        %v936 = vld [vmem:[%s178 + $0xd8] sm:$0x1]
        %v937 = vld [vmem:[%s178 + $0xd9] sm:$0x1]
        %v938 = vld [vmem:[%s178 + $0xda] sm:$0x1]
        %v939 = vld [vmem:[%s178 + $0xdb] sm:$0x1]
        %v940 = vld [vmem:[%s178 + $0xdc] sm:$0x1]
        %v941 = vld [vmem:[%s178 + $0xdd] sm:$0x1]
        %v942 = vld [vmem:[%s178 + $0xde] sm:$0x1]
        %v943 = vld [vmem:[%s178 + $0xdf] sm:$0x1]
        %v944 = vld [vmem:[%s178 + $0xe0] sm:$0x1]
        %v945 = vld [vmem:[%s178 + $0xe1] sm:$0x1]
        %v946 = vld [vmem:[%s178 + $0xe2] sm:$0x1]
        %v947 = vld [vmem:[%s178 + $0xe3] sm:$0x1]
        %v948 = vld [vmem:[%s178 + $0xe4] sm:$0x1]
        %v949 = vld [vmem:[%s178 + $0xe5] sm:$0x1]
        %v950 = vld [vmem:[%s178 + $0xe6] sm:$0x1]
        %v951 = vld [vmem:[%s178 + $0xe7] sm:$0x1]
        %v952 = vld [vmem:[%s178 + $0xe8] sm:$0x1]
        %v953 = vld [vmem:[%s178 + $0xe9] sm:$0x1]
        %v954 = vld [vmem:[%s178 + $0xea] sm:$0x1]
        %v955 = vld [vmem:[%s178 + $0xeb] sm:$0x1]
        %v956 = vld [vmem:[%s178 + $0xec] sm:$0x1]
        %v957 = vld [vmem:[%s178 + $0xed] sm:$0x1]
        %v958 = vld [vmem:[%s178 + $0xee] sm:$0x1]
        %v959 = vld [vmem:[%s178 + $0xef] sm:$0x1]
        %v960 = vld [vmem:[%s178 + $0xf0] sm:$0x1]
        %v961 = vld [vmem:[%s178 + $0xf1] sm:$0x1]
        %v962 = vld [vmem:[%s178 + $0xf2] sm:$0x1]
        %v963 = vld [vmem:[%s178 + $0xf3] sm:$0x1]
        %v964 = vld [vmem:[%s178 + $0xf4] sm:$0x1]
        %v965 = vld [vmem:[%s178 + $0xf5] sm:$0x1]
        %v966 = vld [vmem:[%s178 + $0xf6] sm:$0x1]
        %v967 = vld [vmem:[%s178 + $0xf7] sm:$0x1]
        %v968 = vld [vmem:[%s178 + $0xf8] sm:$0x1]
        %v969 = vld [vmem:[%s178 + $0xf9] sm:$0x1]
        %v970 = vld [vmem:[%s178 + $0xfa] sm:$0x1]
        %v971 = vld [vmem:[%s178 + $0xfb] sm:$0x1]
        %v972 = vld [vmem:[%s178 + $0xfc] sm:$0x1]
        %v973 = vld [vmem:[%s178 + $0xfd] sm:$0x1]
        %v974 = vld [vmem:[%s178 + $0xfe] sm:$0x1]
        %v975 = vld [vmem:[%s178 + $0xff] sm:$0x1]
        %v976 = vld [vmem:[%s178 + $0x100] sm:$0x1]
        %v977 = vld [vmem:[%s178 + $0x101] sm:$0x1]
        %v978 = vld [vmem:[%s178 + $0x102] sm:$0x1]
        %v979 = vld [vmem:[%s178 + $0x103] sm:$0x1]
        %v980 = vld [vmem:[%s178 + $0x104] sm:$0x1]
        %v981 = vld [vmem:[%s178 + $0x105] sm:$0x1]
        %v982 = vld [vmem:[%s178 + $0x106] sm:$0x1]
        %v983 = vld [vmem:[%s178 + $0x107] sm:$0x1]
        %v984 = vld [vmem:[%s178 + $0x108] sm:$0x1]
        %v985 = vld [vmem:[%s178 + $0x109] sm:$0x1]
        %v986 = vld [vmem:[%s178 + $0x10a] sm:$0x1]
        %v987 = vld [vmem:[%s178 + $0x10b] sm:$0x1]
        %v988 = vld [vmem:[%s178 + $0x10c] sm:$0x1]
        %v989 = vld [vmem:[%s178 + $0x10d] sm:$0x1]
        %v990 = vld [vmem:[%s178 + $0x10e] sm:$0x1]
        %v991 = vld [vmem:[%s178 + $0x10f] sm:$0x1]
        %v992 = vld [vmem:[%s178 + $0x110] sm:$0x1]
        %v993 = vld [vmem:[%s178 + $0x111] sm:$0x1]
        %v994 = vld [vmem:[%s178 + $0x112] sm:$0x1]
        %v995 = vld [vmem:[%s178 + $0x113] sm:$0x1]
        %v996 = vld [vmem:[%s178 + $0x114] sm:$0x1]
        %v997 = vld [vmem:[%s178 + $0x115] sm:$0x1]
        %v998 = vld [vmem:[%s178 + $0x116] sm:$0x1]
        %v999 = vld [vmem:[%s178 + $0x117] sm:$0x1]
        %v1000 = vld [vmem:[%s178 + $0x118] sm:$0x1]
        %v1001 = vld [vmem:[%s178 + $0x119] sm:$0x1]
        %v1002 = vld [vmem:[%s178 + $0x11a] sm:$0x1]
        %v1003 = vld [vmem:[%s178 + $0x11b] sm:$0x1]
        %v1004 = vld [vmem:[%s178 + $0x11c] sm:$0x1]
        %v1005 = vld [vmem:[%s178 + $0x11d] sm:$0x1]
        %v1006 = vld [vmem:[%s178 + $0x11e] sm:$0x1]
        %v1007 = vld [vmem:[%s178 + $0x11f] sm:$0x1]
        %v1008 = vld [vmem:[%s178 + $0x120] sm:$0x1]
        %v1009 = vld [vmem:[%s178 + $0x121] sm:$0x1]
        %v1010 = vld [vmem:[%s178 + $0x122] sm:$0x1]
        %v1011 = vld [vmem:[%s178 + $0x123] sm:$0x1]
        %v1012 = vld [vmem:[%s178 + $0x124] sm:$0x1]
        %v1013 = vld [vmem:[%s178 + $0x125] sm:$0x1]
        %v1014 = vld [vmem:[%s178 + $0x126] sm:$0x1]
        %v1015 = vld [vmem:[%s178 + $0x127] sm:$0x1]
        %v1016 = vld [vmem:[%s178 + $0x128] sm:$0x1]
        %v1017 = vld [vmem:[%s178 + $0x129] sm:$0x1]
        %v1018 = vld [vmem:[%s178 + $0x12a] sm:$0x1]
        %v1019 = vld [vmem:[%s178 + $0x12b] sm:$0x1]
        %v1020 = vld [vmem:[%s178 + $0x12c] sm:$0x1]
        %v1021 = vld [vmem:[%s178 + $0x12d] sm:$0x1]
        %v1022 = vld [vmem:[%s178 + $0x12e] sm:$0x1]
        %v1023 = vld [vmem:[%s178 + $0x12f] sm:$0x1]
        %v1024 = vld [vmem:[%s178 + $0x130] sm:$0x1]
        %v1025 = vld [vmem:[%s178 + $0x131] sm:$0x1]
        %v1026 = vld [vmem:[%s178 + $0x132] sm:$0x1]
        %v1027 = vld [vmem:[%s178 + $0x133] sm:$0x1]
        %v1028 = vld [vmem:[%s178 + $0x134] sm:$0x1]
        %v1029 = vld [vmem:[%s178 + $0x135] sm:$0x1]
        %v1030 = vld [vmem:[%s178 + $0x136] sm:$0x1]
        %v1031 = vld [vmem:[%s178 + $0x137] sm:$0x1]
        %v1032 = vld [vmem:[%s178 + $0x138] sm:$0x1]
        %v1033 = vld [vmem:[%s178 + $0x139] sm:$0x1]
        %v1034 = vld [vmem:[%s178 + $0x13a] sm:$0x1]
        %v1035 = vld [vmem:[%s178 + $0x13b] sm:$0x1]
        %v1036 = vld [vmem:[%s178 + $0x13c] sm:$0x1]
        %v1037 = vld [vmem:[%s178 + $0x13d] sm:$0x1]
        %v1038 = vld [vmem:[%s178 + $0x13e] sm:$0x1]
        %v1039 = vld [vmem:[%s178 + $0x13f] sm:$0x1]
        %v1040 = vld [vmem:[%s178 + $0x140] sm:$0x1]
        %v1041 = vld [vmem:[%s178 + $0x141] sm:$0x1]
        %v1042 = vld [vmem:[%s178 + $0x142] sm:$0x1]
        %v1043 = vld [vmem:[%s178 + $0x143] sm:$0x1]
        %v1044 = vld [vmem:[%s178 + $0x144] sm:$0x1]
        %v1045 = vld [vmem:[%s178 + $0x145] sm:$0x1]
        %v1046 = vld [vmem:[%s178 + $0x146] sm:$0x1]
        %v1047 = vld [vmem:[%s178 + $0x147] sm:$0x1]
        %v1048 = vld [vmem:[%s178 + $0x148] sm:$0x1]
        %v1049 = vld [vmem:[%s178 + $0x149] sm:$0x1]
        %v1050 = vld [vmem:[%s178 + $0x14a] sm:$0x1]
        %v1051 = vld [vmem:[%s178 + $0x14b] sm:$0x1]
        %v1052 = vld [vmem:[%s178 + $0x14c] sm:$0x1]
        %v1053 = vld [vmem:[%s178 + $0x14d] sm:$0x1]
        %v1054 = vld [vmem:[%s178 + $0x14e] sm:$0x1]
        %v1055 = vld [vmem:[%s178 + $0x14f] sm:$0x1]
        %v1056 = vld [vmem:[%s178 + $0x150] sm:$0x1]
        %v1057 = vld [vmem:[%s178 + $0x151] sm:$0x1]
        %v1058 = vld [vmem:[%s178 + $0x152] sm:$0x1]
        %v1059 = vld [vmem:[%s178 + $0x153] sm:$0x1]
        %v1060 = vld [vmem:[%s178 + $0x154] sm:$0x1]
        %v1061 = vld [vmem:[%s178 + $0x155] sm:$0x1]
        %v1062 = vld [vmem:[%s178 + $0x156] sm:$0x1]
        %v1063 = vld [vmem:[%s178 + $0x157] sm:$0x1]
        %v1064 = vld [vmem:[%s178 + $0x158] sm:$0x1]
        %v1065 = vld [vmem:[%s178 + $0x159] sm:$0x1]
        %v1066 = vld [vmem:[%s178 + $0x15a] sm:$0x1]
        %v1067 = vld [vmem:[%s178 + $0x15b] sm:$0x1]
        %v1068 = vld [vmem:[%s178 + $0x15c] sm:$0x1]
        %v1069 = vld [vmem:[%s178 + $0x15d] sm:$0x1]
        %v1070 = vld [vmem:[%s178 + $0x15e] sm:$0x1]
        %v1071 = vld [vmem:[%s178 + $0x15f] sm:$0x1]
        %v1072 = vld [vmem:[%s178 + $0x160] sm:$0x1]
        %v1073 = vld [vmem:[%s178 + $0x161] sm:$0x1]
        %v1074 = vld [vmem:[%s178 + $0x162] sm:$0x1]
        %v1075 = vld [vmem:[%s178 + $0x163] sm:$0x1]
        %v1076 = vld [vmem:[%s178 + $0x164] sm:$0x1]
        %v1077 = vld [vmem:[%s178 + $0x165] sm:$0x1]
        %v1078 = vld [vmem:[%s178 + $0x166] sm:$0x1]
        %v1079 = vld [vmem:[%s178 + $0x167] sm:$0x1]
        %v1080 = vld [vmem:[%s178 + $0x168] sm:$0x1]
        %v1081 = vld [vmem:[%s178 + $0x169] sm:$0x1]
        %v1082 = vld [vmem:[%s178 + $0x16a] sm:$0x1]
        %v1083 = vld [vmem:[%s178 + $0x16b] sm:$0x1]
        %v1084 = vld [vmem:[%s178 + $0x16c] sm:$0x1]
        %v1085 = vld [vmem:[%s178 + $0x16d] sm:$0x1]
        %v1086 = vld [vmem:[%s178 + $0x16e] sm:$0x1]
        %v1087 = vld [vmem:[%s178 + $0x16f] sm:$0x1]
        %v1088 = vld [vmem:[%s178 + $0x170] sm:$0x1]
        %v1089 = vld [vmem:[%s178 + $0x171] sm:$0x1]
        %v1090 = vld [vmem:[%s178 + $0x172] sm:$0x1]
        %v1091 = vld [vmem:[%s178 + $0x173] sm:$0x1]
        %v1092 = vld [vmem:[%s178 + $0x174] sm:$0x1]
        %v1093 = vld [vmem:[%s178 + $0x175] sm:$0x1]
        %v1094 = vld [vmem:[%s178 + $0x176] sm:$0x1]
        %v1095 = vld [vmem:[%s178 + $0x177] sm:$0x1]
        %v1096 = vld [vmem:[%s178 + $0x178] sm:$0x1]
        %v1097 = vld [vmem:[%s178 + $0x179] sm:$0x1]
        %v1098 = vld [vmem:[%s178 + $0x17a] sm:$0x1]
        %v1099 = vld [vmem:[%s178 + $0x17b] sm:$0x1]
        %v1100 = vld [vmem:[%s178 + $0x17c] sm:$0x1]
        %v1101 = vld [vmem:[%s178 + $0x17d] sm:$0x1]
        %v1102 = vld [vmem:[%s178 + $0x17e] sm:$0x1]
        %v1103 = vld [vmem:[%s178 + $0x17f] sm:$0x1]
        %v1104 = vld [vmem:[%s178 + $0x180] sm:$0x1]
        %v1105 = vld [vmem:[%s178 + $0x181] sm:$0x1]
        %v1106 = vld [vmem:[%s178 + $0x182] sm:$0x1]
        %v1107 = vld [vmem:[%s178 + $0x183] sm:$0x1]
        %v1108 = vld [vmem:[%s178 + $0x184] sm:$0x1]
        %v1109 = vld [vmem:[%s178 + $0x185] sm:$0x1]
        %v1110 = vld [vmem:[%s178 + $0x186] sm:$0x1]
        %v1111 = vld [vmem:[%s178 + $0x187] sm:$0x1]
        %v1112 = vld [vmem:[%s178 + $0x188] sm:$0x1]
        %v1113 = vld [vmem:[%s178 + $0x189] sm:$0x1]
        %v1114 = vld [vmem:[%s178 + $0x18a] sm:$0x1]
        %v1115 = vld [vmem:[%s178 + $0x18b] sm:$0x1]
        %v1116 = vld [vmem:[%s178 + $0x18c] sm:$0x1]
        %v1117 = vld [vmem:[%s178 + $0x18d] sm:$0x1]
        %v1118 = vld [vmem:[%s178 + $0x18e] sm:$0x1]
        %v1119 = vld [vmem:[%s178 + $0x18f] sm:$0x1]
        %v1120 = vld [vmem:[%s178 + $0x190] sm:$0x1]
        %v1121 = vld [vmem:[%s178 + $0x191] sm:$0x1]
        %v1122 = vld [vmem:[%s178 + $0x192] sm:$0x1]
        %v1123 = vld [vmem:[%s178 + $0x193] sm:$0x1]
        %v1124 = vld [vmem:[%s178 + $0x194] sm:$0x1]
        %v1125 = vld [vmem:[%s178 + $0x195] sm:$0x1]
        %v1126 = vld [vmem:[%s178 + $0x196] sm:$0x1]
        %v1127 = vld [vmem:[%s178 + $0x197] sm:$0x1]
        %v1128 = vld [vmem:[%s178 + $0x198] sm:$0x1]
        %v1129 = vld [vmem:[%s178 + $0x199] sm:$0x1]
        %v1130 = vld [vmem:[%s178 + $0x19a] sm:$0x1]
        %v1131 = vld [vmem:[%s178 + $0x19b] sm:$0x1]
        %v1132 = vld [vmem:[%s178 + $0x19c] sm:$0x1]
        %v1133 = vld [vmem:[%s178 + $0x19d] sm:$0x1]
        %v1134 = vld [vmem:[%s178 + $0x19e] sm:$0x1]
        %v1135 = vld [vmem:[%s178 + $0x19f] sm:$0x1]
        %v1136 = vld [vmem:[%s178 + $0x1a0] sm:$0x1]
        %v1137 = vld [vmem:[%s178 + $0x1a1] sm:$0x1]
        %v1138 = vld [vmem:[%s178 + $0x1a2] sm:$0x1]
        %v1139 = vld [vmem:[%s178 + $0x1a3] sm:$0x1]
        %v1140 = vld [vmem:[%s178 + $0x1a4] sm:$0x1]
        %v1141 = vld [vmem:[%s178 + $0x1a5] sm:$0x1]
        %v1142 = vld [vmem:[%s178 + $0x1a6] sm:$0x1]
        %v1143 = vld [vmem:[%s178 + $0x1a7] sm:$0x1]
        %v1144 = vld [vmem:[%s178 + $0x1a8] sm:$0x1]
        %v1145 = vld [vmem:[%s178 + $0x1a9] sm:$0x1]
        %v1146 = vld [vmem:[%s178 + $0x1aa] sm:$0x1]
        %v1147 = vld [vmem:[%s178 + $0x1ab] sm:$0x1]
        %v1148 = vld [vmem:[%s178 + $0x1ac] sm:$0x1]
        %v1149 = vld [vmem:[%s178 + $0x1ad] sm:$0x1]
        %v1150 = vld [vmem:[%s178 + $0x1ae] sm:$0x1]
        %v1151 = vld [vmem:[%s178 + $0x1af] sm:$0x1]
        %v1152 = vld [vmem:[%s178 + $0x1b0] sm:$0x1]
        %v1153 = vld [vmem:[%s178 + $0x1b1] sm:$0x1]
        %v1154 = vld [vmem:[%s178 + $0x1b2] sm:$0x1]
        %v1155 = vld [vmem:[%s178 + $0x1b3] sm:$0x1]
        %v1156 = vld [vmem:[%s178 + $0x1b4] sm:$0x1]
        %v1157 = vld [vmem:[%s178 + $0x1b5] sm:$0x1]
        %v1158 = vld [vmem:[%s178 + $0x1b6] sm:$0x1]
        %v1159 = vld [vmem:[%s178 + $0x1b7] sm:$0x1]
        %v1160 = vld [vmem:[%s178 + $0x1b8] sm:$0x1]
        %v1161 = vld [vmem:[%s178 + $0x1b9] sm:$0x1]
        %v1162 = vld [vmem:[%s178 + $0x1ba] sm:$0x1]
        %v1163 = vld [vmem:[%s178 + $0x1bb] sm:$0x1]
        %v1164 = vld [vmem:[%s178 + $0x1bc] sm:$0x1]
        %v1165 = vld [vmem:[%s178 + $0x1bd] sm:$0x1]
        %v1166 = vld [vmem:[%s178 + $0x1be] sm:$0x1]
        %v1167 = vld [vmem:[%s178 + $0x1bf] sm:$0x1]
        %v1168 = vld [vmem:[%s178 + $0x1c0] sm:$0x1]
        %v1169 = vld [vmem:[%s178 + $0x1c1] sm:$0x1]
        %v1170 = vld [vmem:[%s178 + $0x1c2] sm:$0x1]
        %v1171 = vld [vmem:[%s178 + $0x1c3] sm:$0x1]
        %v1172 = vld [vmem:[%s178 + $0x1c4] sm:$0x1]
        %v1173 = vld [vmem:[%s178 + $0x1c5] sm:$0x1]
        %v1174 = vld [vmem:[%s178 + $0x1c6] sm:$0x1]
        %v1175 = vld [vmem:[%s178 + $0x1c7] sm:$0x1]
        %v1176 = vld [vmem:[%s178 + $0x1c8] sm:$0x1]
        %v1177 = vld [vmem:[%s178 + $0x1c9] sm:$0x1]
        %v1178 = vld [vmem:[%s178 + $0x1ca] sm:$0x1]
        %v1179 = vld [vmem:[%s178 + $0x1cb] sm:$0x1]
        %v1180 = vld [vmem:[%s178 + $0x1cc] sm:$0x1]
        %v1181 = vld [vmem:[%s178 + $0x1cd] sm:$0x1]
        %v1182 = vld [vmem:[%s178 + $0x1ce] sm:$0x1]
        %v1183 = vld [vmem:[%s178 + $0x1cf] sm:$0x1]
        %v1184 = vld [vmem:[%s178 + $0x1d0] sm:$0x1]
        %v1185 = vld [vmem:[%s178 + $0x1d1] sm:$0x1]
        %v1186 = vld [vmem:[%s178 + $0x1d2] sm:$0x1]
        %v1187 = vld [vmem:[%s178 + $0x1d3] sm:$0x1]
        %v1188 = vld [vmem:[%s178 + $0x1d4] sm:$0x1]
        %v1189 = vld [vmem:[%s178 + $0x1d5] sm:$0x1]
        %v1190 = vld [vmem:[%s178 + $0x1d6] sm:$0x1]
        %v1191 = vld [vmem:[%s178 + $0x1d7] sm:$0x1]
        %v1192 = vld [vmem:[%s178 + $0x1d8] sm:$0x1]
        %v1193 = vld [vmem:[%s178 + $0x1d9] sm:$0x1]
        %v1194 = vld [vmem:[%s178 + $0x1da] sm:$0x1]
        %v1195 = vld [vmem:[%s178 + $0x1db] sm:$0x1]
        %v1196 = vld [vmem:[%s178 + $0x1dc] sm:$0x1]
        %v1197 = vld [vmem:[%s178 + $0x1dd] sm:$0x1]
        %v1198 = vld [vmem:[%s178 + $0x1de] sm:$0x1]
        %v1199 = vld [vmem:[%s178 + $0x1df] sm:$0x1]
        %v1200 = vld [vmem:[%s178 + $0x1e0] sm:$0x1]
        %v1201 = vld [vmem:[%s178 + $0x1e1] sm:$0x1]
        %v1202 = vld [vmem:[%s178 + $0x1e2] sm:$0x1]
        %v1203 = vld [vmem:[%s178 + $0x1e3] sm:$0x1]
        %v1204 = vld [vmem:[%s178 + $0x1e4] sm:$0x1]
        %v1205 = vld [vmem:[%s178 + $0x1e5] sm:$0x1]
        %v1206 = vld [vmem:[%s178 + $0x1e6] sm:$0x1]
        %v1207 = vld [vmem:[%s178 + $0x1e7] sm:$0x1]
        %v1208 = vld [vmem:[%s178 + $0x1e8] sm:$0x1]
        %v1209 = vld [vmem:[%s178 + $0x1e9] sm:$0x1]
        %v1210 = vld [vmem:[%s178 + $0x1ea] sm:$0x1]
        %v1211 = vld [vmem:[%s178 + $0x1eb] sm:$0x1]
        %v1212 = vld [vmem:[%s178 + $0x1ec] sm:$0x1]
        %v1213 = vld [vmem:[%s178 + $0x1ed] sm:$0x1]
        %v1214 = vld [vmem:[%s178 + $0x1ee] sm:$0x1]
        %v1215 = vld [vmem:[%s178 + $0x1ef] sm:$0x1]
        %v1216 = vld [vmem:[%s178 + $0x1f0] sm:$0x1]
        %v1217 = vld [vmem:[%s178 + $0x1f1] sm:$0x1]
        %v1218 = vld [vmem:[%s178 + $0x1f2] sm:$0x1]
        %v1219 = vld [vmem:[%s178 + $0x1f3] sm:$0x1]
        %v1220 = vld [vmem:[%s178 + $0x1f4] sm:$0x1]
        %v1221 = vld [vmem:[%s178 + $0x1f5] sm:$0x1]
        %v1222 = vld [vmem:[%s178 + $0x1f6] sm:$0x1]
        %v1223 = vld [vmem:[%s178 + $0x1f7] sm:$0x1]
        %v1224 = vld [vmem:[%s178 + $0x1f8] sm:$0x1]
        %v1225 = vld [vmem:[%s178 + $0x1f9] sm:$0x1]
        %v1226 = vld [vmem:[%s178 + $0x1fa] sm:$0x1]
        %v1227 = vld [vmem:[%s178 + $0x1fb] sm:$0x1]
        %v1228 = vld [vmem:[%s178 + $0x1fc] sm:$0x1]
        %v1229 = vld [vmem:[%s178 + $0x1fd] sm:$0x1]
        %v1230 = vld [vmem:[%s178 + $0x1fe] sm:$0x1]
        %v1231 = vld [vmem:[%s178 + $0x1ff] sm:$0x1]
        %v1744 = vperm.slane %v720, 0
        %v1745 = vperm.slane %v721, 0
        %v1746 = vperm.slane %v722, 0
        %v1747 = vperm.slane %v723, 0
        %v1748 = vperm.slane %v724, 0
        %v1749 = vperm.slane %v725, 0
        %v1750 = vperm.slane %v726, 0
        %v1751 = vperm.slane %v727, 0
        %v1752 = vperm.slane %v728, 0
        %v1753 = vperm.slane %v729, 0
        %v1754 = vperm.slane %v730, 0
        %v1755 = vperm.slane %v731, 0
        %v1756 = vperm.slane %v732, 0
        %v1757 = vperm.slane %v733, 0
        %v1758 = vperm.slane %v734, 0
        %v1759 = vperm.slane %v735, 0
        %v1760 = vperm.slane %v736, 0
        %v1761 = vperm.slane %v737, 0
        %v1762 = vperm.slane %v738, 0
        %v1763 = vperm.slane %v739, 0
        %v1764 = vperm.slane %v740, 0
        %v1765 = vperm.slane %v741, 0
        %v1766 = vperm.slane %v742, 0
        %v1767 = vperm.slane %v743, 0
        %v1768 = vperm.slane %v744, 0
        %v1769 = vperm.slane %v745, 0
        %v1770 = vperm.slane %v746, 0
        %v1771 = vperm.slane %v747, 0
        %v1772 = vperm.slane %v748, 0
        %v1773 = vperm.slane %v749, 0
        %v1774 = vperm.slane %v750, 0
        %v1775 = vperm.slane %v751, 0
        %v1776 = vperm.slane %v752, 0
        %v1777 = vperm.slane %v753, 0
        %v1778 = vperm.slane %v754, 0
        %v1779 = vperm.slane %v755, 0
        %v1780 = vperm.slane %v756, 0
        %v1781 = vperm.slane %v757, 0
        %v1782 = vperm.slane %v758, 0
        %v1783 = vperm.slane %v759, 0
        %v1784 = vperm.slane %v760, 0
        %v1785 = vperm.slane %v761, 0
        %v1786 = vperm.slane %v762, 0
        %v1787 = vperm.slane %v763, 0
        %v1788 = vperm.slane %v764, 0
        %v1789 = vperm.slane %v765, 0
        %v1790 = vperm.slane %v766, 0
        %v1791 = vperm.slane %v767, 0
        %v1792 = vperm.slane %v768, 0
        %v1793 = vperm.slane %v769, 0
        %v1794 = vperm.slane %v770, 0
        %v1795 = vperm.slane %v771, 0
        %v1796 = vperm.slane %v772, 0
        %v1797 = vperm.slane %v773, 0
        %v1798 = vperm.slane %v774, 0
        %v1799 = vperm.slane %v775, 0
        %v1800 = vperm.slane %v776, 0
        %v1801 = vperm.slane %v777, 0
        %v1802 = vperm.slane %v778, 0
        %v1803 = vperm.slane %v779, 0
        %v1804 = vperm.slane %v780, 0
        %v1805 = vperm.slane %v781, 0
        %v1806 = vperm.slane %v782, 0
        %v1807 = vperm.slane %v783, 0
        %v1808 = vperm.slane %v784, 0
        %v1809 = vperm.slane %v785, 0
        %v1810 = vperm.slane %v786, 0
        %v1811 = vperm.slane %v787, 0
        %v1812 = vperm.slane %v788, 0
        %v1813 = vperm.slane %v789, 0
        %v1814 = vperm.slane %v790, 0
        %v1815 = vperm.slane %v791, 0
        %v1816 = vperm.slane %v792, 0
        %v1817 = vperm.slane %v793, 0
        %v1818 = vperm.slane %v794, 0
        %v1819 = vperm.slane %v795, 0
        %v1820 = vperm.slane %v796, 0
        %v1821 = vperm.slane %v797, 0
        %v1822 = vperm.slane %v798, 0
        %v1823 = vperm.slane %v799, 0
        %v1824 = vperm.slane %v800, 0
        %v1825 = vperm.slane %v801, 0
        %v1826 = vperm.slane %v802, 0
        %v1827 = vperm.slane %v803, 0
        %v1828 = vperm.slane %v804, 0
        %v1829 = vperm.slane %v805, 0
        %v1830 = vperm.slane %v806, 0
        %v1831 = vperm.slane %v807, 0
        %v1832 = vperm.slane %v808, 0
        %v1833 = vperm.slane %v809, 0
        %v1834 = vperm.slane %v810, 0
        %v1835 = vperm.slane %v811, 0
        %v1836 = vperm.slane %v812, 0
        %v1837 = vperm.slane %v813, 0
        %v1838 = vperm.slane %v814, 0
        %v1839 = vperm.slane %v815, 0
        %v1840 = vperm.slane %v816, 0
        %v1841 = vperm.slane %v817, 0
        %v1842 = vperm.slane %v818, 0
        %v1843 = vperm.slane %v819, 0
        %v1844 = vperm.slane %v820, 0
        %v1845 = vperm.slane %v821, 0
        %v1846 = vperm.slane %v822, 0
        %v1847 = vperm.slane %v823, 0
        %v1848 = vperm.slane %v824, 0
        %v1849 = vperm.slane %v825, 0
        %v1850 = vperm.slane %v826, 0
        %v1851 = vperm.slane %v827, 0
        %v1852 = vperm.slane %v828, 0
        %v1853 = vperm.slane %v829, 0
        %v1854 = vperm.slane %v830, 0
        %v1855 = vperm.slane %v831, 0
        %v1856 = vperm.slane %v832, 0
        %v1857 = vperm.slane %v833, 0
        %v1858 = vperm.slane %v834, 0
        %v1859 = vperm.slane %v835, 0
        %v1860 = vperm.slane %v836, 0
        %v1861 = vperm.slane %v837, 0
        %v1862 = vperm.slane %v838, 0
        %v1863 = vperm.slane %v839, 0
        %v1864 = vperm.slane %v840, 0
        %v1865 = vperm.slane %v841, 0
        %v1866 = vperm.slane %v842, 0
        %v1867 = vperm.slane %v843, 0
        %v1868 = vperm.slane %v844, 0
        %v1869 = vperm.slane %v845, 0
        %v1870 = vperm.slane %v846, 0
        %v1871 = vperm.slane %v847, 0
        %v1872 = vperm.slane %v848, 0
        %v1873 = vperm.slane %v849, 0
        %v1874 = vperm.slane %v850, 0
        %v1875 = vperm.slane %v851, 0
        %v1876 = vperm.slane %v852, 0
        %v1877 = vperm.slane %v853, 0
        %v1878 = vperm.slane %v854, 0
        %v1879 = vperm.slane %v855, 0
        %v1880 = vperm.slane %v856, 0
        %v1881 = vperm.slane %v857, 0
        %v1882 = vperm.slane %v858, 0
        %v1883 = vperm.slane %v859, 0
        %v1884 = vperm.slane %v860, 0
        %v1885 = vperm.slane %v861, 0
        %v1886 = vperm.slane %v862, 0
        %v1887 = vperm.slane %v863, 0
        %v1888 = vperm.slane %v864, 0
        %v1889 = vperm.slane %v865, 0
        %v1890 = vperm.slane %v866, 0
        %v1891 = vperm.slane %v867, 0
        %v1892 = vperm.slane %v868, 0
        %v1893 = vperm.slane %v869, 0
        %v1894 = vperm.slane %v870, 0
        %v1895 = vperm.slane %v871, 0
        %v1896 = vperm.slane %v872, 0
        %v1897 = vperm.slane %v873, 0
        %v1898 = vperm.slane %v874, 0
        %v1899 = vperm.slane %v875, 0
        %v1900 = vperm.slane %v876, 0
        %v1901 = vperm.slane %v877, 0
        %v1902 = vperm.slane %v878, 0
        %v1903 = vperm.slane %v879, 0
        %v1904 = vperm.slane %v880, 0
        %v1905 = vperm.slane %v881, 0
        %v1906 = vperm.slane %v882, 0
        %v1907 = vperm.slane %v883, 0
        %v1908 = vperm.slane %v884, 0
        %v1909 = vperm.slane %v885, 0
        %v1910 = vperm.slane %v886, 0
        %v1911 = vperm.slane %v887, 0
        %v1912 = vperm.slane %v888, 0
        %v1913 = vperm.slane %v889, 0
        %v1914 = vperm.slane %v890, 0
        %v1915 = vperm.slane %v891, 0
        %v1916 = vperm.slane %v892, 0
        %v1917 = vperm.slane %v893, 0
        %v1918 = vperm.slane %v894, 0
        %v1919 = vperm.slane %v895, 0
        %v1920 = vperm.slane %v896, 0
        %v1921 = vperm.slane %v897, 0
        %v1922 = vperm.slane %v898, 0
        %v1923 = vperm.slane %v899, 0
        %v1924 = vperm.slane %v900, 0
        %v1925 = vperm.slane %v901, 0
        %v1926 = vperm.slane %v902, 0
        %v1927 = vperm.slane %v903, 0
        %v1928 = vperm.slane %v904, 0
        %v1929 = vperm.slane %v905, 0
        %v1930 = vperm.slane %v906, 0
        %v1931 = vperm.slane %v907, 0
        %v1932 = vperm.slane %v908, 0
        %v1933 = vperm.slane %v909, 0
        %v1934 = vperm.slane %v910, 0
        %v1935 = vperm.slane %v911, 0
        %v1936 = vperm.slane %v912, 0
        %v1937 = vperm.slane %v913, 0
        %v1938 = vperm.slane %v914, 0
        %v1939 = vperm.slane %v915, 0
        %v1940 = vperm.slane %v916, 0
        %v1941 = vperm.slane %v917, 0
        %v1942 = vperm.slane %v918, 0
        %v1943 = vperm.slane %v919, 0
        %v1944 = vperm.slane %v920, 0
        %v1945 = vperm.slane %v921, 0
        %v1946 = vperm.slane %v922, 0
        %v1947 = vperm.slane %v923, 0
        %v1948 = vperm.slane %v924, 0
        %v1949 = vperm.slane %v925, 0
        %v1950 = vperm.slane %v926, 0
        %v1951 = vperm.slane %v927, 0
        %v1952 = vperm.slane %v928, 0
        %v1953 = vperm.slane %v929, 0
        %v1954 = vperm.slane %v930, 0
        %v1955 = vperm.slane %v931, 0
        %v1956 = vperm.slane %v932, 0
        %v1957 = vperm.slane %v933, 0
        %v1958 = vperm.slane %v934, 0
        %v1959 = vperm.slane %v935, 0
        %v1960 = vperm.slane %v936, 0
        %v1961 = vperm.slane %v937, 0
        %v1962 = vperm.slane %v938, 0
        %v1963 = vperm.slane %v939, 0
        %v1964 = vperm.slane %v940, 0
        %v1965 = vperm.slane %v941, 0
        %v1966 = vperm.slane %v942, 0
        %v1967 = vperm.slane %v943, 0
        %v1968 = vperm.slane %v944, 0
        %v1969 = vperm.slane %v945, 0
        %v1970 = vperm.slane %v946, 0
        %v1971 = vperm.slane %v947, 0
        %v1972 = vperm.slane %v948, 0
        %v1973 = vperm.slane %v949, 0
        %v1974 = vperm.slane %v950, 0
        %v1975 = vperm.slane %v951, 0
        %v1976 = vperm.slane %v952, 0
        %v1977 = vperm.slane %v953, 0
        %v1978 = vperm.slane %v954, 0
        %v1979 = vperm.slane %v955, 0
        %v1980 = vperm.slane %v956, 0
        %v1981 = vperm.slane %v957, 0
        %v1982 = vperm.slane %v958, 0
        %v1983 = vperm.slane %v959, 0
        %v1984 = vperm.slane %v960, 0
        %v1985 = vperm.slane %v961, 0
        %v1986 = vperm.slane %v962, 0
        %v1987 = vperm.slane %v963, 0
        %v1988 = vperm.slane %v964, 0
        %v1989 = vperm.slane %v965, 0
        %v1990 = vperm.slane %v966, 0
        %v1991 = vperm.slane %v967, 0
        %v1992 = vperm.slane %v968, 0
        %v1993 = vperm.slane %v969, 0
        %v1994 = vperm.slane %v970, 0
        %v1995 = vperm.slane %v971, 0
        %v1996 = vperm.slane %v972, 0
        %v1997 = vperm.slane %v973, 0
        %v1998 = vperm.slane %v974, 0
        %v1999 = vperm.slane %v975, 0
        %v2000 = vperm.slane %v976, 0
        %v2001 = vperm.slane %v977, 0
        %v2002 = vperm.slane %v978, 0
        %v2003 = vperm.slane %v979, 0
        %v2004 = vperm.slane %v980, 0
        %v2005 = vperm.slane %v981, 0
        %v2006 = vperm.slane %v982, 0
        %v2007 = vperm.slane %v983, 0
        %v2008 = vperm.slane %v984, 0
        %v2009 = vperm.slane %v985, 0
        %v2010 = vperm.slane %v986, 0
        %v2011 = vperm.slane %v987, 0
        %v2012 = vperm.slane %v988, 0
        %v2013 = vperm.slane %v989, 0
        %v2014 = vperm.slane %v990, 0
        %v2015 = vperm.slane %v991, 0
        %v2016 = vperm.slane %v992, 0
        %v2017 = vperm.slane %v993, 0
        %v2018 = vperm.slane %v994, 0
        %v2019 = vperm.slane %v995, 0
        %v2020 = vperm.slane %v996, 0
        %v2021 = vperm.slane %v997, 0
        %v2022 = vperm.slane %v998, 0
        %v2023 = vperm.slane %v999, 0
        %v2024 = vperm.slane %v1000, 0
        %v2025 = vperm.slane %v1001, 0
        %v2026 = vperm.slane %v1002, 0
        %v2027 = vperm.slane %v1003, 0
        %v2028 = vperm.slane %v1004, 0
        %v2029 = vperm.slane %v1005, 0
        %v2030 = vperm.slane %v1006, 0
        %v2031 = vperm.slane %v1007, 0
        %v2032 = vperm.slane %v1008, 0
        %v2033 = vperm.slane %v1009, 0
        %v2034 = vperm.slane %v1010, 0
        %v2035 = vperm.slane %v1011, 0
        %v2036 = vperm.slane %v1012, 0
        %v2037 = vperm.slane %v1013, 0
        %v2038 = vperm.slane %v1014, 0
        %v2039 = vperm.slane %v1015, 0
        %v2040 = vperm.slane %v1016, 0
        %v2041 = vperm.slane %v1017, 0
        %v2042 = vperm.slane %v1018, 0
        %v2043 = vperm.slane %v1019, 0
        %v2044 = vperm.slane %v1020, 0
        %v2045 = vperm.slane %v1021, 0
        %v2046 = vperm.slane %v1022, 0
        %v2047 = vperm.slane %v1023, 0
        %v2048 = vperm.slane %v1024, 0
        %v2049 = vperm.slane %v1025, 0
        %v2050 = vperm.slane %v1026, 0
        %v2051 = vperm.slane %v1027, 0
        %v2052 = vperm.slane %v1028, 0
        %v2053 = vperm.slane %v1029, 0
        %v2054 = vperm.slane %v1030, 0
        %v2055 = vperm.slane %v1031, 0
        %v2056 = vperm.slane %v1032, 0
        %v2057 = vperm.slane %v1033, 0
        %v2058 = vperm.slane %v1034, 0
        %v2059 = vperm.slane %v1035, 0
        %v2060 = vperm.slane %v1036, 0
        %v2061 = vperm.slane %v1037, 0
        %v2062 = vperm.slane %v1038, 0
        %v2063 = vperm.slane %v1039, 0
        %v2064 = vperm.slane %v1040, 0
        %v2065 = vperm.slane %v1041, 0
        %v2066 = vperm.slane %v1042, 0
        %v2067 = vperm.slane %v1043, 0
        %v2068 = vperm.slane %v1044, 0
        %v2069 = vperm.slane %v1045, 0
        %v2070 = vperm.slane %v1046, 0
        %v2071 = vperm.slane %v1047, 0
        %v2072 = vperm.slane %v1048, 0
        %v2073 = vperm.slane %v1049, 0
        %v2074 = vperm.slane %v1050, 0
        %v2075 = vperm.slane %v1051, 0
        %v2076 = vperm.slane %v1052, 0
        %v2077 = vperm.slane %v1053, 0
        %v2078 = vperm.slane %v1054, 0
        %v2079 = vperm.slane %v1055, 0
        %v2080 = vperm.slane %v1056, 0
        %v2081 = vperm.slane %v1057, 0
        %v2082 = vperm.slane %v1058, 0
        %v2083 = vperm.slane %v1059, 0
        %v2084 = vperm.slane %v1060, 0
        %v2085 = vperm.slane %v1061, 0
        %v2086 = vperm.slane %v1062, 0
        %v2087 = vperm.slane %v1063, 0
        %v2088 = vperm.slane %v1064, 0
        %v2089 = vperm.slane %v1065, 0
        %v2090 = vperm.slane %v1066, 0
        %v2091 = vperm.slane %v1067, 0
        %v2092 = vperm.slane %v1068, 0
        %v2093 = vperm.slane %v1069, 0
        %v2094 = vperm.slane %v1070, 0
        %v2095 = vperm.slane %v1071, 0
        %v2096 = vperm.slane %v1072, 0
        %v2097 = vperm.slane %v1073, 0
        %v2098 = vperm.slane %v1074, 0
        %v2099 = vperm.slane %v1075, 0
        %v2100 = vperm.slane %v1076, 0
        %v2101 = vperm.slane %v1077, 0
        %v2102 = vperm.slane %v1078, 0
        %v2103 = vperm.slane %v1079, 0
        %v2104 = vperm.slane %v1080, 0
        %v2105 = vperm.slane %v1081, 0
        %v2106 = vperm.slane %v1082, 0
        %v2107 = vperm.slane %v1083, 0
        %v2108 = vperm.slane %v1084, 0
        %v2109 = vperm.slane %v1085, 0
        %v2110 = vperm.slane %v1086, 0
        %v2111 = vperm.slane %v1087, 0
        %v2112 = vperm.slane %v1088, 0
        %v2113 = vperm.slane %v1089, 0
        %v2114 = vperm.slane %v1090, 0
        %v2115 = vperm.slane %v1091, 0
        %v2116 = vperm.slane %v1092, 0
        %v2117 = vperm.slane %v1093, 0
        %v2118 = vperm.slane %v1094, 0
        %v2119 = vperm.slane %v1095, 0
        %v2120 = vperm.slane %v1096, 0
        %v2121 = vperm.slane %v1097, 0
        %v2122 = vperm.slane %v1098, 0
        %v2123 = vperm.slane %v1099, 0
        %v2124 = vperm.slane %v1100, 0
        %v2125 = vperm.slane %v1101, 0
        %v2126 = vperm.slane %v1102, 0
        %v2127 = vperm.slane %v1103, 0
        %v2128 = vperm.slane %v1104, 0
        %v2129 = vperm.slane %v1105, 0
        %v2130 = vperm.slane %v1106, 0
        %v2131 = vperm.slane %v1107, 0
        %v2132 = vperm.slane %v1108, 0
        %v2133 = vperm.slane %v1109, 0
        %v2134 = vperm.slane %v1110, 0
        %v2135 = vperm.slane %v1111, 0
        %v2136 = vperm.slane %v1112, 0
        %v2137 = vperm.slane %v1113, 0
        %v2138 = vperm.slane %v1114, 0
        %v2139 = vperm.slane %v1115, 0
        %v2140 = vperm.slane %v1116, 0
        %v2141 = vperm.slane %v1117, 0
        %v2142 = vperm.slane %v1118, 0
        %v2143 = vperm.slane %v1119, 0
        %v2144 = vperm.slane %v1120, 0
        %v2145 = vperm.slane %v1121, 0
        %v2146 = vperm.slane %v1122, 0
        %v2147 = vperm.slane %v1123, 0
        %v2148 = vperm.slane %v1124, 0
        %v2149 = vperm.slane %v1125, 0
        %v2150 = vperm.slane %v1126, 0
        %v2151 = vperm.slane %v1127, 0
        %v2152 = vperm.slane %v1128, 0
        %v2153 = vperm.slane %v1129, 0
        %v2154 = vperm.slane %v1130, 0
        %v2155 = vperm.slane %v1131, 0
        %v2156 = vperm.slane %v1132, 0
        %v2157 = vperm.slane %v1133, 0
        %v2158 = vperm.slane %v1134, 0
        %v2159 = vperm.slane %v1135, 0
        %v2160 = vperm.slane %v1136, 0
        %v2161 = vperm.slane %v1137, 0
        %v2162 = vperm.slane %v1138, 0
        %v2163 = vperm.slane %v1139, 0
        %v2164 = vperm.slane %v1140, 0
        %v2165 = vperm.slane %v1141, 0
        %v2166 = vperm.slane %v1142, 0
        %v2167 = vperm.slane %v1143, 0
        %v2168 = vperm.slane %v1144, 0
        %v2169 = vperm.slane %v1145, 0
        %v2170 = vperm.slane %v1146, 0
        %v2171 = vperm.slane %v1147, 0
        %v2172 = vperm.slane %v1148, 0
        %v2173 = vperm.slane %v1149, 0
        %v2174 = vperm.slane %v1150, 0
        %v2175 = vperm.slane %v1151, 0
        %v2176 = vperm.slane %v1152, 0
        %v2177 = vperm.slane %v1153, 0
        %v2178 = vperm.slane %v1154, 0
        %v2179 = vperm.slane %v1155, 0
        %v2180 = vperm.slane %v1156, 0
        %v2181 = vperm.slane %v1157, 0
        %v2182 = vperm.slane %v1158, 0
        %v2183 = vperm.slane %v1159, 0
        %v2184 = vperm.slane %v1160, 0
        %v2185 = vperm.slane %v1161, 0
        %v2186 = vperm.slane %v1162, 0
        %v2187 = vperm.slane %v1163, 0
        %v2188 = vperm.slane %v1164, 0
        %v2189 = vperm.slane %v1165, 0
        %v2190 = vperm.slane %v1166, 0
        %v2191 = vperm.slane %v1167, 0
        %v2192 = vperm.slane %v1168, 0
        %v2193 = vperm.slane %v1169, 0
        %v2194 = vperm.slane %v1170, 0
        %v2195 = vperm.slane %v1171, 0
        %v2196 = vperm.slane %v1172, 0
        %v2197 = vperm.slane %v1173, 0
        %v2198 = vperm.slane %v1174, 0
        %v2199 = vperm.slane %v1175, 0
        %v2200 = vperm.slane %v1176, 0
        %v2201 = vperm.slane %v1177, 0
        %v2202 = vperm.slane %v1178, 0
        %v2203 = vperm.slane %v1179, 0
        %v2204 = vperm.slane %v1180, 0
        %v2205 = vperm.slane %v1181, 0
        %v2206 = vperm.slane %v1182, 0
        %v2207 = vperm.slane %v1183, 0
        %v2208 = vperm.slane %v1184, 0
        %v2209 = vperm.slane %v1185, 0
        %v2210 = vperm.slane %v1186, 0
        %v2211 = vperm.slane %v1187, 0
        %v2212 = vperm.slane %v1188, 0
        %v2213 = vperm.slane %v1189, 0
        %v2214 = vperm.slane %v1190, 0
        %v2215 = vperm.slane %v1191, 0
        %v2216 = vperm.slane %v1192, 0
        %v2217 = vperm.slane %v1193, 0
        %v2218 = vperm.slane %v1194, 0
        %v2219 = vperm.slane %v1195, 0
        %v2220 = vperm.slane %v1196, 0
        %v2221 = vperm.slane %v1197, 0
        %v2222 = vperm.slane %v1198, 0
        %v2223 = vperm.slane %v1199, 0
        %v2224 = vperm.slane %v1200, 0
        %v2225 = vperm.slane %v1201, 0
        %v2226 = vperm.slane %v1202, 0
        %v2227 = vperm.slane %v1203, 0
        %v2228 = vperm.slane %v1204, 0
        %v2229 = vperm.slane %v1205, 0
        %v2230 = vperm.slane %v1206, 0
        %v2231 = vperm.slane %v1207, 0
        %v2232 = vperm.slane %v1208, 0
        %v2233 = vperm.slane %v1209, 0
        %v2234 = vperm.slane %v1210, 0
        %v2235 = vperm.slane %v1211, 0
        %v2236 = vperm.slane %v1212, 0
        %v2237 = vperm.slane %v1213, 0
        %v2238 = vperm.slane %v1214, 0
        %v2239 = vperm.slane %v1215, 0
        %v2240 = vperm.slane %v1216, 0
        %v2241 = vperm.slane %v1217, 0
        %v2242 = vperm.slane %v1218, 0
        %v2243 = vperm.slane %v1219, 0
        %v2244 = vperm.slane %v1220, 0
        %v2245 = vperm.slane %v1221, 0
        %v2246 = vperm.slane %v1222, 0
        %v2247 = vperm.slane %v1223, 0
        %v2248 = vperm.slane %v1224, 0
        %v2249 = vperm.slane %v1225, 0
        %v2250 = vperm.slane %v1226, 0
        %v2251 = vperm.slane %v1227, 0
        %v2252 = vperm.slane %v1228, 0
        %v2253 = vperm.slane %v1229, 0
        %v2254 = vperm.slane %v1230, 0
        %v2255 = vperm.slane %v1231, 0
        %v2768 = vadd.f32 %v208, %v1744
        %v2769 = vadd.f32 %v209, %v1745
        %v2770 = vadd.f32 %v210, %v1746
        %v2771 = vadd.f32 %v211, %v1747
        %v2772 = vadd.f32 %v212, %v1748
        %v2773 = vadd.f32 %v213, %v1749
        %v2774 = vadd.f32 %v214, %v1750
        %v2775 = vadd.f32 %v215, %v1751
        %v2776 = vadd.f32 %v216, %v1752
        %v2777 = vadd.f32 %v217, %v1753
        %v2778 = vadd.f32 %v218, %v1754
        %v2779 = vadd.f32 %v219, %v1755
        %v2780 = vadd.f32 %v220, %v1756
        %v2781 = vadd.f32 %v221, %v1757
        %v2782 = vadd.f32 %v222, %v1758
        %v2783 = vadd.f32 %v223, %v1759
        %v2784 = vadd.f32 %v224, %v1760
        %v2785 = vadd.f32 %v225, %v1761
        %v2786 = vadd.f32 %v226, %v1762
        %v2787 = vadd.f32 %v227, %v1763
        %v2788 = vadd.f32 %v228, %v1764
        %v2789 = vadd.f32 %v229, %v1765
        %v2790 = vadd.f32 %v230, %v1766
        %v2791 = vadd.f32 %v231, %v1767
        %v2792 = vadd.f32 %v232, %v1768
        %v2793 = vadd.f32 %v233, %v1769
        %v2794 = vadd.f32 %v234, %v1770
        %v2795 = vadd.f32 %v235, %v1771
        %v2796 = vadd.f32 %v236, %v1772
        %v2797 = vadd.f32 %v237, %v1773
        %v2798 = vadd.f32 %v238, %v1774
        %v2799 = vadd.f32 %v239, %v1775
        %v2800 = vadd.f32 %v240, %v1776
        %v2801 = vadd.f32 %v241, %v1777
        %v2802 = vadd.f32 %v242, %v1778
        %v2803 = vadd.f32 %v243, %v1779
        %v2804 = vadd.f32 %v244, %v1780
        %v2805 = vadd.f32 %v245, %v1781
        %v2806 = vadd.f32 %v246, %v1782
        %v2807 = vadd.f32 %v247, %v1783
        %v2808 = vadd.f32 %v248, %v1784
        %v2809 = vadd.f32 %v249, %v1785
        %v2810 = vadd.f32 %v250, %v1786
        %v2811 = vadd.f32 %v251, %v1787
        %v2812 = vadd.f32 %v252, %v1788
        %v2813 = vadd.f32 %v253, %v1789
        %v2814 = vadd.f32 %v254, %v1790
        %v2815 = vadd.f32 %v255, %v1791
        %v2816 = vadd.f32 %v256, %v1792
        %v2817 = vadd.f32 %v257, %v1793
        %v2818 = vadd.f32 %v258, %v1794
        %v2819 = vadd.f32 %v259, %v1795
        %v2820 = vadd.f32 %v260, %v1796
        %v2821 = vadd.f32 %v261, %v1797
        %v2822 = vadd.f32 %v262, %v1798
        %v2823 = vadd.f32 %v263, %v1799
        %v2824 = vadd.f32 %v264, %v1800
        %v2825 = vadd.f32 %v265, %v1801
        %v2826 = vadd.f32 %v266, %v1802
        %v2827 = vadd.f32 %v267, %v1803
        %v2828 = vadd.f32 %v268, %v1804
        %v2829 = vadd.f32 %v269, %v1805
        %v2830 = vadd.f32 %v270, %v1806
        %v2831 = vadd.f32 %v271, %v1807
        %v2832 = vadd.f32 %v272, %v1808
        %v2833 = vadd.f32 %v273, %v1809
        %v2834 = vadd.f32 %v274, %v1810
        %v2835 = vadd.f32 %v275, %v1811
        %v2836 = vadd.f32 %v276, %v1812
        %v2837 = vadd.f32 %v277, %v1813
        %v2838 = vadd.f32 %v278, %v1814
        %v2839 = vadd.f32 %v279, %v1815
        %v2840 = vadd.f32 %v280, %v1816
        %v2841 = vadd.f32 %v281, %v1817
        %v2842 = vadd.f32 %v282, %v1818
        %v2843 = vadd.f32 %v283, %v1819
        %v2844 = vadd.f32 %v284, %v1820
        %v2845 = vadd.f32 %v285, %v1821
        %v2846 = vadd.f32 %v286, %v1822
        %v2847 = vadd.f32 %v287, %v1823
        %v2848 = vadd.f32 %v288, %v1824
        %v2849 = vadd.f32 %v289, %v1825
        %v2850 = vadd.f32 %v290, %v1826
        %v2851 = vadd.f32 %v291, %v1827
        %v2852 = vadd.f32 %v292, %v1828
        %v2853 = vadd.f32 %v293, %v1829
        %v2854 = vadd.f32 %v294, %v1830
        %v2855 = vadd.f32 %v295, %v1831
        %v2856 = vadd.f32 %v296, %v1832
        %v2857 = vadd.f32 %v297, %v1833
        %v2858 = vadd.f32 %v298, %v1834
        %v2859 = vadd.f32 %v299, %v1835
        %v2860 = vadd.f32 %v300, %v1836
        %v2861 = vadd.f32 %v301, %v1837
        %v2862 = vadd.f32 %v302, %v1838
        %v2863 = vadd.f32 %v303, %v1839
        %v2864 = vadd.f32 %v304, %v1840
        %v2865 = vadd.f32 %v305, %v1841
        %v2866 = vadd.f32 %v306, %v1842
        %v2867 = vadd.f32 %v307, %v1843
        %v2868 = vadd.f32 %v308, %v1844
        %v2869 = vadd.f32 %v309, %v1845
        %v2870 = vadd.f32 %v310, %v1846
        %v2871 = vadd.f32 %v311, %v1847
        %v2872 = vadd.f32 %v312, %v1848
        %v2873 = vadd.f32 %v313, %v1849
        %v2874 = vadd.f32 %v314, %v1850
        %v2875 = vadd.f32 %v315, %v1851
        %v2876 = vadd.f32 %v316, %v1852
        %v2877 = vadd.f32 %v317, %v1853
        %v2878 = vadd.f32 %v318, %v1854
        %v2879 = vadd.f32 %v319, %v1855
        %v2880 = vadd.f32 %v320, %v1856
        %v2881 = vadd.f32 %v321, %v1857
        %v2882 = vadd.f32 %v322, %v1858
        %v2883 = vadd.f32 %v323, %v1859
        %v2884 = vadd.f32 %v324, %v1860
        %v2885 = vadd.f32 %v325, %v1861
        %v2886 = vadd.f32 %v326, %v1862
        %v2887 = vadd.f32 %v327, %v1863
        %v2888 = vadd.f32 %v328, %v1864
        %v2889 = vadd.f32 %v329, %v1865
        %v2890 = vadd.f32 %v330, %v1866
        %v2891 = vadd.f32 %v331, %v1867
        %v2892 = vadd.f32 %v332, %v1868
        %v2893 = vadd.f32 %v333, %v1869
        %v2894 = vadd.f32 %v334, %v1870
        %v2895 = vadd.f32 %v335, %v1871
        %v2896 = vadd.f32 %v336, %v1872
        %v2897 = vadd.f32 %v337, %v1873
        %v2898 = vadd.f32 %v338, %v1874
        %v2899 = vadd.f32 %v339, %v1875
        %v2900 = vadd.f32 %v340, %v1876
        %v2901 = vadd.f32 %v341, %v1877
        %v2902 = vadd.f32 %v342, %v1878
        %v2903 = vadd.f32 %v343, %v1879
        %v2904 = vadd.f32 %v344, %v1880
        %v2905 = vadd.f32 %v345, %v1881
        %v2906 = vadd.f32 %v346, %v1882
        %v2907 = vadd.f32 %v347, %v1883
        %v2908 = vadd.f32 %v348, %v1884
        %v2909 = vadd.f32 %v349, %v1885
        %v2910 = vadd.f32 %v350, %v1886
        %v2911 = vadd.f32 %v351, %v1887
        %v2912 = vadd.f32 %v352, %v1888
        %v2913 = vadd.f32 %v353, %v1889
        %v2914 = vadd.f32 %v354, %v1890
        %v2915 = vadd.f32 %v355, %v1891
        %v2916 = vadd.f32 %v356, %v1892
        %v2917 = vadd.f32 %v357, %v1893
        %v2918 = vadd.f32 %v358, %v1894
        %v2919 = vadd.f32 %v359, %v1895
        %v2920 = vadd.f32 %v360, %v1896
        %v2921 = vadd.f32 %v361, %v1897
        %v2922 = vadd.f32 %v362, %v1898
        %v2923 = vadd.f32 %v363, %v1899
        %v2924 = vadd.f32 %v364, %v1900
        %v2925 = vadd.f32 %v365, %v1901
        %v2926 = vadd.f32 %v366, %v1902
        %v2927 = vadd.f32 %v367, %v1903
        %v2928 = vadd.f32 %v368, %v1904
        %v2929 = vadd.f32 %v369, %v1905
        %v2930 = vadd.f32 %v370, %v1906
        %v2931 = vadd.f32 %v371, %v1907
        %v2932 = vadd.f32 %v372, %v1908
        %v2933 = vadd.f32 %v373, %v1909
        %v2934 = vadd.f32 %v374, %v1910
        %v2935 = vadd.f32 %v375, %v1911
        %v2936 = vadd.f32 %v376, %v1912
        %v2937 = vadd.f32 %v377, %v1913
        %v2938 = vadd.f32 %v378, %v1914
        %v2939 = vadd.f32 %v379, %v1915
        %v2940 = vadd.f32 %v380, %v1916
        %v2941 = vadd.f32 %v381, %v1917
        %v2942 = vadd.f32 %v382, %v1918
        %v2943 = vadd.f32 %v383, %v1919
        %v2944 = vadd.f32 %v384, %v1920
        %v2945 = vadd.f32 %v385, %v1921
        %v2946 = vadd.f32 %v386, %v1922
        %v2947 = vadd.f32 %v387, %v1923
        %v2948 = vadd.f32 %v388, %v1924
        %v2949 = vadd.f32 %v389, %v1925
        %v2950 = vadd.f32 %v390, %v1926
        %v2951 = vadd.f32 %v391, %v1927
        %v2952 = vadd.f32 %v392, %v1928
        %v2953 = vadd.f32 %v393, %v1929
        %v2954 = vadd.f32 %v394, %v1930
        %v2955 = vadd.f32 %v395, %v1931
        %v2956 = vadd.f32 %v396, %v1932
        %v2957 = vadd.f32 %v397, %v1933
        %v2958 = vadd.f32 %v398, %v1934
        %v2959 = vadd.f32 %v399, %v1935
        %v2960 = vadd.f32 %v400, %v1936
        %v2961 = vadd.f32 %v401, %v1937
        %v2962 = vadd.f32 %v402, %v1938
        %v2963 = vadd.f32 %v403, %v1939
        %v2964 = vadd.f32 %v404, %v1940
        %v2965 = vadd.f32 %v405, %v1941
        %v2966 = vadd.f32 %v406, %v1942
        %v2967 = vadd.f32 %v407, %v1943
        %v2968 = vadd.f32 %v408, %v1944
        %v2969 = vadd.f32 %v409, %v1945
        %v2970 = vadd.f32 %v410, %v1946
        %v2971 = vadd.f32 %v411, %v1947
        %v2972 = vadd.f32 %v412, %v1948
        %v2973 = vadd.f32 %v413, %v1949
        %v2974 = vadd.f32 %v414, %v1950
        %v2975 = vadd.f32 %v415, %v1951
        %v2976 = vadd.f32 %v416, %v1952
        %v2977 = vadd.f32 %v417, %v1953
        %v2978 = vadd.f32 %v418, %v1954
        %v2979 = vadd.f32 %v419, %v1955
        %v2980 = vadd.f32 %v420, %v1956
        %v2981 = vadd.f32 %v421, %v1957
        %v2982 = vadd.f32 %v422, %v1958
        %v2983 = vadd.f32 %v423, %v1959
        %v2984 = vadd.f32 %v424, %v1960
        %v2985 = vadd.f32 %v425, %v1961
        %v2986 = vadd.f32 %v426, %v1962
        %v2987 = vadd.f32 %v427, %v1963
        %v2988 = vadd.f32 %v428, %v1964
        %v2989 = vadd.f32 %v429, %v1965
        %v2990 = vadd.f32 %v430, %v1966
        %v2991 = vadd.f32 %v431, %v1967
        %v2992 = vadd.f32 %v432, %v1968
        %v2993 = vadd.f32 %v433, %v1969
        %v2994 = vadd.f32 %v434, %v1970
        %v2995 = vadd.f32 %v435, %v1971
        %v2996 = vadd.f32 %v436, %v1972
        %v2997 = vadd.f32 %v437, %v1973
        %v2998 = vadd.f32 %v438, %v1974
        %v2999 = vadd.f32 %v439, %v1975
        %v3000 = vadd.f32 %v440, %v1976
        %v3001 = vadd.f32 %v441, %v1977
        %v3002 = vadd.f32 %v442, %v1978
        %v3003 = vadd.f32 %v443, %v1979
        %v3004 = vadd.f32 %v444, %v1980
        %v3005 = vadd.f32 %v445, %v1981
        %v3006 = vadd.f32 %v446, %v1982
        %v3007 = vadd.f32 %v447, %v1983
        %v3008 = vadd.f32 %v448, %v1984
        %v3009 = vadd.f32 %v449, %v1985
        %v3010 = vadd.f32 %v450, %v1986
        %v3011 = vadd.f32 %v451, %v1987
        %v3012 = vadd.f32 %v452, %v1988
        %v3013 = vadd.f32 %v453, %v1989
        %v3014 = vadd.f32 %v454, %v1990
        %v3015 = vadd.f32 %v455, %v1991
        %v3016 = vadd.f32 %v456, %v1992
        %v3017 = vadd.f32 %v457, %v1993
        %v3018 = vadd.f32 %v458, %v1994
        %v3019 = vadd.f32 %v459, %v1995
        %v3020 = vadd.f32 %v460, %v1996
        %v3021 = vadd.f32 %v461, %v1997
        %v3022 = vadd.f32 %v462, %v1998
        %v3023 = vadd.f32 %v463, %v1999
        %v3024 = vadd.f32 %v464, %v2000
        %v3025 = vadd.f32 %v465, %v2001
        %v3026 = vadd.f32 %v466, %v2002
        %v3027 = vadd.f32 %v467, %v2003
        %v3028 = vadd.f32 %v468, %v2004
        %v3029 = vadd.f32 %v469, %v2005
        %v3030 = vadd.f32 %v470, %v2006
        %v3031 = vadd.f32 %v471, %v2007
        %v3032 = vadd.f32 %v472, %v2008
        %v3033 = vadd.f32 %v473, %v2009
        %v3034 = vadd.f32 %v474, %v2010
        %v3035 = vadd.f32 %v475, %v2011
        %v3036 = vadd.f32 %v476, %v2012
        %v3037 = vadd.f32 %v477, %v2013
        %v3038 = vadd.f32 %v478, %v2014
        %v3039 = vadd.f32 %v479, %v2015
        %v3040 = vadd.f32 %v480, %v2016
        %v3041 = vadd.f32 %v481, %v2017
        %v3042 = vadd.f32 %v482, %v2018
        %v3043 = vadd.f32 %v483, %v2019
        %v3044 = vadd.f32 %v484, %v2020
        %v3045 = vadd.f32 %v485, %v2021
        %v3046 = vadd.f32 %v486, %v2022
        %v3047 = vadd.f32 %v487, %v2023
        %v3048 = vadd.f32 %v488, %v2024
        %v3049 = vadd.f32 %v489, %v2025
        %v3050 = vadd.f32 %v490, %v2026
        %v3051 = vadd.f32 %v491, %v2027
        %v3052 = vadd.f32 %v492, %v2028
        %v3053 = vadd.f32 %v493, %v2029
        %v3054 = vadd.f32 %v494, %v2030
        %v3055 = vadd.f32 %v495, %v2031
        %v3056 = vadd.f32 %v496, %v2032
        %v3057 = vadd.f32 %v497, %v2033
        %v3058 = vadd.f32 %v498, %v2034
        %v3059 = vadd.f32 %v499, %v2035
        %v3060 = vadd.f32 %v500, %v2036
        %v3061 = vadd.f32 %v501, %v2037
        %v3062 = vadd.f32 %v502, %v2038
        %v3063 = vadd.f32 %v503, %v2039
        %v3064 = vadd.f32 %v504, %v2040
        %v3065 = vadd.f32 %v505, %v2041
        %v3066 = vadd.f32 %v506, %v2042
        %v3067 = vadd.f32 %v507, %v2043
        %v3068 = vadd.f32 %v508, %v2044
        %v3069 = vadd.f32 %v509, %v2045
        %v3070 = vadd.f32 %v510, %v2046
        %v3071 = vadd.f32 %v511, %v2047
        %v3072 = vadd.f32 %v512, %v2048
        %v3073 = vadd.f32 %v513, %v2049
        %v3074 = vadd.f32 %v514, %v2050
        %v3075 = vadd.f32 %v515, %v2051
        %v3076 = vadd.f32 %v516, %v2052
        %v3077 = vadd.f32 %v517, %v2053
        %v3078 = vadd.f32 %v518, %v2054
        %v3079 = vadd.f32 %v519, %v2055
        %v3080 = vadd.f32 %v520, %v2056
        %v3081 = vadd.f32 %v521, %v2057
        %v3082 = vadd.f32 %v522, %v2058
        %v3083 = vadd.f32 %v523, %v2059
        %v3084 = vadd.f32 %v524, %v2060
        %v3085 = vadd.f32 %v525, %v2061
        %v3086 = vadd.f32 %v526, %v2062
        %v3087 = vadd.f32 %v527, %v2063
        %v3088 = vadd.f32 %v528, %v2064
        %v3089 = vadd.f32 %v529, %v2065
        %v3090 = vadd.f32 %v530, %v2066
        %v3091 = vadd.f32 %v531, %v2067
        %v3092 = vadd.f32 %v532, %v2068
        %v3093 = vadd.f32 %v533, %v2069
        %v3094 = vadd.f32 %v534, %v2070
        %v3095 = vadd.f32 %v535, %v2071
        %v3096 = vadd.f32 %v536, %v2072
        %v3097 = vadd.f32 %v537, %v2073
        %v3098 = vadd.f32 %v538, %v2074
        %v3099 = vadd.f32 %v539, %v2075
        %v3100 = vadd.f32 %v540, %v2076
        %v3101 = vadd.f32 %v541, %v2077
        %v3102 = vadd.f32 %v542, %v2078
        %v3103 = vadd.f32 %v543, %v2079
        %v3104 = vadd.f32 %v544, %v2080
        %v3105 = vadd.f32 %v545, %v2081
        %v3106 = vadd.f32 %v546, %v2082
        %v3107 = vadd.f32 %v547, %v2083
        %v3108 = vadd.f32 %v548, %v2084
        %v3109 = vadd.f32 %v549, %v2085
        %v3110 = vadd.f32 %v550, %v2086
        %v3111 = vadd.f32 %v551, %v2087
        %v3112 = vadd.f32 %v552, %v2088
        %v3113 = vadd.f32 %v553, %v2089
        %v3114 = vadd.f32 %v554, %v2090
        %v3115 = vadd.f32 %v555, %v2091
        %v3116 = vadd.f32 %v556, %v2092
        %v3117 = vadd.f32 %v557, %v2093
        %v3118 = vadd.f32 %v558, %v2094
        %v3119 = vadd.f32 %v559, %v2095
        %v3120 = vadd.f32 %v560, %v2096
        %v3121 = vadd.f32 %v561, %v2097
        %v3122 = vadd.f32 %v562, %v2098
        %v3123 = vadd.f32 %v563, %v2099
        %v3124 = vadd.f32 %v564, %v2100
        %v3125 = vadd.f32 %v565, %v2101
        %v3126 = vadd.f32 %v566, %v2102
        %v3127 = vadd.f32 %v567, %v2103
        %v3128 = vadd.f32 %v568, %v2104
        %v3129 = vadd.f32 %v569, %v2105
        %v3130 = vadd.f32 %v570, %v2106
        %v3131 = vadd.f32 %v571, %v2107
        %v3132 = vadd.f32 %v572, %v2108
        %v3133 = vadd.f32 %v573, %v2109
        %v3134 = vadd.f32 %v574, %v2110
        %v3135 = vadd.f32 %v575, %v2111
        %v3136 = vadd.f32 %v576, %v2112
        %v3137 = vadd.f32 %v577, %v2113
        %v3138 = vadd.f32 %v578, %v2114
        %v3139 = vadd.f32 %v579, %v2115
        %v3140 = vadd.f32 %v580, %v2116
        %v3141 = vadd.f32 %v581, %v2117
        %v3142 = vadd.f32 %v582, %v2118
        %v3143 = vadd.f32 %v583, %v2119
        %v3144 = vadd.f32 %v584, %v2120
        %v3145 = vadd.f32 %v585, %v2121
        %v3146 = vadd.f32 %v586, %v2122
        %v3147 = vadd.f32 %v587, %v2123
        %v3148 = vadd.f32 %v588, %v2124
        %v3149 = vadd.f32 %v589, %v2125
        %v3150 = vadd.f32 %v590, %v2126
        %v3151 = vadd.f32 %v591, %v2127
        %v3152 = vadd.f32 %v592, %v2128
        %v3153 = vadd.f32 %v593, %v2129
        %v3154 = vadd.f32 %v594, %v2130
        %v3155 = vadd.f32 %v595, %v2131
        %v3156 = vadd.f32 %v596, %v2132
        %v3157 = vadd.f32 %v597, %v2133
        %v3158 = vadd.f32 %v598, %v2134
        %v3159 = vadd.f32 %v599, %v2135
        %v3160 = vadd.f32 %v600, %v2136
        %v3161 = vadd.f32 %v601, %v2137
        %v3162 = vadd.f32 %v602, %v2138
        %v3163 = vadd.f32 %v603, %v2139
        %v3164 = vadd.f32 %v604, %v2140
        %v3165 = vadd.f32 %v605, %v2141
        %v3166 = vadd.f32 %v606, %v2142
        %v3167 = vadd.f32 %v607, %v2143
        %v3168 = vadd.f32 %v608, %v2144
        %v3169 = vadd.f32 %v609, %v2145
        %v3170 = vadd.f32 %v610, %v2146
        %v3171 = vadd.f32 %v611, %v2147
        %v3172 = vadd.f32 %v612, %v2148
        %v3173 = vadd.f32 %v613, %v2149
        %v3174 = vadd.f32 %v614, %v2150
        %v3175 = vadd.f32 %v615, %v2151
        %v3176 = vadd.f32 %v616, %v2152
        %v3177 = vadd.f32 %v617, %v2153
        %v3178 = vadd.f32 %v618, %v2154
        %v3179 = vadd.f32 %v619, %v2155
        %v3180 = vadd.f32 %v620, %v2156
        %v3181 = vadd.f32 %v621, %v2157
        %v3182 = vadd.f32 %v622, %v2158
        %v3183 = vadd.f32 %v623, %v2159
        %v3184 = vadd.f32 %v624, %v2160
        %v3185 = vadd.f32 %v625, %v2161
        %v3186 = vadd.f32 %v626, %v2162
        %v3187 = vadd.f32 %v627, %v2163
        %v3188 = vadd.f32 %v628, %v2164
        %v3189 = vadd.f32 %v629, %v2165
        %v3190 = vadd.f32 %v630, %v2166
        %v3191 = vadd.f32 %v631, %v2167
        %v3192 = vadd.f32 %v632, %v2168
        %v3193 = vadd.f32 %v633, %v2169
        %v3194 = vadd.f32 %v634, %v2170
        %v3195 = vadd.f32 %v635, %v2171
        %v3196 = vadd.f32 %v636, %v2172
        %v3197 = vadd.f32 %v637, %v2173
        %v3198 = vadd.f32 %v638, %v2174
        %v3199 = vadd.f32 %v639, %v2175
        %v3200 = vadd.f32 %v640, %v2176
        %v3201 = vadd.f32 %v641, %v2177
        %v3202 = vadd.f32 %v642, %v2178
        %v3203 = vadd.f32 %v643, %v2179
        %v3204 = vadd.f32 %v644, %v2180
        %v3205 = vadd.f32 %v645, %v2181
        %v3206 = vadd.f32 %v646, %v2182
        %v3207 = vadd.f32 %v647, %v2183
        %v3208 = vadd.f32 %v648, %v2184
        %v3209 = vadd.f32 %v649, %v2185
        %v3210 = vadd.f32 %v650, %v2186
        %v3211 = vadd.f32 %v651, %v2187
        %v3212 = vadd.f32 %v652, %v2188
        %v3213 = vadd.f32 %v653, %v2189
        %v3214 = vadd.f32 %v654, %v2190
        %v3215 = vadd.f32 %v655, %v2191
        %v3216 = vadd.f32 %v656, %v2192
        %v3217 = vadd.f32 %v657, %v2193
        %v3218 = vadd.f32 %v658, %v2194
        %v3219 = vadd.f32 %v659, %v2195
        %v3220 = vadd.f32 %v660, %v2196
        %v3221 = vadd.f32 %v661, %v2197
        %v3222 = vadd.f32 %v662, %v2198
        %v3223 = vadd.f32 %v663, %v2199
        %v3224 = vadd.f32 %v664, %v2200
        %v3225 = vadd.f32 %v665, %v2201
        %v3226 = vadd.f32 %v666, %v2202
        %v3227 = vadd.f32 %v667, %v2203
        %v3228 = vadd.f32 %v668, %v2204
        %v3229 = vadd.f32 %v669, %v2205
        %v3230 = vadd.f32 %v670, %v2206
        %v3231 = vadd.f32 %v671, %v2207
        %v3232 = vadd.f32 %v672, %v2208
        %v3233 = vadd.f32 %v673, %v2209
        %v3234 = vadd.f32 %v674, %v2210
        %v3235 = vadd.f32 %v675, %v2211
        %v3236 = vadd.f32 %v676, %v2212
        %v3237 = vadd.f32 %v677, %v2213
        %v3238 = vadd.f32 %v678, %v2214
        %v3239 = vadd.f32 %v679, %v2215
        %v3240 = vadd.f32 %v680, %v2216
        %v3241 = vadd.f32 %v681, %v2217
        %v3242 = vadd.f32 %v682, %v2218
        %v3243 = vadd.f32 %v683, %v2219
        %v3244 = vadd.f32 %v684, %v2220
        %v3245 = vadd.f32 %v685, %v2221
        %v3246 = vadd.f32 %v686, %v2222
        %v3247 = vadd.f32 %v687, %v2223
        %v3248 = vadd.f32 %v688, %v2224
        %v3249 = vadd.f32 %v689, %v2225
        %v3250 = vadd.f32 %v690, %v2226
        %v3251 = vadd.f32 %v691, %v2227
        %v3252 = vadd.f32 %v692, %v2228
        %v3253 = vadd.f32 %v693, %v2229
        %v3254 = vadd.f32 %v694, %v2230
        %v3255 = vadd.f32 %v695, %v2231
        %v3256 = vadd.f32 %v696, %v2232
        %v3257 = vadd.f32 %v697, %v2233
        %v3258 = vadd.f32 %v698, %v2234
        %v3259 = vadd.f32 %v699, %v2235
        %v3260 = vadd.f32 %v700, %v2236
        %v3261 = vadd.f32 %v701, %v2237
        %v3262 = vadd.f32 %v702, %v2238
        %v3263 = vadd.f32 %v703, %v2239
        %v3264 = vadd.f32 %v704, %v2240
        %v3265 = vadd.f32 %v705, %v2241
        %v3266 = vadd.f32 %v706, %v2242
        %v3267 = vadd.f32 %v707, %v2243
        %v3268 = vadd.f32 %v708, %v2244
        %v3269 = vadd.f32 %v709, %v2245
        %v3270 = vadd.f32 %v710, %v2246
        %v3271 = vadd.f32 %v711, %v2247
        %v3272 = vadd.f32 %v712, %v2248
        %v3273 = vadd.f32 %v713, %v2249
        %v3274 = vadd.f32 %v714, %v2250
        %v3275 = vadd.f32 %v715, %v2251
        %v3276 = vadd.f32 %v716, %v2252
        %v3277 = vadd.f32 %v717, %v2253
        %v3278 = vadd.f32 %v718, %v2254
        %v3279 = vadd.f32 %v719, %v2255
        %3280 = vst [vmem:[%s204] sm:$0xff] %v2768
        %3281 = vst [vmem:[%s204 + $0x8] sm:$0xff] %v2769
        %3282 = vst [vmem:[%s204 + $0x10] sm:$0xff] %v2770
        %3283 = vst [vmem:[%s204 + $0x18] sm:$0xff] %v2771
        %3284 = vst [vmem:[%s204 + $0x20] sm:$0xff] %v2772
        %3285 = vst [vmem:[%s204 + $0x28] sm:$0xff] %v2773
        %3286 = vst [vmem:[%s204 + $0x30] sm:$0xff] %v2774
        %3287 = vst [vmem:[%s204 + $0x38] sm:$0xff] %v2775
        %3288 = vst [vmem:[%s204 + $0x40] sm:$0xff] %v2776
        %3289 = vst [vmem:[%s204 + $0x48] sm:$0xff] %v2777
        %3290 = vst [vmem:[%s204 + $0x50] sm:$0xff] %v2778
        %3291 = vst [vmem:[%s204 + $0x58] sm:$0xff] %v2779
        %3292 = vst [vmem:[%s204 + $0x60] sm:$0xff] %v2780
        %3293 = vst [vmem:[%s204 + $0x68] sm:$0xff] %v2781
        %3294 = vst [vmem:[%s204 + $0x70] sm:$0xff] %v2782
        %3295 = vst [vmem:[%s204 + $0x78] sm:$0xff] %v2783
        %3296 = vst [vmem:[%s204 + $0x80] sm:$0xff] %v2784
        %3297 = vst [vmem:[%s204 + $0x88] sm:$0xff] %v2785
        %3298 = vst [vmem:[%s204 + $0x90] sm:$0xff] %v2786
        %3299 = vst [vmem:[%s204 + $0x98] sm:$0xff] %v2787
        %3300 = vst [vmem:[%s204 + $0xa0] sm:$0xff] %v2788
        %3301 = vst [vmem:[%s204 + $0xa8] sm:$0xff] %v2789
        %3302 = vst [vmem:[%s204 + $0xb0] sm:$0xff] %v2790
        %3303 = vst [vmem:[%s204 + $0xb8] sm:$0xff] %v2791
        %3304 = vst [vmem:[%s204 + $0xc0] sm:$0xff] %v2792
        %3305 = vst [vmem:[%s204 + $0xc8] sm:$0xff] %v2793
        %3306 = vst [vmem:[%s204 + $0xd0] sm:$0xff] %v2794
        %3307 = vst [vmem:[%s204 + $0xd8] sm:$0xff] %v2795
        %3308 = vst [vmem:[%s204 + $0xe0] sm:$0xff] %v2796
        %3309 = vst [vmem:[%s204 + $0xe8] sm:$0xff] %v2797
        %3310 = vst [vmem:[%s204 + $0xf0] sm:$0xff] %v2798
        %3311 = vst [vmem:[%s204 + $0xf8] sm:$0xff] %v2799
        %3312 = vst [vmem:[%s204 + $0x100] sm:$0xff] %v2800
        %3313 = vst [vmem:[%s204 + $0x108] sm:$0xff] %v2801
        %3314 = vst [vmem:[%s204 + $0x110] sm:$0xff] %v2802
        %3315 = vst [vmem:[%s204 + $0x118] sm:$0xff] %v2803
        %3316 = vst [vmem:[%s204 + $0x120] sm:$0xff] %v2804
        %3317 = vst [vmem:[%s204 + $0x128] sm:$0xff] %v2805
        %3318 = vst [vmem:[%s204 + $0x130] sm:$0xff] %v2806
        %3319 = vst [vmem:[%s204 + $0x138] sm:$0xff] %v2807
        %3320 = vst [vmem:[%s204 + $0x140] sm:$0xff] %v2808
        %3321 = vst [vmem:[%s204 + $0x148] sm:$0xff] %v2809
        %3322 = vst [vmem:[%s204 + $0x150] sm:$0xff] %v2810
        %3323 = vst [vmem:[%s204 + $0x158] sm:$0xff] %v2811
        %3324 = vst [vmem:[%s204 + $0x160] sm:$0xff] %v2812
        %3325 = vst [vmem:[%s204 + $0x168] sm:$0xff] %v2813
        %3326 = vst [vmem:[%s204 + $0x170] sm:$0xff] %v2814
        %3327 = vst [vmem:[%s204 + $0x178] sm:$0xff] %v2815
        %3328 = vst [vmem:[%s204 + $0x180] sm:$0xff] %v2816
        %3329 = vst [vmem:[%s204 + $0x188] sm:$0xff] %v2817
        %3330 = vst [vmem:[%s204 + $0x190] sm:$0xff] %v2818
        %3331 = vst [vmem:[%s204 + $0x198] sm:$0xff] %v2819
        %3332 = vst [vmem:[%s204 + $0x1a0] sm:$0xff] %v2820
        %3333 = vst [vmem:[%s204 + $0x1a8] sm:$0xff] %v2821
        %3334 = vst [vmem:[%s204 + $0x1b0] sm:$0xff] %v2822
        %3335 = vst [vmem:[%s204 + $0x1b8] sm:$0xff] %v2823
        %3336 = vst [vmem:[%s204 + $0x1c0] sm:$0xff] %v2824
        %3337 = vst [vmem:[%s204 + $0x1c8] sm:$0xff] %v2825
        %3338 = vst [vmem:[%s204 + $0x1d0] sm:$0xff] %v2826
        %3339 = vst [vmem:[%s204 + $0x1d8] sm:$0xff] %v2827
        %3340 = vst [vmem:[%s204 + $0x1e0] sm:$0xff] %v2828
        %3341 = vst [vmem:[%s204 + $0x1e8] sm:$0xff] %v2829
        %3342 = vst [vmem:[%s204 + $0x1f0] sm:$0xff] %v2830
        %3343 = vst [vmem:[%s204 + $0x1f8] sm:$0xff] %v2831
        %3344 = vst [vmem:[%s204 + $0x200] sm:$0xff] %v2832
        %3345 = vst [vmem:[%s204 + $0x208] sm:$0xff] %v2833
        %3346 = vst [vmem:[%s204 + $0x210] sm:$0xff] %v2834
        %3347 = vst [vmem:[%s204 + $0x218] sm:$0xff] %v2835
        %3348 = vst [vmem:[%s204 + $0x220] sm:$0xff] %v2836
        %3349 = vst [vmem:[%s204 + $0x228] sm:$0xff] %v2837
        %3350 = vst [vmem:[%s204 + $0x230] sm:$0xff] %v2838
        %3351 = vst [vmem:[%s204 + $0x238] sm:$0xff] %v2839
        %3352 = vst [vmem:[%s204 + $0x240] sm:$0xff] %v2840
        %3353 = vst [vmem:[%s204 + $0x248] sm:$0xff] %v2841
        %3354 = vst [vmem:[%s204 + $0x250] sm:$0xff] %v2842
        %3355 = vst [vmem:[%s204 + $0x258] sm:$0xff] %v2843
        %3356 = vst [vmem:[%s204 + $0x260] sm:$0xff] %v2844
        %3357 = vst [vmem:[%s204 + $0x268] sm:$0xff] %v2845
        %3358 = vst [vmem:[%s204 + $0x270] sm:$0xff] %v2846
        %3359 = vst [vmem:[%s204 + $0x278] sm:$0xff] %v2847
        %3360 = vst [vmem:[%s204 + $0x280] sm:$0xff] %v2848
        %3361 = vst [vmem:[%s204 + $0x288] sm:$0xff] %v2849
        %3362 = vst [vmem:[%s204 + $0x290] sm:$0xff] %v2850
        %3363 = vst [vmem:[%s204 + $0x298] sm:$0xff] %v2851
        %3364 = vst [vmem:[%s204 + $0x2a0] sm:$0xff] %v2852
        %3365 = vst [vmem:[%s204 + $0x2a8] sm:$0xff] %v2853
        %3366 = vst [vmem:[%s204 + $0x2b0] sm:$0xff] %v2854
        %3367 = vst [vmem:[%s204 + $0x2b8] sm:$0xff] %v2855
        %3368 = vst [vmem:[%s204 + $0x2c0] sm:$0xff] %v2856
        %3369 = vst [vmem:[%s204 + $0x2c8] sm:$0xff] %v2857
        %3370 = vst [vmem:[%s204 + $0x2d0] sm:$0xff] %v2858
        %3371 = vst [vmem:[%s204 + $0x2d8] sm:$0xff] %v2859
        %3372 = vst [vmem:[%s204 + $0x2e0] sm:$0xff] %v2860
        %3373 = vst [vmem:[%s204 + $0x2e8] sm:$0xff] %v2861
        %3374 = vst [vmem:[%s204 + $0x2f0] sm:$0xff] %v2862
        %3375 = vst [vmem:[%s204 + $0x2f8] sm:$0xff] %v2863
        %3376 = vst [vmem:[%s204 + $0x300] sm:$0xff] %v2864
        %3377 = vst [vmem:[%s204 + $0x308] sm:$0xff] %v2865
        %3378 = vst [vmem:[%s204 + $0x310] sm:$0xff] %v2866
        %3379 = vst [vmem:[%s204 + $0x318] sm:$0xff] %v2867
        %3380 = vst [vmem:[%s204 + $0x320] sm:$0xff] %v2868
        %3381 = vst [vmem:[%s204 + $0x328] sm:$0xff] %v2869
        %3382 = vst [vmem:[%s204 + $0x330] sm:$0xff] %v2870
        %3383 = vst [vmem:[%s204 + $0x338] sm:$0xff] %v2871
        %3384 = vst [vmem:[%s204 + $0x340] sm:$0xff] %v2872
        %3385 = vst [vmem:[%s204 + $0x348] sm:$0xff] %v2873
        %3386 = vst [vmem:[%s204 + $0x350] sm:$0xff] %v2874
        %3387 = vst [vmem:[%s204 + $0x358] sm:$0xff] %v2875
        %3388 = vst [vmem:[%s204 + $0x360] sm:$0xff] %v2876
        %3389 = vst [vmem:[%s204 + $0x368] sm:$0xff] %v2877
        %3390 = vst [vmem:[%s204 + $0x370] sm:$0xff] %v2878
        %3391 = vst [vmem:[%s204 + $0x378] sm:$0xff] %v2879
        %3392 = vst [vmem:[%s204 + $0x380] sm:$0xff] %v2880
        %3393 = vst [vmem:[%s204 + $0x388] sm:$0xff] %v2881
        %3394 = vst [vmem:[%s204 + $0x390] sm:$0xff] %v2882
        %3395 = vst [vmem:[%s204 + $0x398] sm:$0xff] %v2883
        %3396 = vst [vmem:[%s204 + $0x3a0] sm:$0xff] %v2884
        %3397 = vst [vmem:[%s204 + $0x3a8] sm:$0xff] %v2885
        %3398 = vst [vmem:[%s204 + $0x3b0] sm:$0xff] %v2886
        %3399 = vst [vmem:[%s204 + $0x3b8] sm:$0xff] %v2887
        %3400 = vst [vmem:[%s204 + $0x3c0] sm:$0xff] %v2888
        %3401 = vst [vmem:[%s204 + $0x3c8] sm:$0xff] %v2889
        %3402 = vst [vmem:[%s204 + $0x3d0] sm:$0xff] %v2890
        %3403 = vst [vmem:[%s204 + $0x3d8] sm:$0xff] %v2891
        %3404 = vst [vmem:[%s204 + $0x3e0] sm:$0xff] %v2892
        %3405 = vst [vmem:[%s204 + $0x3e8] sm:$0xff] %v2893
        %3406 = vst [vmem:[%s204 + $0x3f0] sm:$0xff] %v2894
        %3407 = vst [vmem:[%s204 + $0x3f8] sm:$0xff] %v2895
        %3408 = vst [vmem:[%s204 + $0x400] sm:$0xff] %v2896
        %3409 = vst [vmem:[%s204 + $0x408] sm:$0xff] %v2897
        %3410 = vst [vmem:[%s204 + $0x410] sm:$0xff] %v2898
        %3411 = vst [vmem:[%s204 + $0x418] sm:$0xff] %v2899
        %3412 = vst [vmem:[%s204 + $0x420] sm:$0xff] %v2900
        %3413 = vst [vmem:[%s204 + $0x428] sm:$0xff] %v2901
        %3414 = vst [vmem:[%s204 + $0x430] sm:$0xff] %v2902
        %3415 = vst [vmem:[%s204 + $0x438] sm:$0xff] %v2903
        %3416 = vst [vmem:[%s204 + $0x440] sm:$0xff] %v2904
        %3417 = vst [vmem:[%s204 + $0x448] sm:$0xff] %v2905
        %3418 = vst [vmem:[%s204 + $0x450] sm:$0xff] %v2906
        %3419 = vst [vmem:[%s204 + $0x458] sm:$0xff] %v2907
        %3420 = vst [vmem:[%s204 + $0x460] sm:$0xff] %v2908
        %3421 = vst [vmem:[%s204 + $0x468] sm:$0xff] %v2909
        %3422 = vst [vmem:[%s204 + $0x470] sm:$0xff] %v2910
        %3423 = vst [vmem:[%s204 + $0x478] sm:$0xff] %v2911
        %3424 = vst [vmem:[%s204 + $0x480] sm:$0xff] %v2912
        %3425 = vst [vmem:[%s204 + $0x488] sm:$0xff] %v2913
        %3426 = vst [vmem:[%s204 + $0x490] sm:$0xff] %v2914
        %3427 = vst [vmem:[%s204 + $0x498] sm:$0xff] %v2915
        %3428 = vst [vmem:[%s204 + $0x4a0] sm:$0xff] %v2916
        %3429 = vst [vmem:[%s204 + $0x4a8] sm:$0xff] %v2917
        %3430 = vst [vmem:[%s204 + $0x4b0] sm:$0xff] %v2918
        %3431 = vst [vmem:[%s204 + $0x4b8] sm:$0xff] %v2919
        %3432 = vst [vmem:[%s204 + $0x4c0] sm:$0xff] %v2920
        %3433 = vst [vmem:[%s204 + $0x4c8] sm:$0xff] %v2921
        %3434 = vst [vmem:[%s204 + $0x4d0] sm:$0xff] %v2922
        %3435 = vst [vmem:[%s204 + $0x4d8] sm:$0xff] %v2923
        %3436 = vst [vmem:[%s204 + $0x4e0] sm:$0xff] %v2924
        %3437 = vst [vmem:[%s204 + $0x4e8] sm:$0xff] %v2925
        %3438 = vst [vmem:[%s204 + $0x4f0] sm:$0xff] %v2926
        %3439 = vst [vmem:[%s204 + $0x4f8] sm:$0xff] %v2927
        %3440 = vst [vmem:[%s204 + $0x500] sm:$0xff] %v2928
        %3441 = vst [vmem:[%s204 + $0x508] sm:$0xff] %v2929
        %3442 = vst [vmem:[%s204 + $0x510] sm:$0xff] %v2930
        %3443 = vst [vmem:[%s204 + $0x518] sm:$0xff] %v2931
        %3444 = vst [vmem:[%s204 + $0x520] sm:$0xff] %v2932
        %3445 = vst [vmem:[%s204 + $0x528] sm:$0xff] %v2933
        %3446 = vst [vmem:[%s204 + $0x530] sm:$0xff] %v2934
        %3447 = vst [vmem:[%s204 + $0x538] sm:$0xff] %v2935
        %3448 = vst [vmem:[%s204 + $0x540] sm:$0xff] %v2936
        %3449 = vst [vmem:[%s204 + $0x548] sm:$0xff] %v2937
        %3450 = vst [vmem:[%s204 + $0x550] sm:$0xff] %v2938
        %3451 = vst [vmem:[%s204 + $0x558] sm:$0xff] %v2939
        %3452 = vst [vmem:[%s204 + $0x560] sm:$0xff] %v2940
        %3453 = vst [vmem:[%s204 + $0x568] sm:$0xff] %v2941
        %3454 = vst [vmem:[%s204 + $0x570] sm:$0xff] %v2942
        %3455 = vst [vmem:[%s204 + $0x578] sm:$0xff] %v2943
        %3456 = vst [vmem:[%s204 + $0x580] sm:$0xff] %v2944
        %3457 = vst [vmem:[%s204 + $0x588] sm:$0xff] %v2945
        %3458 = vst [vmem:[%s204 + $0x590] sm:$0xff] %v2946
        %3459 = vst [vmem:[%s204 + $0x598] sm:$0xff] %v2947
        %3460 = vst [vmem:[%s204 + $0x5a0] sm:$0xff] %v2948
        %3461 = vst [vmem:[%s204 + $0x5a8] sm:$0xff] %v2949
        %3462 = vst [vmem:[%s204 + $0x5b0] sm:$0xff] %v2950
        %3463 = vst [vmem:[%s204 + $0x5b8] sm:$0xff] %v2951
        %3464 = vst [vmem:[%s204 + $0x5c0] sm:$0xff] %v2952
        %3465 = vst [vmem:[%s204 + $0x5c8] sm:$0xff] %v2953
        %3466 = vst [vmem:[%s204 + $0x5d0] sm:$0xff] %v2954
        %3467 = vst [vmem:[%s204 + $0x5d8] sm:$0xff] %v2955
        %3468 = vst [vmem:[%s204 + $0x5e0] sm:$0xff] %v2956
        %3469 = vst [vmem:[%s204 + $0x5e8] sm:$0xff] %v2957
        %3470 = vst [vmem:[%s204 + $0x5f0] sm:$0xff] %v2958
        %3471 = vst [vmem:[%s204 + $0x5f8] sm:$0xff] %v2959
        %3472 = vst [vmem:[%s204 + $0x600] sm:$0xff] %v2960
        %3473 = vst [vmem:[%s204 + $0x608] sm:$0xff] %v2961
        %3474 = vst [vmem:[%s204 + $0x610] sm:$0xff] %v2962
        %3475 = vst [vmem:[%s204 + $0x618] sm:$0xff] %v2963
        %3476 = vst [vmem:[%s204 + $0x620] sm:$0xff] %v2964
        %3477 = vst [vmem:[%s204 + $0x628] sm:$0xff] %v2965
        %3478 = vst [vmem:[%s204 + $0x630] sm:$0xff] %v2966
        %3479 = vst [vmem:[%s204 + $0x638] sm:$0xff] %v2967
        %3480 = vst [vmem:[%s204 + $0x640] sm:$0xff] %v2968
        %3481 = vst [vmem:[%s204 + $0x648] sm:$0xff] %v2969
        %3482 = vst [vmem:[%s204 + $0x650] sm:$0xff] %v2970
        %3483 = vst [vmem:[%s204 + $0x658] sm:$0xff] %v2971
        %3484 = vst [vmem:[%s204 + $0x660] sm:$0xff] %v2972
        %3485 = vst [vmem:[%s204 + $0x668] sm:$0xff] %v2973
        %3486 = vst [vmem:[%s204 + $0x670] sm:$0xff] %v2974
        %3487 = vst [vmem:[%s204 + $0x678] sm:$0xff] %v2975
        %3488 = vst [vmem:[%s204 + $0x680] sm:$0xff] %v2976
        %3489 = vst [vmem:[%s204 + $0x688] sm:$0xff] %v2977
        %3490 = vst [vmem:[%s204 + $0x690] sm:$0xff] %v2978
        %3491 = vst [vmem:[%s204 + $0x698] sm:$0xff] %v2979
        %3492 = vst [vmem:[%s204 + $0x6a0] sm:$0xff] %v2980
        %3493 = vst [vmem:[%s204 + $0x6a8] sm:$0xff] %v2981
        %3494 = vst [vmem:[%s204 + $0x6b0] sm:$0xff] %v2982
        %3495 = vst [vmem:[%s204 + $0x6b8] sm:$0xff] %v2983
        %3496 = vst [vmem:[%s204 + $0x6c0] sm:$0xff] %v2984
        %3497 = vst [vmem:[%s204 + $0x6c8] sm:$0xff] %v2985
        %3498 = vst [vmem:[%s204 + $0x6d0] sm:$0xff] %v2986
        %3499 = vst [vmem:[%s204 + $0x6d8] sm:$0xff] %v2987
        %3500 = vst [vmem:[%s204 + $0x6e0] sm:$0xff] %v2988
        %3501 = vst [vmem:[%s204 + $0x6e8] sm:$0xff] %v2989
        %3502 = vst [vmem:[%s204 + $0x6f0] sm:$0xff] %v2990
        %3503 = vst [vmem:[%s204 + $0x6f8] sm:$0xff] %v2991
        %3504 = vst [vmem:[%s204 + $0x700] sm:$0xff] %v2992
        %3505 = vst [vmem:[%s204 + $0x708] sm:$0xff] %v2993
        %3506 = vst [vmem:[%s204 + $0x710] sm:$0xff] %v2994
        %3507 = vst [vmem:[%s204 + $0x718] sm:$0xff] %v2995
        %3508 = vst [vmem:[%s204 + $0x720] sm:$0xff] %v2996
        %3509 = vst [vmem:[%s204 + $0x728] sm:$0xff] %v2997
        %3510 = vst [vmem:[%s204 + $0x730] sm:$0xff] %v2998
        %3511 = vst [vmem:[%s204 + $0x738] sm:$0xff] %v2999
        %3512 = vst [vmem:[%s204 + $0x740] sm:$0xff] %v3000
        %3513 = vst [vmem:[%s204 + $0x748] sm:$0xff] %v3001
        %3514 = vst [vmem:[%s204 + $0x750] sm:$0xff] %v3002
        %3515 = vst [vmem:[%s204 + $0x758] sm:$0xff] %v3003
        %3516 = vst [vmem:[%s204 + $0x760] sm:$0xff] %v3004
        %3517 = vst [vmem:[%s204 + $0x768] sm:$0xff] %v3005
        %3518 = vst [vmem:[%s204 + $0x770] sm:$0xff] %v3006
        %3519 = vst [vmem:[%s204 + $0x778] sm:$0xff] %v3007
        %3520 = vst [vmem:[%s204 + $0x780] sm:$0xff] %v3008
        %3521 = vst [vmem:[%s204 + $0x788] sm:$0xff] %v3009
        %3522 = vst [vmem:[%s204 + $0x790] sm:$0xff] %v3010
        %3523 = vst [vmem:[%s204 + $0x798] sm:$0xff] %v3011
        %3524 = vst [vmem:[%s204 + $0x7a0] sm:$0xff] %v3012
        %3525 = vst [vmem:[%s204 + $0x7a8] sm:$0xff] %v3013
        %3526 = vst [vmem:[%s204 + $0x7b0] sm:$0xff] %v3014
        %3527 = vst [vmem:[%s204 + $0x7b8] sm:$0xff] %v3015
        %3528 = vst [vmem:[%s204 + $0x7c0] sm:$0xff] %v3016
        %3529 = vst [vmem:[%s204 + $0x7c8] sm:$0xff] %v3017
        %3530 = vst [vmem:[%s204 + $0x7d0] sm:$0xff] %v3018
        %3531 = vst [vmem:[%s204 + $0x7d8] sm:$0xff] %v3019
        %3532 = vst [vmem:[%s204 + $0x7e0] sm:$0xff] %v3020
        %3533 = vst [vmem:[%s204 + $0x7e8] sm:$0xff] %v3021
        %3534 = vst [vmem:[%s204 + $0x7f0] sm:$0xff] %v3022
        %3535 = vst [vmem:[%s204 + $0x7f8] sm:$0xff] %v3023
        %3536 = vst [vmem:[%s204 + $0x800] sm:$0xff] %v3024
        %3537 = vst [vmem:[%s204 + $0x808] sm:$0xff] %v3025
        %3538 = vst [vmem:[%s204 + $0x810] sm:$0xff] %v3026
        %3539 = vst [vmem:[%s204 + $0x818] sm:$0xff] %v3027
        %3540 = vst [vmem:[%s204 + $0x820] sm:$0xff] %v3028
        %3541 = vst [vmem:[%s204 + $0x828] sm:$0xff] %v3029
        %3542 = vst [vmem:[%s204 + $0x830] sm:$0xff] %v3030
        %3543 = vst [vmem:[%s204 + $0x838] sm:$0xff] %v3031
        %3544 = vst [vmem:[%s204 + $0x840] sm:$0xff] %v3032
        %3545 = vst [vmem:[%s204 + $0x848] sm:$0xff] %v3033
        %3546 = vst [vmem:[%s204 + $0x850] sm:$0xff] %v3034
        %3547 = vst [vmem:[%s204 + $0x858] sm:$0xff] %v3035
        %3548 = vst [vmem:[%s204 + $0x860] sm:$0xff] %v3036
        %3549 = vst [vmem:[%s204 + $0x868] sm:$0xff] %v3037
        %3550 = vst [vmem:[%s204 + $0x870] sm:$0xff] %v3038
        %3551 = vst [vmem:[%s204 + $0x878] sm:$0xff] %v3039
        %3552 = vst [vmem:[%s204 + $0x880] sm:$0xff] %v3040
        %3553 = vst [vmem:[%s204 + $0x888] sm:$0xff] %v3041
        %3554 = vst [vmem:[%s204 + $0x890] sm:$0xff] %v3042
        %3555 = vst [vmem:[%s204 + $0x898] sm:$0xff] %v3043
        %3556 = vst [vmem:[%s204 + $0x8a0] sm:$0xff] %v3044
        %3557 = vst [vmem:[%s204 + $0x8a8] sm:$0xff] %v3045
        %3558 = vst [vmem:[%s204 + $0x8b0] sm:$0xff] %v3046
        %3559 = vst [vmem:[%s204 + $0x8b8] sm:$0xff] %v3047
        %3560 = vst [vmem:[%s204 + $0x8c0] sm:$0xff] %v3048
        %3561 = vst [vmem:[%s204 + $0x8c8] sm:$0xff] %v3049
        %3562 = vst [vmem:[%s204 + $0x8d0] sm:$0xff] %v3050
        %3563 = vst [vmem:[%s204 + $0x8d8] sm:$0xff] %v3051
        %3564 = vst [vmem:[%s204 + $0x8e0] sm:$0xff] %v3052
        %3565 = vst [vmem:[%s204 + $0x8e8] sm:$0xff] %v3053
        %3566 = vst [vmem:[%s204 + $0x8f0] sm:$0xff] %v3054
        %3567 = vst [vmem:[%s204 + $0x8f8] sm:$0xff] %v3055
        %3568 = vst [vmem:[%s204 + $0x900] sm:$0xff] %v3056
        %3569 = vst [vmem:[%s204 + $0x908] sm:$0xff] %v3057
        %3570 = vst [vmem:[%s204 + $0x910] sm:$0xff] %v3058
        %3571 = vst [vmem:[%s204 + $0x918] sm:$0xff] %v3059
        %3572 = vst [vmem:[%s204 + $0x920] sm:$0xff] %v3060
        %3573 = vst [vmem:[%s204 + $0x928] sm:$0xff] %v3061
        %3574 = vst [vmem:[%s204 + $0x930] sm:$0xff] %v3062
        %3575 = vst [vmem:[%s204 + $0x938] sm:$0xff] %v3063
        %3576 = vst [vmem:[%s204 + $0x940] sm:$0xff] %v3064
        %3577 = vst [vmem:[%s204 + $0x948] sm:$0xff] %v3065
        %3578 = vst [vmem:[%s204 + $0x950] sm:$0xff] %v3066
        %3579 = vst [vmem:[%s204 + $0x958] sm:$0xff] %v3067
        %3580 = vst [vmem:[%s204 + $0x960] sm:$0xff] %v3068
        %3581 = vst [vmem:[%s204 + $0x968] sm:$0xff] %v3069
        %3582 = vst [vmem:[%s204 + $0x970] sm:$0xff] %v3070
        %3583 = vst [vmem:[%s204 + $0x978] sm:$0xff] %v3071
        %3584 = vst [vmem:[%s204 + $0x980] sm:$0xff] %v3072
        %3585 = vst [vmem:[%s204 + $0x988] sm:$0xff] %v3073
        %3586 = vst [vmem:[%s204 + $0x990] sm:$0xff] %v3074
        %3587 = vst [vmem:[%s204 + $0x998] sm:$0xff] %v3075
        %3588 = vst [vmem:[%s204 + $0x9a0] sm:$0xff] %v3076
        %3589 = vst [vmem:[%s204 + $0x9a8] sm:$0xff] %v3077
        %3590 = vst [vmem:[%s204 + $0x9b0] sm:$0xff] %v3078
        %3591 = vst [vmem:[%s204 + $0x9b8] sm:$0xff] %v3079
        %3592 = vst [vmem:[%s204 + $0x9c0] sm:$0xff] %v3080
        %3593 = vst [vmem:[%s204 + $0x9c8] sm:$0xff] %v3081
        %3594 = vst [vmem:[%s204 + $0x9d0] sm:$0xff] %v3082
        %3595 = vst [vmem:[%s204 + $0x9d8] sm:$0xff] %v3083
        %3596 = vst [vmem:[%s204 + $0x9e0] sm:$0xff] %v3084
        %3597 = vst [vmem:[%s204 + $0x9e8] sm:$0xff] %v3085
        %3598 = vst [vmem:[%s204 + $0x9f0] sm:$0xff] %v3086
        %3599 = vst [vmem:[%s204 + $0x9f8] sm:$0xff] %v3087
        %3600 = vst [vmem:[%s204 + $0xa00] sm:$0xff] %v3088
        %3601 = vst [vmem:[%s204 + $0xa08] sm:$0xff] %v3089
        %3602 = vst [vmem:[%s204 + $0xa10] sm:$0xff] %v3090
        %3603 = vst [vmem:[%s204 + $0xa18] sm:$0xff] %v3091
        %3604 = vst [vmem:[%s204 + $0xa20] sm:$0xff] %v3092
        %3605 = vst [vmem:[%s204 + $0xa28] sm:$0xff] %v3093
        %3606 = vst [vmem:[%s204 + $0xa30] sm:$0xff] %v3094
        %3607 = vst [vmem:[%s204 + $0xa38] sm:$0xff] %v3095
        %3608 = vst [vmem:[%s204 + $0xa40] sm:$0xff] %v3096
        %3609 = vst [vmem:[%s204 + $0xa48] sm:$0xff] %v3097
        %3610 = vst [vmem:[%s204 + $0xa50] sm:$0xff] %v3098
        %3611 = vst [vmem:[%s204 + $0xa58] sm:$0xff] %v3099
        %3612 = vst [vmem:[%s204 + $0xa60] sm:$0xff] %v3100
        %3613 = vst [vmem:[%s204 + $0xa68] sm:$0xff] %v3101
        %3614 = vst [vmem:[%s204 + $0xa70] sm:$0xff] %v3102
        %3615 = vst [vmem:[%s204 + $0xa78] sm:$0xff] %v3103
        %3616 = vst [vmem:[%s204 + $0xa80] sm:$0xff] %v3104
        %3617 = vst [vmem:[%s204 + $0xa88] sm:$0xff] %v3105
        %3618 = vst [vmem:[%s204 + $0xa90] sm:$0xff] %v3106
        %3619 = vst [vmem:[%s204 + $0xa98] sm:$0xff] %v3107
        %3620 = vst [vmem:[%s204 + $0xaa0] sm:$0xff] %v3108
        %3621 = vst [vmem:[%s204 + $0xaa8] sm:$0xff] %v3109
        %3622 = vst [vmem:[%s204 + $0xab0] sm:$0xff] %v3110
        %3623 = vst [vmem:[%s204 + $0xab8] sm:$0xff] %v3111
        %3624 = vst [vmem:[%s204 + $0xac0] sm:$0xff] %v3112
        %3625 = vst [vmem:[%s204 + $0xac8] sm:$0xff] %v3113
        %3626 = vst [vmem:[%s204 + $0xad0] sm:$0xff] %v3114
        %3627 = vst [vmem:[%s204 + $0xad8] sm:$0xff] %v3115
        %3628 = vst [vmem:[%s204 + $0xae0] sm:$0xff] %v3116
        %3629 = vst [vmem:[%s204 + $0xae8] sm:$0xff] %v3117
        %3630 = vst [vmem:[%s204 + $0xaf0] sm:$0xff] %v3118
        %3631 = vst [vmem:[%s204 + $0xaf8] sm:$0xff] %v3119
        %3632 = vst [vmem:[%s204 + $0xb00] sm:$0xff] %v3120
        %3633 = vst [vmem:[%s204 + $0xb08] sm:$0xff] %v3121
        %3634 = vst [vmem:[%s204 + $0xb10] sm:$0xff] %v3122
        %3635 = vst [vmem:[%s204 + $0xb18] sm:$0xff] %v3123
        %3636 = vst [vmem:[%s204 + $0xb20] sm:$0xff] %v3124
        %3637 = vst [vmem:[%s204 + $0xb28] sm:$0xff] %v3125
        %3638 = vst [vmem:[%s204 + $0xb30] sm:$0xff] %v3126
        %3639 = vst [vmem:[%s204 + $0xb38] sm:$0xff] %v3127
        %3640 = vst [vmem:[%s204 + $0xb40] sm:$0xff] %v3128
        %3641 = vst [vmem:[%s204 + $0xb48] sm:$0xff] %v3129
        %3642 = vst [vmem:[%s204 + $0xb50] sm:$0xff] %v3130
        %3643 = vst [vmem:[%s204 + $0xb58] sm:$0xff] %v3131
        %3644 = vst [vmem:[%s204 + $0xb60] sm:$0xff] %v3132
        %3645 = vst [vmem:[%s204 + $0xb68] sm:$0xff] %v3133
        %3646 = vst [vmem:[%s204 + $0xb70] sm:$0xff] %v3134
        %3647 = vst [vmem:[%s204 + $0xb78] sm:$0xff] %v3135
        %3648 = vst [vmem:[%s204 + $0xb80] sm:$0xff] %v3136
        %3649 = vst [vmem:[%s204 + $0xb88] sm:$0xff] %v3137
        %3650 = vst [vmem:[%s204 + $0xb90] sm:$0xff] %v3138
        %3651 = vst [vmem:[%s204 + $0xb98] sm:$0xff] %v3139
        %3652 = vst [vmem:[%s204 + $0xba0] sm:$0xff] %v3140
        %3653 = vst [vmem:[%s204 + $0xba8] sm:$0xff] %v3141
        %3654 = vst [vmem:[%s204 + $0xbb0] sm:$0xff] %v3142
        %3655 = vst [vmem:[%s204 + $0xbb8] sm:$0xff] %v3143
        %3656 = vst [vmem:[%s204 + $0xbc0] sm:$0xff] %v3144
        %3657 = vst [vmem:[%s204 + $0xbc8] sm:$0xff] %v3145
        %3658 = vst [vmem:[%s204 + $0xbd0] sm:$0xff] %v3146
        %3659 = vst [vmem:[%s204 + $0xbd8] sm:$0xff] %v3147
        %3660 = vst [vmem:[%s204 + $0xbe0] sm:$0xff] %v3148
        %3661 = vst [vmem:[%s204 + $0xbe8] sm:$0xff] %v3149
        %3662 = vst [vmem:[%s204 + $0xbf0] sm:$0xff] %v3150
        %3663 = vst [vmem:[%s204 + $0xbf8] sm:$0xff] %v3151
        %3664 = vst [vmem:[%s204 + $0xc00] sm:$0xff] %v3152
        %3665 = vst [vmem:[%s204 + $0xc08] sm:$0xff] %v3153
        %3666 = vst [vmem:[%s204 + $0xc10] sm:$0xff] %v3154
        %3667 = vst [vmem:[%s204 + $0xc18] sm:$0xff] %v3155
        %3668 = vst [vmem:[%s204 + $0xc20] sm:$0xff] %v3156
        %3669 = vst [vmem:[%s204 + $0xc28] sm:$0xff] %v3157
        %3670 = vst [vmem:[%s204 + $0xc30] sm:$0xff] %v3158
        %3671 = vst [vmem:[%s204 + $0xc38] sm:$0xff] %v3159
        %3672 = vst [vmem:[%s204 + $0xc40] sm:$0xff] %v3160
        %3673 = vst [vmem:[%s204 + $0xc48] sm:$0xff] %v3161
        %3674 = vst [vmem:[%s204 + $0xc50] sm:$0xff] %v3162
        %3675 = vst [vmem:[%s204 + $0xc58] sm:$0xff] %v3163
        %3676 = vst [vmem:[%s204 + $0xc60] sm:$0xff] %v3164
        %3677 = vst [vmem:[%s204 + $0xc68] sm:$0xff] %v3165
        %3678 = vst [vmem:[%s204 + $0xc70] sm:$0xff] %v3166
        %3679 = vst [vmem:[%s204 + $0xc78] sm:$0xff] %v3167
        %3680 = vst [vmem:[%s204 + $0xc80] sm:$0xff] %v3168
        %3681 = vst [vmem:[%s204 + $0xc88] sm:$0xff] %v3169
        %3682 = vst [vmem:[%s204 + $0xc90] sm:$0xff] %v3170
        %3683 = vst [vmem:[%s204 + $0xc98] sm:$0xff] %v3171
        %3684 = vst [vmem:[%s204 + $0xca0] sm:$0xff] %v3172
        %3685 = vst [vmem:[%s204 + $0xca8] sm:$0xff] %v3173
        %3686 = vst [vmem:[%s204 + $0xcb0] sm:$0xff] %v3174
        %3687 = vst [vmem:[%s204 + $0xcb8] sm:$0xff] %v3175
        %3688 = vst [vmem:[%s204 + $0xcc0] sm:$0xff] %v3176
        %3689 = vst [vmem:[%s204 + $0xcc8] sm:$0xff] %v3177
        %3690 = vst [vmem:[%s204 + $0xcd0] sm:$0xff] %v3178
        %3691 = vst [vmem:[%s204 + $0xcd8] sm:$0xff] %v3179
        %3692 = vst [vmem:[%s204 + $0xce0] sm:$0xff] %v3180
        %3693 = vst [vmem:[%s204 + $0xce8] sm:$0xff] %v3181
        %3694 = vst [vmem:[%s204 + $0xcf0] sm:$0xff] %v3182
        %3695 = vst [vmem:[%s204 + $0xcf8] sm:$0xff] %v3183
        %3696 = vst [vmem:[%s204 + $0xd00] sm:$0xff] %v3184
        %3697 = vst [vmem:[%s204 + $0xd08] sm:$0xff] %v3185
        %3698 = vst [vmem:[%s204 + $0xd10] sm:$0xff] %v3186
        %3699 = vst [vmem:[%s204 + $0xd18] sm:$0xff] %v3187
        %3700 = vst [vmem:[%s204 + $0xd20] sm:$0xff] %v3188
        %3701 = vst [vmem:[%s204 + $0xd28] sm:$0xff] %v3189
        %3702 = vst [vmem:[%s204 + $0xd30] sm:$0xff] %v3190
        %3703 = vst [vmem:[%s204 + $0xd38] sm:$0xff] %v3191
        %3704 = vst [vmem:[%s204 + $0xd40] sm:$0xff] %v3192
        %3705 = vst [vmem:[%s204 + $0xd48] sm:$0xff] %v3193
        %3706 = vst [vmem:[%s204 + $0xd50] sm:$0xff] %v3194
        %3707 = vst [vmem:[%s204 + $0xd58] sm:$0xff] %v3195
        %3708 = vst [vmem:[%s204 + $0xd60] sm:$0xff] %v3196
        %3709 = vst [vmem:[%s204 + $0xd68] sm:$0xff] %v3197
        %3710 = vst [vmem:[%s204 + $0xd70] sm:$0xff] %v3198
        %3711 = vst [vmem:[%s204 + $0xd78] sm:$0xff] %v3199
        %3712 = vst [vmem:[%s204 + $0xd80] sm:$0xff] %v3200
        %3713 = vst [vmem:[%s204 + $0xd88] sm:$0xff] %v3201
        %3714 = vst [vmem:[%s204 + $0xd90] sm:$0xff] %v3202
        %3715 = vst [vmem:[%s204 + $0xd98] sm:$0xff] %v3203
        %3716 = vst [vmem:[%s204 + $0xda0] sm:$0xff] %v3204
        %3717 = vst [vmem:[%s204 + $0xda8] sm:$0xff] %v3205
        %3718 = vst [vmem:[%s204 + $0xdb0] sm:$0xff] %v3206
        %3719 = vst [vmem:[%s204 + $0xdb8] sm:$0xff] %v3207
        %3720 = vst [vmem:[%s204 + $0xdc0] sm:$0xff] %v3208
        %3721 = vst [vmem:[%s204 + $0xdc8] sm:$0xff] %v3209
        %3722 = vst [vmem:[%s204 + $0xdd0] sm:$0xff] %v3210
        %3723 = vst [vmem:[%s204 + $0xdd8] sm:$0xff] %v3211
        %3724 = vst [vmem:[%s204 + $0xde0] sm:$0xff] %v3212
        %3725 = vst [vmem:[%s204 + $0xde8] sm:$0xff] %v3213
        %3726 = vst [vmem:[%s204 + $0xdf0] sm:$0xff] %v3214
        %3727 = vst [vmem:[%s204 + $0xdf8] sm:$0xff] %v3215
        %3728 = vst [vmem:[%s204 + $0xe00] sm:$0xff] %v3216
        %3729 = vst [vmem:[%s204 + $0xe08] sm:$0xff] %v3217
        %3730 = vst [vmem:[%s204 + $0xe10] sm:$0xff] %v3218
        %3731 = vst [vmem:[%s204 + $0xe18] sm:$0xff] %v3219
        %3732 = vst [vmem:[%s204 + $0xe20] sm:$0xff] %v3220
        %3733 = vst [vmem:[%s204 + $0xe28] sm:$0xff] %v3221
        %3734 = vst [vmem:[%s204 + $0xe30] sm:$0xff] %v3222
        %3735 = vst [vmem:[%s204 + $0xe38] sm:$0xff] %v3223
        %3736 = vst [vmem:[%s204 + $0xe40] sm:$0xff] %v3224
        %3737 = vst [vmem:[%s204 + $0xe48] sm:$0xff] %v3225
        %3738 = vst [vmem:[%s204 + $0xe50] sm:$0xff] %v3226
        %3739 = vst [vmem:[%s204 + $0xe58] sm:$0xff] %v3227
        %3740 = vst [vmem:[%s204 + $0xe60] sm:$0xff] %v3228
        %3741 = vst [vmem:[%s204 + $0xe68] sm:$0xff] %v3229
        %3742 = vst [vmem:[%s204 + $0xe70] sm:$0xff] %v3230
        %3743 = vst [vmem:[%s204 + $0xe78] sm:$0xff] %v3231
        %3744 = vst [vmem:[%s204 + $0xe80] sm:$0xff] %v3232
        %3745 = vst [vmem:[%s204 + $0xe88] sm:$0xff] %v3233
        %3746 = vst [vmem:[%s204 + $0xe90] sm:$0xff] %v3234
        %3747 = vst [vmem:[%s204 + $0xe98] sm:$0xff] %v3235
        %3748 = vst [vmem:[%s204 + $0xea0] sm:$0xff] %v3236
        %3749 = vst [vmem:[%s204 + $0xea8] sm:$0xff] %v3237
        %3750 = vst [vmem:[%s204 + $0xeb0] sm:$0xff] %v3238
        %3751 = vst [vmem:[%s204 + $0xeb8] sm:$0xff] %v3239
        %3752 = vst [vmem:[%s204 + $0xec0] sm:$0xff] %v3240
        %3753 = vst [vmem:[%s204 + $0xec8] sm:$0xff] %v3241
        %3754 = vst [vmem:[%s204 + $0xed0] sm:$0xff] %v3242
        %3755 = vst [vmem:[%s204 + $0xed8] sm:$0xff] %v3243
        %3756 = vst [vmem:[%s204 + $0xee0] sm:$0xff] %v3244
        %3757 = vst [vmem:[%s204 + $0xee8] sm:$0xff] %v3245
        %3758 = vst [vmem:[%s204 + $0xef0] sm:$0xff] %v3246
        %3759 = vst [vmem:[%s204 + $0xef8] sm:$0xff] %v3247
        %3760 = vst [vmem:[%s204 + $0xf00] sm:$0xff] %v3248
        %3761 = vst [vmem:[%s204 + $0xf08] sm:$0xff] %v3249
        %3762 = vst [vmem:[%s204 + $0xf10] sm:$0xff] %v3250
        %3763 = vst [vmem:[%s204 + $0xf18] sm:$0xff] %v3251
        %3764 = vst [vmem:[%s204 + $0xf20] sm:$0xff] %v3252
        %3765 = vst [vmem:[%s204 + $0xf28] sm:$0xff] %v3253
        %3766 = vst [vmem:[%s204 + $0xf30] sm:$0xff] %v3254
        %3767 = vst [vmem:[%s204 + $0xf38] sm:$0xff] %v3255
        %3768 = vst [vmem:[%s204 + $0xf40] sm:$0xff] %v3256
        %3769 = vst [vmem:[%s204 + $0xf48] sm:$0xff] %v3257
        %3770 = vst [vmem:[%s204 + $0xf50] sm:$0xff] %v3258
        %3771 = vst [vmem:[%s204 + $0xf58] sm:$0xff] %v3259
        %3772 = vst [vmem:[%s204 + $0xf60] sm:$0xff] %v3260
        %3773 = vst [vmem:[%s204 + $0xf68] sm:$0xff] %v3261
        %3774 = vst [vmem:[%s204 + $0xf70] sm:$0xff] %v3262
        %3775 = vst [vmem:[%s204 + $0xf78] sm:$0xff] %v3263
        %3776 = vst [vmem:[%s204 + $0xf80] sm:$0xff] %v3264
        %3777 = vst [vmem:[%s204 + $0xf88] sm:$0xff] %v3265
        %3778 = vst [vmem:[%s204 + $0xf90] sm:$0xff] %v3266
        %3779 = vst [vmem:[%s204 + $0xf98] sm:$0xff] %v3267
        %3780 = vst [vmem:[%s204 + $0xfa0] sm:$0xff] %v3268
        %3781 = vst [vmem:[%s204 + $0xfa8] sm:$0xff] %v3269
        %3782 = vst [vmem:[%s204 + $0xfb0] sm:$0xff] %v3270
        %3783 = vst [vmem:[%s204 + $0xfb8] sm:$0xff] %v3271
        %3784 = vst [vmem:[%s204 + $0xfc0] sm:$0xff] %v3272
        %3785 = vst [vmem:[%s204 + $0xfc8] sm:$0xff] %v3273
        %3786 = vst [vmem:[%s204 + $0xfd0] sm:$0xff] %v3274
        %3787 = vst [vmem:[%s204 + $0xfd8] sm:$0xff] %v3275
        %3788 = vst [vmem:[%s204 + $0xfe0] sm:$0xff] %v3276
        %3789 = vst [vmem:[%s204 + $0xfe8] sm:$0xff] %v3277
        %3790 = vst [vmem:[%s204 + $0xff0] sm:$0xff] %v3278
        %3791 = vst [vmem:[%s204 + $0xff8] sm:$0xff] %v3279
        %s3792 = sand.u32 %s82, 1
        %s3793 = scalar_lea.sflag [#allocation4], %s3792
        %s3794 = sand.u32 %s82, 1
        %s3795 = smul.addr %s3794, 4096
        %s3796 = scalar_lea.vmem [#allocation7], %s3795
        // Predicated region
        $region37: #{tpu_custom_call.1} parent=27 // pred_check
          %p3797 = pneg %p92
        $region38: #{tpu_custom_call.1} parent=27 // pred_check_branch
          %3799 = sbr.rel (%p3797) target = $region40
        $region39: #{tpu_custom_call.1} parent=27 // pred_region
          %s3800 = smul.u32 512, %s22
          %3802 = vsyncadd %s3793, 0
          %s3803 = smul.addr %s3800, 8
          %s3804 = scalar_lea.hbm %s2, %s3803
          %s3805 = sshll.u32 %s3796, 4
          %s3806 = int_to_ptr.vmem [resolvable:$true] %s3805
          %s3807 = sshll.u32 %s3804, 4
          %s3808 = int_to_ptr.hbm [resolvable:$true] %s3807
          %3813 = dma.vmem_to_hbm [thread:$0]  %s3806, 65536, %s3808, %s3793, 128, 128, 8
        $region40: #{tpu_custom_call.1} parent=27 // pred_fallthru
          _
      $region28: #{tpu_custom_call.1} parent=5 // pred_fallthru
        _
      %p3814 = scmp.le.s32.totalorder 2, %s17
      // Predicated region
      $region41: #{tpu_custom_call.1} parent=5 // pred_check
        %p3815 = pneg %p3814
      $region42: #{tpu_custom_call.1} parent=5 // pred_check_branch
        %3817 = sbr.rel (%p3815) target = $region44
      $region43: #{tpu_custom_call.1} parent=5 // pred_region
        %s3818 = ssub.s32 %s17, 2
        // Predicated region
        $region45: #{tpu_custom_call.1} parent=43 // pred_check
          %p3819 = pneg %p98
        $region46: #{tpu_custom_call.1} parent=43 // pred_check_branch
          %3821 = sbr.rel (%p3819) target = $region48
        $region47: #{tpu_custom_call.1} parent=43 // pred_region
          %s3822 = sand.u32 %s83, 1
          %s3823 = scalar_lea.sflag [#allocation4], %s3822
          %s3824 = sand.u32 %s83, 1
          %s3825 = smul.addr %s3824, 4096
          %s3826 = scalar_lea.vmem [#allocation7], %s3825
          %3828 = dma.done %s3823, 65536
        $region48: #{tpu_custom_call.1} parent=43 // pred_fallthru
          _
      $region44: #{tpu_custom_call.1} parent=5 // pred_fallthru
        _
    $region6: #{tpu_custom_call.1} parent=1 // loop_footer
      %s21 = sadd.s32 1, %s17
    $region7: #{tpu_custom_call.1} parent=1 // loop_footer_branch
      %16 = sbr.rel target = $region3
    $region8: #{tpu_custom_call.1} parent=1 // loop_exit
      _
    %3829 = vsyncpa [#allocation3], 1
    %s3830 = scalar_lea.sflag [#allocation3], 1
    %3831 = vsyncpa %s3830, 1
    %3832 = vsyncpa [#allocation6], 1
    %s3833 = scalar_lea.sflag [#allocation6], 1
    %3834 = vsyncpa %s3833, 1
    %3835 = vsyncpa [#allocation4], 1
    %s3836 = scalar_lea.sflag [#allocation4], 1
    %3837 = vsyncpa %s3836, 1

</llo_original>
